<compile_context>
chip_gen: v7x
topology: tpu7x:2x2x1
jax: 0.10.0
libtpu: 0.0.40
codegen_flags: <defaults>
</compile_context>

<pallas_src>
import functools
import math

import numpy as np
import jax
import jax.numpy as jnp
from jax import lax
from jax.experimental import pallas as pl
from jax.experimental.pallas import tpu as pltpu


def _prob_attn_kernel(q_ref, k_ref, v_ref, cnt_ref, out_ref, *,
                      scale, n_top, l_k, mask_flag):
    f32 = jnp.float32
    neg = jnp.float32(-1e30)

    q = q_ref[0].astype(f32)        # (H, L_Q, D)
    k = k_ref[0].astype(f32)        # (H, L_K, D)
    v = v_ref[0].astype(f32)        # (H, L_V, D)
    cnt = cnt_ref[...]              # (L_Q, L_K) sample multiplicities (float)

    h, l_q, d = q.shape
    l_v = v.shape[1]

    # Full attention scores: reused for the sparsity measure and the top rows.
    s_full = jnp.einsum("hqd,hkd->hqk", q, k,
                        preferred_element_type=f32)                    # (H,L_Q,L_K)

    # Sparsity measure M = max over sampled keys - (sum over sampled keys)/L_K.
    present = (cnt > 0.0)[None, :, :]                                   # (1,L_Q,L_K)
    samp_max = jnp.max(jnp.where(present, s_full, neg), axis=-1)        # (H,L_Q)
    samp_sum = jnp.sum(s_full * cnt[None, :, :], axis=-1)               # (H,L_Q)
    m_meas = samp_max - samp_sum / jnp.float32(l_k)                     # (H,L_Q)

    iota_l = lax.broadcasted_iota(jnp.int32, (h, l_q), 1).astype(f32)   # (H,L_Q)
    t_iota_sub = lax.broadcasted_iota(jnp.int32, (n_top, 1), 0)         # (n_top,1)
    t_iota_lane = lax.broadcasted_iota(jnp.int32, (1, n_top), 1)        # (1,n_top)

    # Iterative argmax top-k; build BOTH one-hot selection layouts so every later
    # contraction is a plain batched (M,K)x(K,N) matmul (no transposed operands).
    def topk_body(t, carry):
        m_cur, osel, osel_t = carry
        row_max = jnp.max(m_cur, axis=-1, keepdims=True)                # (H,1)
        cand = jnp.where(m_cur >= row_max, iota_l, jnp.float32(l_q))
        sel = jnp.min(cand, axis=-1, keepdims=True)                     # (H,1)
        onehot = (iota_l == sel).astype(f32)                            # (H,L_Q)
        t_oh_s = (t_iota_sub == t).astype(f32)                          # (n_top,1)
        t_oh_l = (t_iota_lane == t).astype(f32)                         # (1,n_top)
        osel = osel + onehot[:, None, :] * t_oh_s[None, :, :]           # (H,n_top,L_Q)
        osel_t = osel_t + onehot[:, :, None] * t_oh_l[None, :, :]       # (H,L_Q,n_top)
        m_cur = jnp.where(onehot > 0.0, neg, m_cur)
        return m_cur, osel, osel_t

    osel0 = jnp.zeros((h, n_top, l_q), dtype=f32)
    osel_t0 = jnp.zeros((h, l_q, n_top), dtype=f32)
    _, osel, osel_t = lax.fori_loop(0, n_top, topk_body,
                                    (m_meas, osel0, osel_t0), unroll=True)

    # Original query positions of the selected rows (exact small ints): (H,n_top)
    idx_f = jnp.sum(osel * iota_l[:, None, :], axis=-1)

    # scores_top = Q_reduce @ K^T (exact one-hot row selection of s_full) * scale
    scores = jnp.einsum("hul,hlk->huk", osel, s_full,
                        preferred_element_type=f32) * jnp.float32(scale)  # (H,u,L_K)

    if mask_flag:
        # ProbMask: key j is masked iff j > original query position.
        j_iota = lax.broadcasted_iota(jnp.int32, (1, 1, l_k), 2).astype(f32)
        causal = j_iota > idx_f[:, :, None]                               # (H,u,L_K)
        scores = jnp.where(causal, neg, scores)

    row_m = jnp.max(scores, axis=-1, keepdims=True)
    p = jnp.exp(scores - row_m)
    attn = p / jnp.sum(p, axis=-1, keepdims=True)                         # (H,u,L_K)

    upd = jnp.einsum("huk,hkd->hud", attn, v,
                     preferred_element_type=f32)                          # (H,u,D)

    # Initial context.
    if mask_flag:
        # cumsum over the value sequence as a lower-triangular matmul (L_Q == L_V)
        rr = lax.broadcasted_iota(jnp.int32, (l_q, l_v), 0)
        cc = lax.broadcasted_iota(jnp.int32, (l_q, l_v), 1)
        tril = (cc <= rr).astype(f32)
        tril_b = jnp.broadcast_to(tril[None, :, :], (h, l_q, l_v))
        ctx0 = jnp.einsum("hql,hld->hqd", tril_b, v,
                          preferred_element_type=f32)                     # (H,L_Q,D)
    else:
        ctx0 = jnp.broadcast_to(jnp.mean(v, axis=1, keepdims=True), (h, l_q, d))

    # Scatter the updated rows back (selected indices are distinct by construction).
    sel_any = jnp.sum(osel, axis=1)                                       # (H,L_Q)
    scattered = jnp.einsum("hlu,hud->hld", osel_t, upd,
                           preferred_element_type=f32)                    # (H,L_Q,D)
    ctx = ctx0 * (1.0 - sel_any)[:, :, None] + scattered

    out_ref[0] = ctx.astype(out_ref.dtype)


def prob_attention(queries, keys, values, attn_mask=None, *, mask_flag=True,
                   factor=5, scale=None, output_attention=False,
                   index_sample=None, sample_key=None):
    """queries/keys/values: (B, L, H, D). Returns (context (B, L_Q, H, D), None)."""
    del attn_mask  # rebuilt internally as ProbMask, exactly like the torch module
    if output_attention:
        # TODO(synk): (B,H,L_V,L_V) attention-map output not implemented.
        raise NotImplementedError("output_attention=True is not supported")

    B, L_Q, H, D = queries.shape
    L_K = keys.shape[1]
    L_V = values.shape[1]

    U_part = min(factor * int(np.ceil(np.log(L_K))), L_K)
    u = min(factor * int(np.ceil(np.log(L_Q))), L_Q)

    if index_sample is None:
        if sample_key is None:
            sample_key = jax.random.PRNGKey(0)
        index_sample = jax.random.randint(sample_key, (L_Q, U_part), 0, L_K)

    # Dense multiplicity matrix of sampled key ids (shared over B and H, like torch).
    counts = jnp.sum(
        index_sample[:, :, None] == jnp.arange(L_K)[None, None, :], axis=1
    ).astype(jnp.float32)                                                 # (L_Q, L_K)

    if mask_flag:
        assert L_Q == L_V, "masked ProbAttention requires L_Q == L_V"

    scale_val = float(scale) if scale is not None else 1.0 / math.sqrt(D)

    q_bhld = jnp.transpose(queries, (0, 2, 1, 3)).astype(jnp.float32)     # (B,H,L_Q,D)
    k_bhld = jnp.transpose(keys, (0, 2, 1, 3)).astype(jnp.float32)        # (B,H,L_K,D)
    v_bhld = jnp.transpose(values, (0, 2, 1, 3)).astype(jnp.float32)      # (B,H,L_V,D)

    kernel = functools.partial(_prob_attn_kernel, scale=scale_val, n_top=u,
                               l_k=L_K, mask_flag=mask_flag)

    out_bhld = pl.pallas_call(
        kernel,
        out_shape=jax.ShapeDtypeStruct((B, H, L_Q, D), jnp.float32),
        grid=(B,),
        in_specs=[
            pl.BlockSpec((1, H, L_Q, D), lambda b: (b, 0, 0, 0)),   # Q
            pl.BlockSpec((1, H, L_K, D), lambda b: (b, 0, 0, 0)),   # K
            pl.BlockSpec((1, H, L_V, D), lambda b: (b, 0, 0, 0)),   # V
            pl.BlockSpec((L_Q, L_K), lambda b: (0, 0)),             # sample counts
        ],
        out_specs=pl.BlockSpec((1, H, L_Q, D), lambda b: (b, 0, 0, 0)),
        compiler_params=pltpu.CompilerParams(
            dimension_semantics=("parallel",)),
    )(q_bhld, k_bhld, v_bhld, counts)

    out = jnp.transpose(out_bhld, (0, 2, 1, 3))                           # (B,L_Q,H,D)
    return out, None


def _reference_np(q, k, v, index_sample, *, mask_flag=True, factor=5, scale=None):
    """Numpy mirror of ProbAttention.forward given the same sampled key indices."""
    q = np.asarray(q, np.float32)
    k = np.asarray(k, np.float32)
    v = np.asarray(v, np.float32)
    B, L_Q, H, D = q.shape
    L_K = k.shape[1]
    L_V = v.shape[1]
    Q = q.transpose(0, 2, 1, 3)
    K = k.transpose(0, 2, 1, 3)
    V = v.transpose(0, 2, 1, 3)
    idx = np.asarray(index_sample)
    u = min(factor * int(np.ceil(np.log(L_Q))), L_Q)

    K_sample = K[:, :, idx, :]                                     # (B,H,L_Q,S,D)
    QKs = np.einsum("bhld,bhlsd->bhls", Q, K_sample)
    M = QKs.max(-1) - QKs.sum(-1) / L_K
    M_top = np.argsort(-M, axis=-1)[..., :u]                       # (B,H,u)

    b_idx = np.arange(B)[:, None, None]
    h_idx = np.arange(H)[None, :, None]
    Q_reduce = Q[b_idx, h_idx, M_top, :]                           # (B,H,u,D)
    sc = float(scale) if scale is not None else 1.0 / math.sqrt(D)
    scores = np.einsum("bhud,bhkd->bhuk", Q_reduce, K) * sc

    if mask_flag:
        assert L_Q == L_V
        context = np.cumsum(V, axis=2)
        jj = np.arange(L_K)[None, None, None, :]
        mask = jj > M_top[..., None]
        scores = np.where(mask, -np.inf, scores)
    else:
        context = np.broadcast_to(V.mean(axis=2, keepdims=True),
                                  (B, H, L_Q, D)).copy()

    m = scores.max(-1, keepdims=True)
    e = np.exp(scores - m)
    attn = e / e.sum(-1, keepdims=True)
    upd = np.einsum("bhuk,bhkd->bhud", attn, V)
    context = np.array(context)
    context[b_idx, h_idx, M_top, :] = upd
    return context.transpose(0, 2, 1, 3), None


if __name__ == "__main__":
    B, L, H, D = 2, 16, 4, 32          # queries/keys/values: (B, L, H, D)
    factor = 5

    key = jax.random.PRNGKey(0)
    kq, kk, kv, ks = jax.random.split(key, 4)
    q = 0.3 * jax.random.normal(kq, (B, L, H, D), dtype=jnp.float32)
    k = 0.3 * jax.random.normal(kk, (B, L, H, D), dtype=jnp.float32)
    v = 0.3 * jax.random.normal(kv, (B, L, H, D), dtype=jnp.float32)

    U_part = min(factor * int(np.ceil(np.log(L))), L)
    index_sample = jax.random.randint(ks, (L, U_part), 0, L)   # shared over B, H

    out, attn = prob_attention(q, k, v, None, mask_flag=True, factor=factor,
                               scale=None, output_attention=False,
                               index_sample=index_sample)
    out = jax.block_until_ready(out)

    ref, _ = _reference_np(np.asarray(q), np.asarray(k), np.asarray(v),
                           np.asarray(index_sample), mask_flag=True,
                           factor=factor, scale=None)
    err = float(np.max(np.abs(np.asarray(out, dtype=np.float64)
                              - ref.astype(np.float64))))
    assert out.shape == (B, L, H, D)
    assert attn is None
    assert err < 2e-3, f"max abs err vs reference: {err}"
    print("KERNEL_OK")
</pallas_src>

<mosaic_0001>
module attributes {stable_mosaic.version = 11 : i64} {
  func.func @_prob_attn_kernel(%arg0: i32, %arg1: memref<1x4x16x32xf32, #tpu.memory_space<vmem>>, %arg2: memref<1x4x16x32xf32, #tpu.memory_space<vmem>>, %arg3: memref<1x4x16x32xf32, #tpu.memory_space<vmem>>, %arg4: memref<16x16xf32, #tpu.memory_space<vmem>>, %arg5: memref<1x4x16x32xf32, #tpu.memory_space<vmem>>) attributes {dimension_semantics = [#tpu.dimension_semantics<parallel>], iteration_bounds = array<i64: 2>, scalar_prefetch = 0 : i64, scratch_operands = 0 : i64, tpu.core_type = #tpu.core_type<tc>, window_params = [{transform_indices = @transform_0, window_bounds = array<i64: 1, 4, 16, 32>}, {transform_indices = @transform_1, window_bounds = array<i64: 1, 4, 16, 32>}, {transform_indices = @transform_2, window_bounds = array<i64: 1, 4, 16, 32>}, {pipeline_mode = #tpu.pipeline_mode<synchronous>, transform_indices = @transform_3, window_bounds = array<i64: 16, 16>}, {transform_indices = @transform_4, window_bounds = array<i64: 1, 4, 16, 32>}]} {
    %c0 = arith.constant 0 : index
    %c0_0 = arith.constant 0 : index
    %c0_1 = arith.constant 0 : index
    %c0_2 = arith.constant 0 : index
    %0 = vector.load %arg1[%c0, %c0_0, %c0_1, %c0_2] : memref<1x4x16x32xf32, #tpu.memory_space<vmem>>, vector<1x4x16x32xf32>
    %1 = vector.shape_cast %0 : vector<1x4x16x32xf32> to vector<4x16x32xf32>
    %c0_3 = arith.constant 0 : index
    %c0_4 = arith.constant 0 : index
    %c0_5 = arith.constant 0 : index
    %c0_6 = arith.constant 0 : index
    %2 = vector.load %arg2[%c0_3, %c0_4, %c0_5, %c0_6] : memref<1x4x16x32xf32, #tpu.memory_space<vmem>>, vector<1x4x16x32xf32>
    %3 = vector.shape_cast %2 : vector<1x4x16x32xf32> to vector<4x16x32xf32>
    %c0_7 = arith.constant 0 : index
    %c0_8 = arith.constant 0 : index
    %c0_9 = arith.constant 0 : index
    %c0_10 = arith.constant 0 : index
    %4 = vector.load %arg3[%c0_7, %c0_8, %c0_9, %c0_10] : memref<1x4x16x32xf32, #tpu.memory_space<vmem>>, vector<1x4x16x32xf32>
    %5 = vector.shape_cast %4 : vector<1x4x16x32xf32> to vector<4x16x32xf32>
    %c0_11 = arith.constant 0 : index
    %c0_12 = arith.constant 0 : index
    %6 = vector.load %arg4[%c0_11, %c0_12] : memref<16x16xf32, #tpu.memory_space<vmem>>, vector<16x16xf32>
    "tpu.trace_start"() <{level = 10 : i32, message = "hqd,hkd->hqk"}> : () -> ()
    %cst = arith.constant dense<0.000000e+00> : vector<4x16x16xf32>
    %7 = tpu.matmul %1, %3, %cst {dimension_numbers = #tpu.dot_dimension_numbers<[2], [2], [1], [1], [0, 0, 0, 1, 1, 1], [0], [0]>} : vector<4x16x32xf32>, vector<4x16x32xf32>, vector<4x16x16xf32> -> vector<4x16x16xf32>
    %cst_13 = arith.constant 0.000000e+00 : f32
    "tpu.trace_stop"() : () -> ()
    %8 = vector.broadcast %cst_13 : f32 to vector<16x16xf32>
    %9 = arith.cmpf ogt, %6, %8 : vector<16x16xf32>
    %10 = vector.shape_cast %9 : vector<16x16xi1> to vector<1x16x16xi1>
    %cst_14 = arith.constant -1.000000e+30 : f32
    %11 = vector.shape_cast %10 : vector<1x16x16xi1> to vector<1x16x16xi1>
    %12 = vector.broadcast %11 : vector<1x16x16xi1> to vector<4x16x16xi1>
    %13 = vector.broadcast %cst_14 : f32 to vector<4x16x16xf32>
    %14 = arith.select %12, %7, %13 : vector<4x16x16xi1>, vector<4x16x16xf32>
    %cst_15 = arith.constant dense<0xFF800000> : vector<4x16xf32>
    %15 = vector.multi_reduction <maximumf>, %14, %cst_15 [2] : vector<4x16x16xf32> to vector<4x16xf32>
    %16 = vector.shape_cast %6 : vector<16x16xf32> to vector<1x16x16xf32>
    %17 = vector.broadcast %16 : vector<1x16x16xf32> to vector<4x16x16xf32>
    %18 = arith.mulf %7, %17 : vector<4x16x16xf32>
    %cst_16 = arith.constant dense<0.000000e+00> : vector<4x16xf32>
    %19 = vector.multi_reduction <add>, %18, %cst_16 [2] : vector<4x16x16xf32> to vector<4x16xf32>
    %cst_17 = arith.constant 1.600000e+01 : f32
    %20 = vector.broadcast %cst_17 : f32 to vector<4x16xf32>
    %21 = arith.divf %19, %20 : vector<4x16xf32>
    %22 = arith.subf %15, %21 : vector<4x16xf32>
    %23 = tpu.iota {dimensions = array<i32: 1>} : vector<4x16xi32>
    %24 = arith.sitofp %23 : vector<4x16xi32> to vector<4x16xf32>
    %25 = tpu.iota {dimensions = array<i32: 0>} : vector<15x1xi32>
    %26 = tpu.iota {dimensions = array<i32: 1>} : vector<1x15xi32>
    %cst_18 = arith.constant 0.000000e+00 : f32
    %27 = vector.broadcast %cst_18 : f32 to vector<4x15x16xf32>
    %cst_19 = arith.constant 0.000000e+00 : f32
    %28 = vector.broadcast %cst_19 : f32 to vector<4x16x15xf32>
    %cst_20 = arith.constant -1.000000e+30 : f32
    %c0_i32 = arith.constant 0 : i32
    %cst_21 = arith.constant dense<0xFF800000> : vector<4xf32>
    %29 = vector.multi_reduction <maximumf>, %22, %cst_21 [1] : vector<4x16xf32> to vector<4xf32>
    %30 = vector.shape_cast %29 : vector<4xf32> to vector<4x1xf32>
    %31 = vector.broadcast %30 : vector<4x1xf32> to vector<4x16xf32>
    %32 = arith.cmpf oge, %22, %31 : vector<4x16xf32>
    %cst_22 = arith.constant 1.600000e+01 : f32
    %33 = vector.broadcast %cst_22 : f32 to vector<4x16xf32>
    %34 = arith.select %32, %24, %33 : vector<4x16xi1>, vector<4x16xf32>
    %cst_23 = arith.constant dense<0x7F800000> : vector<4xf32>
    %35 = vector.multi_reduction <minimumf>, %34, %cst_23 [1] : vector<4x16xf32> to vector<4xf32>
    %36 = vector.shape_cast %35 : vector<4xf32> to vector<4x1xf32>
    %37 = vector.broadcast %36 : vector<4x1xf32> to vector<4x16xf32>
    %38 = arith.cmpf oeq, %24, %37 : vector<4x16xf32>
    %39 = arith.extui %38 : vector<4x16xi1> to vector<4x16xi32>
    %40 = arith.sitofp %39 : vector<4x16xi32> to vector<4x16xf32>
    %41 = vector.broadcast %c0_i32 : i32 to vector<15x1xi32>
    %42 = arith.cmpi eq, %25, %41 : vector<15x1xi32>
    %43 = arith.extui %42 : vector<15x1xi1> to vector<15x1xi32>
    %44 = arith.sitofp %43 : vector<15x1xi32> to vector<15x1xf32>
    %45 = vector.broadcast %c0_i32 : i32 to vector<1x15xi32>
    %46 = arith.cmpi eq, %26, %45 : vector<1x15xi32>
    %47 = arith.extui %46 : vector<1x15xi1> to vector<1x15xi32>
    %48 = arith.sitofp %47 : vector<1x15xi32> to vector<1x15xf32>
    %49 = vector.shape_cast %40 : vector<4x16xf32> to vector<4x1x16xf32>
    %50 = vector.shape_cast %44 : vector<15x1xf32> to vector<1x15x1xf32>
    %51 = vector.broadcast %49 : vector<4x1x16xf32> to vector<4x15x16xf32>
    %52 = vector.broadcast %50 : vector<1x15x1xf32> to vector<4x15x16xf32>
    %53 = arith.mulf %51, %52 : vector<4x15x16xf32>
    %54 = arith.addf %27, %53 : vector<4x15x16xf32>
    %55 = vector.shape_cast %40 : vector<4x16xf32> to vector<4x16x1xf32>
    %56 = vector.shape_cast %48 : vector<1x15xf32> to vector<1x1x15xf32>
    %57 = vector.broadcast %55 : vector<4x16x1xf32> to vector<4x16x15xf32>
    %58 = vector.broadcast %56 : vector<1x1x15xf32> to vector<4x16x15xf32>
    %59 = arith.mulf %57, %58 : vector<4x16x15xf32>
    %60 = arith.addf %28, %59 : vector<4x16x15xf32>
    %cst_24 = arith.constant 0.000000e+00 : f32
    %61 = vector.broadcast %cst_24 : f32 to vector<4x16xf32>
    %62 = arith.cmpf ogt, %40, %61 : vector<4x16xf32>
    %63 = vector.broadcast %cst_20 : f32 to vector<4x16xf32>
    %64 = arith.select %62, %63, %22 : vector<4x16xi1>, vector<4x16xf32>
    %c1_i32 = arith.constant 1 : i32
    %cst_25 = arith.constant dense<0xFF800000> : vector<4xf32>
    %65 = vector.multi_reduction <maximumf>, %64, %cst_25 [1] : vector<4x16xf32> to vector<4xf32>
    %66 = vector.shape_cast %65 : vector<4xf32> to vector<4x1xf32>
    %67 = vector.broadcast %66 : vector<4x1xf32> to vector<4x16xf32>
    %68 = arith.cmpf oge, %64, %67 : vector<4x16xf32>
    %cst_26 = arith.constant 1.600000e+01 : f32
    %69 = vector.broadcast %cst_26 : f32 to vector<4x16xf32>
    %70 = arith.select %68, %24, %69 : vector<4x16xi1>, vector<4x16xf32>
    %cst_27 = arith.constant dense<0x7F800000> : vector<4xf32>
    %71 = vector.multi_reduction <minimumf>, %70, %cst_27 [1] : vector<4x16xf32> to vector<4xf32>
    %72 = vector.shape_cast %71 : vector<4xf32> to vector<4x1xf32>
    %73 = vector.broadcast %72 : vector<4x1xf32> to vector<4x16xf32>
    %74 = arith.cmpf oeq, %24, %73 : vector<4x16xf32>
    %75 = arith.extui %74 : vector<4x16xi1> to vector<4x16xi32>
    %76 = arith.sitofp %75 : vector<4x16xi32> to vector<4x16xf32>
    %77 = vector.broadcast %c1_i32 : i32 to vector<15x1xi32>
    %78 = arith.cmpi eq, %25, %77 : vector<15x1xi32>
    %79 = arith.extui %78 : vector<15x1xi1> to vector<15x1xi32>
    %80 = arith.sitofp %79 : vector<15x1xi32> to vector<15x1xf32>
    %81 = vector.broadcast %c1_i32 : i32 to vector<1x15xi32>
    %82 = arith.cmpi eq, %26, %81 : vector<1x15xi32>
    %83 = arith.extui %82 : vector<1x15xi1> to vector<1x15xi32>
    %84 = arith.sitofp %83 : vector<1x15xi32> to vector<1x15xf32>
    %85 = vector.shape_cast %76 : vector<4x16xf32> to vector<4x1x16xf32>
    %86 = vector.shape_cast %80 : vector<15x1xf32> to vector<1x15x1xf32>
    %87 = vector.broadcast %85 : vector<4x1x16xf32> to vector<4x15x16xf32>
    %88 = vector.broadcast %86 : vector<1x15x1xf32> to vector<4x15x16xf32>
    %89 = arith.mulf %87, %88 : vector<4x15x16xf32>
    %90 = arith.addf %54, %89 : vector<4x15x16xf32>
    %91 = vector.shape_cast %76 : vector<4x16xf32> to vector<4x16x1xf32>
    %92 = vector.shape_cast %84 : vector<1x15xf32> to vector<1x1x15xf32>
    %93 = vector.broadcast %91 : vector<4x16x1xf32> to vector<4x16x15xf32>
    %94 = vector.broadcast %92 : vector<1x1x15xf32> to vector<4x16x15xf32>
    %95 = arith.mulf %93, %94 : vector<4x16x15xf32>
    %96 = arith.addf %60, %95 : vector<4x16x15xf32>
    %cst_28 = arith.constant 0.000000e+00 : f32
    %97 = vector.broadcast %cst_28 : f32 to vector<4x16xf32>
    %98 = arith.cmpf ogt, %76, %97 : vector<4x16xf32>
    %99 = vector.broadcast %cst_20 : f32 to vector<4x16xf32>
    %100 = arith.select %98, %99, %64 : vector<4x16xi1>, vector<4x16xf32>
    %c2_i32 = arith.constant 2 : i32
    %cst_29 = arith.constant dense<0xFF800000> : vector<4xf32>
    %101 = vector.multi_reduction <maximumf>, %100, %cst_29 [1] : vector<4x16xf32> to vector<4xf32>
    %102 = vector.shape_cast %101 : vector<4xf32> to vector<4x1xf32>
    %103 = vector.broadcast %102 : vector<4x1xf32> to vector<4x16xf32>
    %104 = arith.cmpf oge, %100, %103 : vector<4x16xf32>
    %cst_30 = arith.constant 1.600000e+01 : f32
    %105 = vector.broadcast %cst_30 : f32 to vector<4x16xf32>
    %106 = arith.select %104, %24, %105 : vector<4x16xi1>, vector<4x16xf32>
    %cst_31 = arith.constant dense<0x7F800000> : vector<4xf32>
    %107 = vector.multi_reduction <minimumf>, %106, %cst_31 [1] : vector<4x16xf32> to vector<4xf32>
    %108 = vector.shape_cast %107 : vector<4xf32> to vector<4x1xf32>
    %109 = vector.broadcast %108 : vector<4x1xf32> to vector<4x16xf32>
    %110 = arith.cmpf oeq, %24, %109 : vector<4x16xf32>
    %111 = arith.extui %110 : vector<4x16xi1> to vector<4x16xi32>
    %112 = arith.sitofp %111 : vector<4x16xi32> to vector<4x16xf32>
    %113 = vector.broadcast %c2_i32 : i32 to vector<15x1xi32>
    %114 = arith.cmpi eq, %25, %113 : vector<15x1xi32>
    %115 = arith.extui %114 : vector<15x1xi1> to vector<15x1xi32>
    %116 = arith.sitofp %115 : vector<15x1xi32> to vector<15x1xf32>
    %117 = vector.broadcast %c2_i32 : i32 to vector<1x15xi32>
    %118 = arith.cmpi eq, %26, %117 : vector<1x15xi32>
    %119 = arith.extui %118 : vector<1x15xi1> to vector<1x15xi32>
    %120 = arith.sitofp %119 : vector<1x15xi32> to vector<1x15xf32>
    %121 = vector.shape_cast %112 : vector<4x16xf32> to vector<4x1x16xf32>
    %122 = vector.shape_cast %116 : vector<15x1xf32> to vector<1x15x1xf32>
    %123 = vector.broadcast %121 : vector<4x1x16xf32> to vector<4x15x16xf32>
    %124 = vector.broadcast %122 : vector<1x15x1xf32> to vector<4x15x16xf32>
    %125 = arith.mulf %123, %124 : vector<4x15x16xf32>
    %126 = arith.addf %90, %125 : vector<4x15x16xf32>
    %127 = vector.shape_cast %112 : vector<4x16xf32> to vector<4x16x1xf32>
    %128 = vector.shape_cast %120 : vector<1x15xf32> to vector<1x1x15xf32>
    %129 = vector.broadcast %127 : vector<4x16x1xf32> to vector<4x16x15xf32>
    %130 = vector.broadcast %128 : vector<1x1x15xf32> to vector<4x16x15xf32>
    %131 = arith.mulf %129, %130 : vector<4x16x15xf32>
    %132 = arith.addf %96, %131 : vector<4x16x15xf32>
    %cst_32 = arith.constant 0.000000e+00 : f32
    %133 = vector.broadcast %cst_32 : f32 to vector<4x16xf32>
    %134 = arith.cmpf ogt, %112, %133 : vector<4x16xf32>
    %135 = vector.broadcast %cst_20 : f32 to vector<4x16xf32>
    %136 = arith.select %134, %135, %100 : vector<4x16xi1>, vector<4x16xf32>
    %c3_i32 = arith.constant 3 : i32
    %cst_33 = arith.constant dense<0xFF800000> : vector<4xf32>
    %137 = vector.multi_reduction <maximumf>, %136, %cst_33 [1] : vector<4x16xf32> to vector<4xf32>
    %138 = vector.shape_cast %137 : vector<4xf32> to vector<4x1xf32>
    %139 = vector.broadcast %138 : vector<4x1xf32> to vector<4x16xf32>
    %140 = arith.cmpf oge, %136, %139 : vector<4x16xf32>
    %cst_34 = arith.constant 1.600000e+01 : f32
    %141 = vector.broadcast %cst_34 : f32 to vector<4x16xf32>
    %142 = arith.select %140, %24, %141 : vector<4x16xi1>, vector<4x16xf32>
    %cst_35 = arith.constant dense<0x7F800000> : vector<4xf32>
    %143 = vector.multi_reduction <minimumf>, %142, %cst_35 [1] : vector<4x16xf32> to vector<4xf32>
    %144 = vector.shape_cast %143 : vector<4xf32> to vector<4x1xf32>
    %145 = vector.broadcast %144 : vector<4x1xf32> to vector<4x16xf32>
    %146 = arith.cmpf oeq, %24, %145 : vector<4x16xf32>
    %147 = arith.extui %146 : vector<4x16xi1> to vector<4x16xi32>
    %148 = arith.sitofp %147 : vector<4x16xi32> to vector<4x16xf32>
    %149 = vector.broadcast %c3_i32 : i32 to vector<15x1xi32>
    %150 = arith.cmpi eq, %25, %149 : vector<15x1xi32>
    %151 = arith.extui %150 : vector<15x1xi1> to vector<15x1xi32>
    %152 = arith.sitofp %151 : vector<15x1xi32> to vector<15x1xf32>
    %153 = vector.broadcast %c3_i32 : i32 to vector<1x15xi32>
    %154 = arith.cmpi eq, %26, %153 : vector<1x15xi32>
    %155 = arith.extui %154 : vector<1x15xi1> to vector<1x15xi32>
    %156 = arith.sitofp %155 : vector<1x15xi32> to vector<1x15xf32>
    %157 = vector.shape_cast %148 : vector<4x16xf32> to vector<4x1x16xf32>
    %158 = vector.shape_cast %152 : vector<15x1xf32> to vector<1x15x1xf32>
    %159 = vector.broadcast %157 : vector<4x1x16xf32> to vector<4x15x16xf32>
    %160 = vector.broadcast %158 : vector<1x15x1xf32> to vector<4x15x16xf32>
    %161 = arith.mulf %159, %160 : vector<4x15x16xf32>
    %162 = arith.addf %126, %161 : vector<4x15x16xf32>
    %163 = vector.shape_cast %148 : vector<4x16xf32> to vector<4x16x1xf32>
    %164 = vector.shape_cast %156 : vector<1x15xf32> to vector<1x1x15xf32>
    %165 = vector.broadcast %163 : vector<4x16x1xf32> to vector<4x16x15xf32>
    %166 = vector.broadcast %164 : vector<1x1x15xf32> to vector<4x16x15xf32>
    %167 = arith.mulf %165, %166 : vector<4x16x15xf32>
    %168 = arith.addf %132, %167 : vector<4x16x15xf32>
    %cst_36 = arith.constant 0.000000e+00 : f32
    %169 = vector.broadcast %cst_36 : f32 to vector<4x16xf32>
    %170 = arith.cmpf ogt, %148, %169 : vector<4x16xf32>
    %171 = vector.broadcast %cst_20 : f32 to vector<4x16xf32>
    %172 = arith.select %170, %171, %136 : vector<4x16xi1>, vector<4x16xf32>
    %c4_i32 = arith.constant 4 : i32
    %cst_37 = arith.constant dense<0xFF800000> : vector<4xf32>
    %173 = vector.multi_reduction <maximumf>, %172, %cst_37 [1] : vector<4x16xf32> to vector<4xf32>
    %174 = vector.shape_cast %173 : vector<4xf32> to vector<4x1xf32>
    %175 = vector.broadcast %174 : vector<4x1xf32> to vector<4x16xf32>
    %176 = arith.cmpf oge, %172, %175 : vector<4x16xf32>
    %cst_38 = arith.constant 1.600000e+01 : f32
    %177 = vector.broadcast %cst_38 : f32 to vector<4x16xf32>
    %178 = arith.select %176, %24, %177 : vector<4x16xi1>, vector<4x16xf32>
    %cst_39 = arith.constant dense<0x7F800000> : vector<4xf32>
    %179 = vector.multi_reduction <minimumf>, %178, %cst_39 [1] : vector<4x16xf32> to vector<4xf32>
    %180 = vector.shape_cast %179 : vector<4xf32> to vector<4x1xf32>
    %181 = vector.broadcast %180 : vector<4x1xf32> to vector<4x16xf32>
    %182 = arith.cmpf oeq, %24, %181 : vector<4x16xf32>
    %183 = arith.extui %182 : vector<4x16xi1> to vector<4x16xi32>
    %184 = arith.sitofp %183 : vector<4x16xi32> to vector<4x16xf32>
    %185 = vector.broadcast %c4_i32 : i32 to vector<15x1xi32>
    %186 = arith.cmpi eq, %25, %185 : vector<15x1xi32>
    %187 = arith.extui %186 : vector<15x1xi1> to vector<15x1xi32>
    %188 = arith.sitofp %187 : vector<15x1xi32> to vector<15x1xf32>
    %189 = vector.broadcast %c4_i32 : i32 to vector<1x15xi32>
    %190 = arith.cmpi eq, %26, %189 : vector<1x15xi32>
    %191 = arith.extui %190 : vector<1x15xi1> to vector<1x15xi32>
    %192 = arith.sitofp %191 : vector<1x15xi32> to vector<1x15xf32>
    %193 = vector.shape_cast %184 : vector<4x16xf32> to vector<4x1x16xf32>
    %194 = vector.shape_cast %188 : vector<15x1xf32> to vector<1x15x1xf32>
    %195 = vector.broadcast %193 : vector<4x1x16xf32> to vector<4x15x16xf32>
    %196 = vector.broadcast %194 : vector<1x15x1xf32> to vector<4x15x16xf32>
    %197 = arith.mulf %195, %196 : vector<4x15x16xf32>
    %198 = arith.addf %162, %197 : vector<4x15x16xf32>
    %199 = vector.shape_cast %184 : vector<4x16xf32> to vector<4x16x1xf32>
    %200 = vector.shape_cast %192 : vector<1x15xf32> to vector<1x1x15xf32>
    %201 = vector.broadcast %199 : vector<4x16x1xf32> to vector<4x16x15xf32>
    %202 = vector.broadcast %200 : vector<1x1x15xf32> to vector<4x16x15xf32>
    %203 = arith.mulf %201, %202 : vector<4x16x15xf32>
    %204 = arith.addf %168, %203 : vector<4x16x15xf32>
    %cst_40 = arith.constant 0.000000e+00 : f32
    %205 = vector.broadcast %cst_40 : f32 to vector<4x16xf32>
    %206 = arith.cmpf ogt, %184, %205 : vector<4x16xf32>
    %207 = vector.broadcast %cst_20 : f32 to vector<4x16xf32>
    %208 = arith.select %206, %207, %172 : vector<4x16xi1>, vector<4x16xf32>
    %c5_i32 = arith.constant 5 : i32
    %cst_41 = arith.constant dense<0xFF800000> : vector<4xf32>
    %209 = vector.multi_reduction <maximumf>, %208, %cst_41 [1] : vector<4x16xf32> to vector<4xf32>
    %210 = vector.shape_cast %209 : vector<4xf32> to vector<4x1xf32>
    %211 = vector.broadcast %210 : vector<4x1xf32> to vector<4x16xf32>
    %212 = arith.cmpf oge, %208, %211 : vector<4x16xf32>
    %cst_42 = arith.constant 1.600000e+01 : f32
    %213 = vector.broadcast %cst_42 : f32 to vector<4x16xf32>
    %214 = arith.select %212, %24, %213 : vector<4x16xi1>, vector<4x16xf32>
    %cst_43 = arith.constant dense<0x7F800000> : vector<4xf32>
    %215 = vector.multi_reduction <minimumf>, %214, %cst_43 [1] : vector<4x16xf32> to vector<4xf32>
    %216 = vector.shape_cast %215 : vector<4xf32> to vector<4x1xf32>
    %217 = vector.broadcast %216 : vector<4x1xf32> to vector<4x16xf32>
    %218 = arith.cmpf oeq, %24, %217 : vector<4x16xf32>
    %219 = arith.extui %218 : vector<4x16xi1> to vector<4x16xi32>
    %220 = arith.sitofp %219 : vector<4x16xi32> to vector<4x16xf32>
    %221 = vector.broadcast %c5_i32 : i32 to vector<15x1xi32>
    %222 = arith.cmpi eq, %25, %221 : vector<15x1xi32>
    %223 = arith.extui %222 : vector<15x1xi1> to vector<15x1xi32>
    %224 = arith.sitofp %223 : vector<15x1xi32> to vector<15x1xf32>
    %225 = vector.broadcast %c5_i32 : i32 to vector<1x15xi32>
    %226 = arith.cmpi eq, %26, %225 : vector<1x15xi32>
    %227 = arith.extui %226 : vector<1x15xi1> to vector<1x15xi32>
    %228 = arith.sitofp %227 : vector<1x15xi32> to vector<1x15xf32>
    %229 = vector.shape_cast %220 : vector<4x16xf32> to vector<4x1x16xf32>
    %230 = vector.shape_cast %224 : vector<15x1xf32> to vector<1x15x1xf32>
    %231 = vector.broadcast %229 : vector<4x1x16xf32> to vector<4x15x16xf32>
    %232 = vector.broadcast %230 : vector<1x15x1xf32> to vector<4x15x16xf32>
    %233 = arith.mulf %231, %232 : vector<4x15x16xf32>
    %234 = arith.addf %198, %233 : vector<4x15x16xf32>
    %235 = vector.shape_cast %220 : vector<4x16xf32> to vector<4x16x1xf32>
    %236 = vector.shape_cast %228 : vector<1x15xf32> to vector<1x1x15xf32>
    %237 = vector.broadcast %235 : vector<4x16x1xf32> to vector<4x16x15xf32>
    %238 = vector.broadcast %236 : vector<1x1x15xf32> to vector<4x16x15xf32>
    %239 = arith.mulf %237, %238 : vector<4x16x15xf32>
    %240 = arith.addf %204, %239 : vector<4x16x15xf32>
    %cst_44 = arith.constant 0.000000e+00 : f32
    %241 = vector.broadcast %cst_44 : f32 to vector<4x16xf32>
    %242 = arith.cmpf ogt, %220, %241 : vector<4x16xf32>
    %243 = vector.broadcast %cst_20 : f32 to vector<4x16xf32>
    %244 = arith.select %242, %243, %208 : vector<4x16xi1>, vector<4x16xf32>
    %c6_i32 = arith.constant 6 : i32
    %cst_45 = arith.constant dense<0xFF800000> : vector<4xf32>
    %245 = vector.multi_reduction <maximumf>, %244, %cst_45 [1] : vector<4x16xf32> to vector<4xf32>
    %246 = vector.shape_cast %245 : vector<4xf32> to vector<4x1xf32>
    %247 = vector.broadcast %246 : vector<4x1xf32> to vector<4x16xf32>
    %248 = arith.cmpf oge, %244, %247 : vector<4x16xf32>
    %cst_46 = arith.constant 1.600000e+01 : f32
    %249 = vector.broadcast %cst_46 : f32 to vector<4x16xf32>
    %250 = arith.select %248, %24, %249 : vector<4x16xi1>, vector<4x16xf32>
    %cst_47 = arith.constant dense<0x7F800000> : vector<4xf32>
    %251 = vector.multi_reduction <minimumf>, %250, %cst_47 [1] : vector<4x16xf32> to vector<4xf32>
    %252 = vector.shape_cast %251 : vector<4xf32> to vector<4x1xf32>
    %253 = vector.broadcast %252 : vector<4x1xf32> to vector<4x16xf32>
    %254 = arith.cmpf oeq, %24, %253 : vector<4x16xf32>
    %255 = arith.extui %254 : vector<4x16xi1> to vector<4x16xi32>
    %256 = arith.sitofp %255 : vector<4x16xi32> to vector<4x16xf32>
    %257 = vector.broadcast %c6_i32 : i32 to vector<15x1xi32>
    %258 = arith.cmpi eq, %25, %257 : vector<15x1xi32>
    %259 = arith.extui %258 : vector<15x1xi1> to vector<15x1xi32>
    %260 = arith.sitofp %259 : vector<15x1xi32> to vector<15x1xf32>
    %261 = vector.broadcast %c6_i32 : i32 to vector<1x15xi32>
    %262 = arith.cmpi eq, %26, %261 : vector<1x15xi32>
    %263 = arith.extui %262 : vector<1x15xi1> to vector<1x15xi32>
    %264 = arith.sitofp %263 : vector<1x15xi32> to vector<1x15xf32>
    %265 = vector.shape_cast %256 : vector<4x16xf32> to vector<4x1x16xf32>
    %266 = vector.shape_cast %260 : vector<15x1xf32> to vector<1x15x1xf32>
    %267 = vector.broadcast %265 : vector<4x1x16xf32> to vector<4x15x16xf32>
    %268 = vector.broadcast %266 : vector<1x15x1xf32> to vector<4x15x16xf32>
    %269 = arith.mulf %267, %268 : vector<4x15x16xf32>
    %270 = arith.addf %234, %269 : vector<4x15x16xf32>
    %271 = vector.shape_cast %256 : vector<4x16xf32> to vector<4x16x1xf32>
    %272 = vector.shape_cast %264 : vector<1x15xf32> to vector<1x1x15xf32>
    %273 = vector.broadcast %271 : vector<4x16x1xf32> to vector<4x16x15xf32>
    %274 = vector.broadcast %272 : vector<1x1x15xf32> to vector<4x16x15xf32>
    %275 = arith.mulf %273, %274 : vector<4x16x15xf32>
    %276 = arith.addf %240, %275 : vector<4x16x15xf32>
    %cst_48 = arith.constant 0.000000e+00 : f32
    %277 = vector.broadcast %cst_48 : f32 to vector<4x16xf32>
    %278 = arith.cmpf ogt, %256, %277 : vector<4x16xf32>
    %279 = vector.broadcast %cst_20 : f32 to vector<4x16xf32>
    %280 = arith.select %278, %279, %244 : vector<4x16xi1>, vector<4x16xf32>
    %c7_i32 = arith.constant 7 : i32
    %cst_49 = arith.constant dense<0xFF800000> : vector<4xf32>
    %281 = vector.multi_reduction <maximumf>, %280, %cst_49 [1] : vector<4x16xf32> to vector<4xf32>
    %282 = vector.shape_cast %281 : vector<4xf32> to vector<4x1xf32>
    %283 = vector.broadcast %282 : vector<4x1xf32> to vector<4x16xf32>
    %284 = arith.cmpf oge, %280, %283 : vector<4x16xf32>
    %cst_50 = arith.constant 1.600000e+01 : f32
    %285 = vector.broadcast %cst_50 : f32 to vector<4x16xf32>
    %286 = arith.select %284, %24, %285 : vector<4x16xi1>, vector<4x16xf32>
    %cst_51 = arith.constant dense<0x7F800000> : vector<4xf32>
    %287 = vector.multi_reduction <minimumf>, %286, %cst_51 [1] : vector<4x16xf32> to vector<4xf32>
    %288 = vector.shape_cast %287 : vector<4xf32> to vector<4x1xf32>
    %289 = vector.broadcast %288 : vector<4x1xf32> to vector<4x16xf32>
    %290 = arith.cmpf oeq, %24, %289 : vector<4x16xf32>
    %291 = arith.extui %290 : vector<4x16xi1> to vector<4x16xi32>
    %292 = arith.sitofp %291 : vector<4x16xi32> to vector<4x16xf32>
    %293 = vector.broadcast %c7_i32 : i32 to vector<15x1xi32>
    %294 = arith.cmpi eq, %25, %293 : vector<15x1xi32>
    %295 = arith.extui %294 : vector<15x1xi1> to vector<15x1xi32>
    %296 = arith.sitofp %295 : vector<15x1xi32> to vector<15x1xf32>
    %297 = vector.broadcast %c7_i32 : i32 to vector<1x15xi32>
    %298 = arith.cmpi eq, %26, %297 : vector<1x15xi32>
    %299 = arith.extui %298 : vector<1x15xi1> to vector<1x15xi32>
    %300 = arith.sitofp %299 : vector<1x15xi32> to vector<1x15xf32>
    %301 = vector.shape_cast %292 : vector<4x16xf32> to vector<4x1x16xf32>
    %302 = vector.shape_cast %296 : vector<15x1xf32> to vector<1x15x1xf32>
    %303 = vector.broadcast %301 : vector<4x1x16xf32> to vector<4x15x16xf32>
    %304 = vector.broadcast %302 : vector<1x15x1xf32> to vector<4x15x16xf32>
    %305 = arith.mulf %303, %304 : vector<4x15x16xf32>
    %306 = arith.addf %270, %305 : vector<4x15x16xf32>
    %307 = vector.shape_cast %292 : vector<4x16xf32> to vector<4x16x1xf32>
    %308 = vector.shape_cast %300 : vector<1x15xf32> to vector<1x1x15xf32>
    %309 = vector.broadcast %307 : vector<4x16x1xf32> to vector<4x16x15xf32>
    %310 = vector.broadcast %308 : vector<1x1x15xf32> to vector<4x16x15xf32>
    %311 = arith.mulf %309, %310 : vector<4x16x15xf32>
    %312 = arith.addf %276, %311 : vector<4x16x15xf32>
    %cst_52 = arith.constant 0.000000e+00 : f32
    %313 = vector.broadcast %cst_52 : f32 to vector<4x16xf32>
    %314 = arith.cmpf ogt, %292, %313 : vector<4x16xf32>
    %315 = vector.broadcast %cst_20 : f32 to vector<4x16xf32>
    %316 = arith.select %314, %315, %280 : vector<4x16xi1>, vector<4x16xf32>
    %c8_i32 = arith.constant 8 : i32
    %cst_53 = arith.constant dense<0xFF800000> : vector<4xf32>
    %317 = vector.multi_reduction <maximumf>, %316, %cst_53 [1] : vector<4x16xf32> to vector<4xf32>
    %318 = vector.shape_cast %317 : vector<4xf32> to vector<4x1xf32>
    %319 = vector.broadcast %318 : vector<4x1xf32> to vector<4x16xf32>
    %320 = arith.cmpf oge, %316, %319 : vector<4x16xf32>
    %cst_54 = arith.constant 1.600000e+01 : f32
    %321 = vector.broadcast %cst_54 : f32 to vector<4x16xf32>
    %322 = arith.select %320, %24, %321 : vector<4x16xi1>, vector<4x16xf32>
    %cst_55 = arith.constant dense<0x7F800000> : vector<4xf32>
    %323 = vector.multi_reduction <minimumf>, %322, %cst_55 [1] : vector<4x16xf32> to vector<4xf32>
    %324 = vector.shape_cast %323 : vector<4xf32> to vector<4x1xf32>
    %325 = vector.broadcast %324 : vector<4x1xf32> to vector<4x16xf32>
    %326 = arith.cmpf oeq, %24, %325 : vector<4x16xf32>
    %327 = arith.extui %326 : vector<4x16xi1> to vector<4x16xi32>
    %328 = arith.sitofp %327 : vector<4x16xi32> to vector<4x16xf32>
    %329 = vector.broadcast %c8_i32 : i32 to vector<15x1xi32>
    %330 = arith.cmpi eq, %25, %329 : vector<15x1xi32>
    %331 = arith.extui %330 : vector<15x1xi1> to vector<15x1xi32>
    %332 = arith.sitofp %331 : vector<15x1xi32> to vector<15x1xf32>
    %333 = vector.broadcast %c8_i32 : i32 to vector<1x15xi32>
    %334 = arith.cmpi eq, %26, %333 : vector<1x15xi32>
    %335 = arith.extui %334 : vector<1x15xi1> to vector<1x15xi32>
    %336 = arith.sitofp %335 : vector<1x15xi32> to vector<1x15xf32>
    %337 = vector.shape_cast %328 : vector<4x16xf32> to vector<4x1x16xf32>
    %338 = vector.shape_cast %332 : vector<15x1xf32> to vector<1x15x1xf32>
    %339 = vector.broadcast %337 : vector<4x1x16xf32> to vector<4x15x16xf32>
    %340 = vector.broadcast %338 : vector<1x15x1xf32> to vector<4x15x16xf32>
    %341 = arith.mulf %339, %340 : vector<4x15x16xf32>
    %342 = arith.addf %306, %341 : vector<4x15x16xf32>
    %343 = vector.shape_cast %328 : vector<4x16xf32> to vector<4x16x1xf32>
    %344 = vector.shape_cast %336 : vector<1x15xf32> to vector<1x1x15xf32>
    %345 = vector.broadcast %343 : vector<4x16x1xf32> to vector<4x16x15xf32>
    %346 = vector.broadcast %344 : vector<1x1x15xf32> to vector<4x16x15xf32>
    %347 = arith.mulf %345, %346 : vector<4x16x15xf32>
    %348 = arith.addf %312, %347 : vector<4x16x15xf32>
    %cst_56 = arith.constant 0.000000e+00 : f32
    %349 = vector.broadcast %cst_56 : f32 to vector<4x16xf32>
    %350 = arith.cmpf ogt, %328, %349 : vector<4x16xf32>
    %351 = vector.broadcast %cst_20 : f32 to vector<4x16xf32>
    %352 = arith.select %350, %351, %316 : vector<4x16xi1>, vector<4x16xf32>
    %c9_i32 = arith.constant 9 : i32
    %cst_57 = arith.constant dense<0xFF800000> : vector<4xf32>
    %353 = vector.multi_reduction <maximumf>, %352, %cst_57 [1] : vector<4x16xf32> to vector<4xf32>
    %354 = vector.shape_cast %353 : vector<4xf32> to vector<4x1xf32>
    %355 = vector.broadcast %354 : vector<4x1xf32> to vector<4x16xf32>
    %356 = arith.cmpf oge, %352, %355 : vector<4x16xf32>
    %cst_58 = arith.constant 1.600000e+01 : f32
    %357 = vector.broadcast %cst_58 : f32 to vector<4x16xf32>
    %358 = arith.select %356, %24, %357 : vector<4x16xi1>, vector<4x16xf32>
    %cst_59 = arith.constant dense<0x7F800000> : vector<4xf32>
    %359 = vector.multi_reduction <minimumf>, %358, %cst_59 [1] : vector<4x16xf32> to vector<4xf32>
    %360 = vector.shape_cast %359 : vector<4xf32> to vector<4x1xf32>
    %361 = vector.broadcast %360 : vector<4x1xf32> to vector<4x16xf32>
    %362 = arith.cmpf oeq, %24, %361 : vector<4x16xf32>
    %363 = arith.extui %362 : vector<4x16xi1> to vector<4x16xi32>
    %364 = arith.sitofp %363 : vector<4x16xi32> to vector<4x16xf32>
    %365 = vector.broadcast %c9_i32 : i32 to vector<15x1xi32>
    %366 = arith.cmpi eq, %25, %365 : vector<15x1xi32>
    %367 = arith.extui %366 : vector<15x1xi1> to vector<15x1xi32>
    %368 = arith.sitofp %367 : vector<15x1xi32> to vector<15x1xf32>
    %369 = vector.broadcast %c9_i32 : i32 to vector<1x15xi32>
    %370 = arith.cmpi eq, %26, %369 : vector<1x15xi32>
    %371 = arith.extui %370 : vector<1x15xi1> to vector<1x15xi32>
    %372 = arith.sitofp %371 : vector<1x15xi32> to vector<1x15xf32>
    %373 = vector.shape_cast %364 : vector<4x16xf32> to vector<4x1x16xf32>
    %374 = vector.shape_cast %368 : vector<15x1xf32> to vector<1x15x1xf32>
    %375 = vector.broadcast %373 : vector<4x1x16xf32> to vector<4x15x16xf32>
    %376 = vector.broadcast %374 : vector<1x15x1xf32> to vector<4x15x16xf32>
    %377 = arith.mulf %375, %376 : vector<4x15x16xf32>
    %378 = arith.addf %342, %377 : vector<4x15x16xf32>
    %379 = vector.shape_cast %364 : vector<4x16xf32> to vector<4x16x1xf32>
    %380 = vector.shape_cast %372 : vector<1x15xf32> to vector<1x1x15xf32>
    %381 = vector.broadcast %379 : vector<4x16x1xf32> to vector<4x16x15xf32>
    %382 = vector.broadcast %380 : vector<1x1x15xf32> to vector<4x16x15xf32>
    %383 = arith.mulf %381, %382 : vector<4x16x15xf32>
    %384 = arith.addf %348, %383 : vector<4x16x15xf32>
    %cst_60 = arith.constant 0.000000e+00 : f32
    %385 = vector.broadcast %cst_60 : f32 to vector<4x16xf32>
    %386 = arith.cmpf ogt, %364, %385 : vector<4x16xf32>
    %387 = vector.broadcast %cst_20 : f32 to vector<4x16xf32>
    %388 = arith.select %386, %387, %352 : vector<4x16xi1>, vector<4x16xf32>
    %c10_i32 = arith.constant 10 : i32
    %cst_61 = arith.constant dense<0xFF800000> : vector<4xf32>
    %389 = vector.multi_reduction <maximumf>, %388, %cst_61 [1] : vector<4x16xf32> to vector<4xf32>
    %390 = vector.shape_cast %389 : vector<4xf32> to vector<4x1xf32>
    %391 = vector.broadcast %390 : vector<4x1xf32> to vector<4x16xf32>
    %392 = arith.cmpf oge, %388, %391 : vector<4x16xf32>
    %cst_62 = arith.constant 1.600000e+01 : f32
    %393 = vector.broadcast %cst_62 : f32 to vector<4x16xf32>
    %394 = arith.select %392, %24, %393 : vector<4x16xi1>, vector<4x16xf32>
    %cst_63 = arith.constant dense<0x7F800000> : vector<4xf32>
    %395 = vector.multi_reduction <minimumf>, %394, %cst_63 [1] : vector<4x16xf32> to vector<4xf32>
    %396 = vector.shape_cast %395 : vector<4xf32> to vector<4x1xf32>
    %397 = vector.broadcast %396 : vector<4x1xf32> to vector<4x16xf32>
    %398 = arith.cmpf oeq, %24, %397 : vector<4x16xf32>
    %399 = arith.extui %398 : vector<4x16xi1> to vector<4x16xi32>
    %400 = arith.sitofp %399 : vector<4x16xi32> to vector<4x16xf32>
    %401 = vector.broadcast %c10_i32 : i32 to vector<15x1xi32>
    %402 = arith.cmpi eq, %25, %401 : vector<15x1xi32>
    %403 = arith.extui %402 : vector<15x1xi1> to vector<15x1xi32>
    %404 = arith.sitofp %403 : vector<15x1xi32> to vector<15x1xf32>
    %405 = vector.broadcast %c10_i32 : i32 to vector<1x15xi32>
    %406 = arith.cmpi eq, %26, %405 : vector<1x15xi32>
    %407 = arith.extui %406 : vector<1x15xi1> to vector<1x15xi32>
    %408 = arith.sitofp %407 : vector<1x15xi32> to vector<1x15xf32>
    %409 = vector.shape_cast %400 : vector<4x16xf32> to vector<4x1x16xf32>
    %410 = vector.shape_cast %404 : vector<15x1xf32> to vector<1x15x1xf32>
    %411 = vector.broadcast %409 : vector<4x1x16xf32> to vector<4x15x16xf32>
    %412 = vector.broadcast %410 : vector<1x15x1xf32> to vector<4x15x16xf32>
    %413 = arith.mulf %411, %412 : vector<4x15x16xf32>
    %414 = arith.addf %378, %413 : vector<4x15x16xf32>
    %415 = vector.shape_cast %400 : vector<4x16xf32> to vector<4x16x1xf32>
    %416 = vector.shape_cast %408 : vector<1x15xf32> to vector<1x1x15xf32>
    %417 = vector.broadcast %415 : vector<4x16x1xf32> to vector<4x16x15xf32>
    %418 = vector.broadcast %416 : vector<1x1x15xf32> to vector<4x16x15xf32>
    %419 = arith.mulf %417, %418 : vector<4x16x15xf32>
    %420 = arith.addf %384, %419 : vector<4x16x15xf32>
    %cst_64 = arith.constant 0.000000e+00 : f32
    %421 = vector.broadcast %cst_64 : f32 to vector<4x16xf32>
    %422 = arith.cmpf ogt, %400, %421 : vector<4x16xf32>
    %423 = vector.broadcast %cst_20 : f32 to vector<4x16xf32>
    %424 = arith.select %422, %423, %388 : vector<4x16xi1>, vector<4x16xf32>
    %c11_i32 = arith.constant 11 : i32
    %cst_65 = arith.constant dense<0xFF800000> : vector<4xf32>
    %425 = vector.multi_reduction <maximumf>, %424, %cst_65 [1] : vector<4x16xf32> to vector<4xf32>
    %426 = vector.shape_cast %425 : vector<4xf32> to vector<4x1xf32>
    %427 = vector.broadcast %426 : vector<4x1xf32> to vector<4x16xf32>
    %428 = arith.cmpf oge, %424, %427 : vector<4x16xf32>
    %cst_66 = arith.constant 1.600000e+01 : f32
    %429 = vector.broadcast %cst_66 : f32 to vector<4x16xf32>
    %430 = arith.select %428, %24, %429 : vector<4x16xi1>, vector<4x16xf32>
    %cst_67 = arith.constant dense<0x7F800000> : vector<4xf32>
    %431 = vector.multi_reduction <minimumf>, %430, %cst_67 [1] : vector<4x16xf32> to vector<4xf32>
    %432 = vector.shape_cast %431 : vector<4xf32> to vector<4x1xf32>
    %433 = vector.broadcast %432 : vector<4x1xf32> to vector<4x16xf32>
    %434 = arith.cmpf oeq, %24, %433 : vector<4x16xf32>
    %435 = arith.extui %434 : vector<4x16xi1> to vector<4x16xi32>
    %436 = arith.sitofp %435 : vector<4x16xi32> to vector<4x16xf32>
    %437 = vector.broadcast %c11_i32 : i32 to vector<15x1xi32>
    %438 = arith.cmpi eq, %25, %437 : vector<15x1xi32>
    %439 = arith.extui %438 : vector<15x1xi1> to vector<15x1xi32>
    %440 = arith.sitofp %439 : vector<15x1xi32> to vector<15x1xf32>
    %441 = vector.broadcast %c11_i32 : i32 to vector<1x15xi32>
    %442 = arith.cmpi eq, %26, %441 : vector<1x15xi32>
    %443 = arith.extui %442 : vector<1x15xi1> to vector<1x15xi32>
    %444 = arith.sitofp %443 : vector<1x15xi32> to vector<1x15xf32>
    %445 = vector.shape_cast %436 : vector<4x16xf32> to vector<4x1x16xf32>
    %446 = vector.shape_cast %440 : vector<15x1xf32> to vector<1x15x1xf32>
    %447 = vector.broadcast %445 : vector<4x1x16xf32> to vector<4x15x16xf32>
    %448 = vector.broadcast %446 : vector<1x15x1xf32> to vector<4x15x16xf32>
    %449 = arith.mulf %447, %448 : vector<4x15x16xf32>
    %450 = arith.addf %414, %449 : vector<4x15x16xf32>
    %451 = vector.shape_cast %436 : vector<4x16xf32> to vector<4x16x1xf32>
    %452 = vector.shape_cast %444 : vector<1x15xf32> to vector<1x1x15xf32>
    %453 = vector.broadcast %451 : vector<4x16x1xf32> to vector<4x16x15xf32>
    %454 = vector.broadcast %452 : vector<1x1x15xf32> to vector<4x16x15xf32>
    %455 = arith.mulf %453, %454 : vector<4x16x15xf32>
    %456 = arith.addf %420, %455 : vector<4x16x15xf32>
    %cst_68 = arith.constant 0.000000e+00 : f32
    %457 = vector.broadcast %cst_68 : f32 to vector<4x16xf32>
    %458 = arith.cmpf ogt, %436, %457 : vector<4x16xf32>
    %459 = vector.broadcast %cst_20 : f32 to vector<4x16xf32>
    %460 = arith.select %458, %459, %424 : vector<4x16xi1>, vector<4x16xf32>
    %c12_i32 = arith.constant 12 : i32
    %cst_69 = arith.constant dense<0xFF800000> : vector<4xf32>
    %461 = vector.multi_reduction <maximumf>, %460, %cst_69 [1] : vector<4x16xf32> to vector<4xf32>
    %462 = vector.shape_cast %461 : vector<4xf32> to vector<4x1xf32>
    %463 = vector.broadcast %462 : vector<4x1xf32> to vector<4x16xf32>
    %464 = arith.cmpf oge, %460, %463 : vector<4x16xf32>
    %cst_70 = arith.constant 1.600000e+01 : f32
    %465 = vector.broadcast %cst_70 : f32 to vector<4x16xf32>
    %466 = arith.select %464, %24, %465 : vector<4x16xi1>, vector<4x16xf32>
    %cst_71 = arith.constant dense<0x7F800000> : vector<4xf32>
    %467 = vector.multi_reduction <minimumf>, %466, %cst_71 [1] : vector<4x16xf32> to vector<4xf32>
    %468 = vector.shape_cast %467 : vector<4xf32> to vector<4x1xf32>
    %469 = vector.broadcast %468 : vector<4x1xf32> to vector<4x16xf32>
    %470 = arith.cmpf oeq, %24, %469 : vector<4x16xf32>
    %471 = arith.extui %470 : vector<4x16xi1> to vector<4x16xi32>
    %472 = arith.sitofp %471 : vector<4x16xi32> to vector<4x16xf32>
    %473 = vector.broadcast %c12_i32 : i32 to vector<15x1xi32>
    %474 = arith.cmpi eq, %25, %473 : vector<15x1xi32>
    %475 = arith.extui %474 : vector<15x1xi1> to vector<15x1xi32>
    %476 = arith.sitofp %475 : vector<15x1xi32> to vector<15x1xf32>
    %477 = vector.broadcast %c12_i32 : i32 to vector<1x15xi32>
    %478 = arith.cmpi eq, %26, %477 : vector<1x15xi32>
    %479 = arith.extui %478 : vector<1x15xi1> to vector<1x15xi32>
    %480 = arith.sitofp %479 : vector<1x15xi32> to vector<1x15xf32>
    %481 = vector.shape_cast %472 : vector<4x16xf32> to vector<4x1x16xf32>
    %482 = vector.shape_cast %476 : vector<15x1xf32> to vector<1x15x1xf32>
    %483 = vector.broadcast %481 : vector<4x1x16xf32> to vector<4x15x16xf32>
    %484 = vector.broadcast %482 : vector<1x15x1xf32> to vector<4x15x16xf32>
    %485 = arith.mulf %483, %484 : vector<4x15x16xf32>
    %486 = arith.addf %450, %485 : vector<4x15x16xf32>
    %487 = vector.shape_cast %472 : vector<4x16xf32> to vector<4x16x1xf32>
    %488 = vector.shape_cast %480 : vector<1x15xf32> to vector<1x1x15xf32>
    %489 = vector.broadcast %487 : vector<4x16x1xf32> to vector<4x16x15xf32>
    %490 = vector.broadcast %488 : vector<1x1x15xf32> to vector<4x16x15xf32>
    %491 = arith.mulf %489, %490 : vector<4x16x15xf32>
    %492 = arith.addf %456, %491 : vector<4x16x15xf32>
    %cst_72 = arith.constant 0.000000e+00 : f32
    %493 = vector.broadcast %cst_72 : f32 to vector<4x16xf32>
    %494 = arith.cmpf ogt, %472, %493 : vector<4x16xf32>
    %495 = vector.broadcast %cst_20 : f32 to vector<4x16xf32>
    %496 = arith.select %494, %495, %460 : vector<4x16xi1>, vector<4x16xf32>
    %c13_i32 = arith.constant 13 : i32
    %cst_73 = arith.constant dense<0xFF800000> : vector<4xf32>
    %497 = vector.multi_reduction <maximumf>, %496, %cst_73 [1] : vector<4x16xf32> to vector<4xf32>
    %498 = vector.shape_cast %497 : vector<4xf32> to vector<4x1xf32>
    %499 = vector.broadcast %498 : vector<4x1xf32> to vector<4x16xf32>
    %500 = arith.cmpf oge, %496, %499 : vector<4x16xf32>
    %cst_74 = arith.constant 1.600000e+01 : f32
    %501 = vector.broadcast %cst_74 : f32 to vector<4x16xf32>
    %502 = arith.select %500, %24, %501 : vector<4x16xi1>, vector<4x16xf32>
    %cst_75 = arith.constant dense<0x7F800000> : vector<4xf32>
    %503 = vector.multi_reduction <minimumf>, %502, %cst_75 [1] : vector<4x16xf32> to vector<4xf32>
    %504 = vector.shape_cast %503 : vector<4xf32> to vector<4x1xf32>
    %505 = vector.broadcast %504 : vector<4x1xf32> to vector<4x16xf32>
    %506 = arith.cmpf oeq, %24, %505 : vector<4x16xf32>
    %507 = arith.extui %506 : vector<4x16xi1> to vector<4x16xi32>
    %508 = arith.sitofp %507 : vector<4x16xi32> to vector<4x16xf32>
    %509 = vector.broadcast %c13_i32 : i32 to vector<15x1xi32>
    %510 = arith.cmpi eq, %25, %509 : vector<15x1xi32>
    %511 = arith.extui %510 : vector<15x1xi1> to vector<15x1xi32>
    %512 = arith.sitofp %511 : vector<15x1xi32> to vector<15x1xf32>
    %513 = vector.broadcast %c13_i32 : i32 to vector<1x15xi32>
    %514 = arith.cmpi eq, %26, %513 : vector<1x15xi32>
    %515 = arith.extui %514 : vector<1x15xi1> to vector<1x15xi32>
    %516 = arith.sitofp %515 : vector<1x15xi32> to vector<1x15xf32>
    %517 = vector.shape_cast %508 : vector<4x16xf32> to vector<4x1x16xf32>
    %518 = vector.shape_cast %512 : vector<15x1xf32> to vector<1x15x1xf32>
    %519 = vector.broadcast %517 : vector<4x1x16xf32> to vector<4x15x16xf32>
    %520 = vector.broadcast %518 : vector<1x15x1xf32> to vector<4x15x16xf32>
    %521 = arith.mulf %519, %520 : vector<4x15x16xf32>
    %522 = arith.addf %486, %521 : vector<4x15x16xf32>
    %523 = vector.shape_cast %508 : vector<4x16xf32> to vector<4x16x1xf32>
    %524 = vector.shape_cast %516 : vector<1x15xf32> to vector<1x1x15xf32>
    %525 = vector.broadcast %523 : vector<4x16x1xf32> to vector<4x16x15xf32>
    %526 = vector.broadcast %524 : vector<1x1x15xf32> to vector<4x16x15xf32>
    %527 = arith.mulf %525, %526 : vector<4x16x15xf32>
    %528 = arith.addf %492, %527 : vector<4x16x15xf32>
    %cst_76 = arith.constant 0.000000e+00 : f32
    %529 = vector.broadcast %cst_76 : f32 to vector<4x16xf32>
    %530 = arith.cmpf ogt, %508, %529 : vector<4x16xf32>
    %531 = vector.broadcast %cst_20 : f32 to vector<4x16xf32>
    %532 = arith.select %530, %531, %496 : vector<4x16xi1>, vector<4x16xf32>
    %c14_i32 = arith.constant 14 : i32
    %cst_77 = arith.constant dense<0xFF800000> : vector<4xf32>
    %533 = vector.multi_reduction <maximumf>, %532, %cst_77 [1] : vector<4x16xf32> to vector<4xf32>
    %534 = vector.shape_cast %533 : vector<4xf32> to vector<4x1xf32>
    %535 = vector.broadcast %534 : vector<4x1xf32> to vector<4x16xf32>
    %536 = arith.cmpf oge, %532, %535 : vector<4x16xf32>
    %cst_78 = arith.constant 1.600000e+01 : f32
    %537 = vector.broadcast %cst_78 : f32 to vector<4x16xf32>
    %538 = arith.select %536, %24, %537 : vector<4x16xi1>, vector<4x16xf32>
    %cst_79 = arith.constant dense<0x7F800000> : vector<4xf32>
    %539 = vector.multi_reduction <minimumf>, %538, %cst_79 [1] : vector<4x16xf32> to vector<4xf32>
    %540 = vector.shape_cast %539 : vector<4xf32> to vector<4x1xf32>
    %541 = vector.broadcast %540 : vector<4x1xf32> to vector<4x16xf32>
    %542 = arith.cmpf oeq, %24, %541 : vector<4x16xf32>
    %543 = arith.extui %542 : vector<4x16xi1> to vector<4x16xi32>
    %544 = arith.sitofp %543 : vector<4x16xi32> to vector<4x16xf32>
    %545 = vector.broadcast %c14_i32 : i32 to vector<15x1xi32>
    %546 = arith.cmpi eq, %25, %545 : vector<15x1xi32>
    %547 = arith.extui %546 : vector<15x1xi1> to vector<15x1xi32>
    %548 = arith.sitofp %547 : vector<15x1xi32> to vector<15x1xf32>
    %549 = vector.broadcast %c14_i32 : i32 to vector<1x15xi32>
    %550 = arith.cmpi eq, %26, %549 : vector<1x15xi32>
    %551 = arith.extui %550 : vector<1x15xi1> to vector<1x15xi32>
    %552 = arith.sitofp %551 : vector<1x15xi32> to vector<1x15xf32>
    %553 = vector.shape_cast %544 : vector<4x16xf32> to vector<4x1x16xf32>
    %554 = vector.shape_cast %548 : vector<15x1xf32> to vector<1x15x1xf32>
    %555 = vector.broadcast %553 : vector<4x1x16xf32> to vector<4x15x16xf32>
    %556 = vector.broadcast %554 : vector<1x15x1xf32> to vector<4x15x16xf32>
    %557 = arith.mulf %555, %556 : vector<4x15x16xf32>
    %558 = arith.addf %522, %557 : vector<4x15x16xf32>
    %559 = vector.shape_cast %544 : vector<4x16xf32> to vector<4x16x1xf32>
    %560 = vector.shape_cast %552 : vector<1x15xf32> to vector<1x1x15xf32>
    %561 = vector.broadcast %559 : vector<4x16x1xf32> to vector<4x16x15xf32>
    %562 = vector.broadcast %560 : vector<1x1x15xf32> to vector<4x16x15xf32>
    %563 = arith.mulf %561, %562 : vector<4x16x15xf32>
    %564 = arith.addf %528, %563 : vector<4x16x15xf32>
    %cst_80 = arith.constant 0.000000e+00 : f32
    %565 = vector.broadcast %cst_80 : f32 to vector<4x16xf32>
    %566 = arith.cmpf ogt, %544, %565 : vector<4x16xf32>
    %567 = vector.broadcast %cst_20 : f32 to vector<4x16xf32>
    %568 = arith.select %566, %567, %532 : vector<4x16xi1>, vector<4x16xf32>
    %c15_i32 = arith.constant 15 : i32
    %569 = vector.shape_cast %24 : vector<4x16xf32> to vector<4x1x16xf32>
    %570 = vector.broadcast %569 : vector<4x1x16xf32> to vector<4x15x16xf32>
    %571 = arith.mulf %558, %570 : vector<4x15x16xf32>
    %cst_81 = arith.constant dense<0.000000e+00> : vector<4x15xf32>
    %572 = vector.multi_reduction <add>, %571, %cst_81 [2] : vector<4x15x16xf32> to vector<4x15xf32>
    "tpu.trace_start"() <{level = 10 : i32, message = "hul,hlk->huk"}> : () -> ()
    %cst_82 = arith.constant dense<0.000000e+00> : vector<4x15x16xf32>
    %573 = tpu.matmul %558, %7, %cst_82 {dimension_numbers = #tpu.dot_dimension_numbers<[2], [1], [1], [2], [0, 0, 0, 1, 1, 2], [0], [0]>} : vector<4x15x16xf32>, vector<4x16x16xf32>, vector<4x15x16xf32> -> vector<4x15x16xf32>
    "tpu.trace_stop"() : () -> ()
    %cst_83 = arith.constant 0.176776692 : f32
    %574 = vector.broadcast %cst_83 : f32 to vector<4x15x16xf32>
    %575 = arith.mulf %573, %574 : vector<4x15x16xf32>
    %576 = tpu.iota {dimensions = array<i32: 2>} : vector<1x1x16xi32>
    %577 = arith.sitofp %576 : vector<1x1x16xi32> to vector<1x1x16xf32>
    %578 = vector.shape_cast %572 : vector<4x15xf32> to vector<4x15x1xf32>
    %579 = vector.broadcast %577 : vector<1x1x16xf32> to vector<4x15x16xf32>
    %580 = vector.broadcast %578 : vector<4x15x1xf32> to vector<4x15x16xf32>
    %581 = arith.cmpf ogt, %579, %580 : vector<4x15x16xf32>
    %cst_84 = arith.constant -1.000000e+30 : f32
    %582 = vector.broadcast %cst_84 : f32 to vector<4x15x16xf32>
    %583 = arith.select %581, %582, %575 : vector<4x15x16xi1>, vector<4x15x16xf32>
    %cst_85 = arith.constant dense<0xFF800000> : vector<4x15xf32>
    %584 = vector.multi_reduction <maximumf>, %583, %cst_85 [2] : vector<4x15x16xf32> to vector<4x15xf32>
    %585 = vector.shape_cast %584 : vector<4x15xf32> to vector<4x15x1xf32>
    %586 = vector.broadcast %585 : vector<4x15x1xf32> to vector<4x15x16xf32>
    %587 = arith.subf %583, %586 : vector<4x15x16xf32>
    %588 = math.exp %587 : vector<4x15x16xf32>
    %cst_86 = arith.constant dense<0.000000e+00> : vector<4x15xf32>
    %589 = vector.multi_reduction <add>, %588, %cst_86 [2] : vector<4x15x16xf32> to vector<4x15xf32>
    %590 = vector.shape_cast %589 : vector<4x15xf32> to vector<4x15x1xf32>
    %591 = vector.broadcast %590 : vector<4x15x1xf32> to vector<4x15x16xf32>
    %592 = arith.divf %588, %591 : vector<4x15x16xf32>
    "tpu.trace_start"() <{level = 10 : i32, message = "huk,hkd->hud"}> : () -> ()
    %cst_87 = arith.constant dense<0.000000e+00> : vector<4x15x32xf32>
    %593 = tpu.matmul %592, %5, %cst_87 {dimension_numbers = #tpu.dot_dimension_numbers<[2], [1], [1], [2], [0, 0, 0, 1, 1, 2], [0], [0]>} : vector<4x15x16xf32>, vector<4x16x32xf32>, vector<4x15x32xf32> -> vector<4x15x32xf32>
    "tpu.trace_stop"() : () -> ()
    %594 = tpu.iota {dimensions = array<i32: 0>} : vector<16x16xi32>
    %595 = tpu.iota {dimensions = array<i32: 1>} : vector<16x16xi32>
    %596 = arith.cmpi sle, %595, %594 : vector<16x16xi32>
    %597 = arith.extui %596 : vector<16x16xi1> to vector<16x16xi32>
    %598 = arith.sitofp %597 : vector<16x16xi32> to vector<16x16xf32>
    %599 = vector.shape_cast %598 : vector<16x16xf32> to vector<1x16x16xf32>
    %600 = vector.shape_cast %599 : vector<1x16x16xf32> to vector<1x16x16xf32>
    %601 = vector.broadcast %600 : vector<1x16x16xf32> to vector<4x16x16xf32>
    "tpu.trace_start"() <{level = 10 : i32, message = "hql,hld->hqd"}> : () -> ()
    %cst_88 = arith.constant dense<0.000000e+00> : vector<4x16x32xf32>
    %602 = tpu.matmul %601, %5, %cst_88 {dimension_numbers = #tpu.dot_dimension_numbers<[2], [1], [1], [2], [0, 0, 0, 1, 1, 2], [0], [0]>} : vector<4x16x16xf32>, vector<4x16x32xf32>, vector<4x16x32xf32> -> vector<4x16x32xf32>
    "tpu.trace_stop"() : () -> ()
    %cst_89 = arith.constant dense<0.000000e+00> : vector<4x16xf32>
    %603 = vector.multi_reduction <add>, %558, %cst_89 [1] : vector<4x15x16xf32> to vector<4x16xf32>
    "tpu.trace_start"() <{level = 10 : i32, message = "hlu,hud->hld"}> : () -> ()
    %cst_90 = arith.constant dense<0.000000e+00> : vector<4x16x32xf32>
    %604 = tpu.matmul %564, %593, %cst_90 {dimension_numbers = #tpu.dot_dimension_numbers<[2], [1], [1], [2], [0, 0, 0, 1, 1, 2], [0], [0]>} : vector<4x16x15xf32>, vector<4x15x32xf32>, vector<4x16x32xf32> -> vector<4x16x32xf32>
    "tpu.trace_stop"() : () -> ()
    %cst_91 = arith.constant 1.000000e+00 : f32
    %605 = vector.broadcast %cst_91 : f32 to vector<4x16xf32>
    %606 = arith.subf %605, %603 : vector<4x16xf32>
    %607 = vector.shape_cast %606 : vector<4x16xf32> to vector<4x16x1xf32>
    %608 = vector.broadcast %607 : vector<4x16x1xf32> to vector<4x16x32xf32>
    %609 = arith.mulf %602, %608 : vector<4x16x32xf32>
    %610 = arith.addf %609, %604 : vector<4x16x32xf32>
    %c0_92 = arith.constant 0 : index
    %c0_93 = arith.constant 0 : index
    %c0_94 = arith.constant 0 : index
    %c0_95 = arith.constant 0 : index
    %611 = vector.load %arg5[%c0_92, %c0_93, %c0_94, %c0_95] : memref<1x4x16x32xf32, #tpu.memory_space<vmem>>, vector<1x4x16x32xf32>
    %612 = vector.shape_cast %611 : vector<1x4x16x32xf32> to vector<4x16x32xf32>
    %613 = vector.shape_cast %610 : vector<4x16x32xf32> to vector<1x4x16x32xf32>
    tpu.vector_store %arg5[%c0_92, %c0_93, %c0_94, %c0_95], %613 {strides = array<i32>} : memref<1x4x16x32xf32, #tpu.memory_space<vmem>>, vector<1x4x16x32xf32>,
    return
  }
  func.func @transform_0(%arg0: i32) -> (i32, i32, i32, i32) {
    %c0_i32 = arith.constant 0 : i32
    %c0_i32_0 = arith.constant 0 : i32
    %c0_i32_1 = arith.constant 0 : i32
    %c0_i32_2 = arith.constant 0 : i32
    return %arg0, %c0_i32, %c0_i32_0, %c0_i32_1 : i32, i32, i32, i32
  }
  func.func @transform_1(%arg0: i32) -> (i32, i32, i32, i32) {
    %c0_i32 = arith.constant 0 : i32
    %c0_i32_0 = arith.constant 0 : i32
    %c0_i32_1 = arith.constant 0 : i32
    %c0_i32_2 = arith.constant 0 : i32
    return %arg0, %c0_i32, %c0_i32_0, %c0_i32_1 : i32, i32, i32, i32
  }
  func.func @transform_2(%arg0: i32) -> (i32, i32, i32, i32) {
    %c0_i32 = arith.constant 0 : i32
    %c0_i32_0 = arith.constant 0 : i32
    %c0_i32_1 = arith.constant 0 : i32
    %c0_i32_2 = arith.constant 0 : i32
    return %arg0, %c0_i32, %c0_i32_0, %c0_i32_1 : i32, i32, i32, i32
  }
  func.func @transform_3(%arg0: i32) -> (i32, i32) {
    %c0_i32 = arith.constant 0 : i32
    %c0_i32_0 = arith.constant 0 : i32
    %c0_i32_1 = arith.constant 0 : i32
    return %c0_i32, %c0_i32_0 : i32, i32
  }
  func.func @transform_4(%arg0: i32) -> (i32, i32, i32, i32) {
    %c0_i32 = arith.constant 0 : i32
    %c0_i32_0 = arith.constant 0 : i32
    %c0_i32_1 = arith.constant 0 : i32
    %c0_i32_2 = arith.constant 0 : i32
    return %arg0, %c0_i32, %c0_i32_0, %c0_i32_1 : i32, i32, i32, i32
  }
}

</mosaic_0001>

<llo_original>
// kernel: tpu_custom_call.1
$region0: #{tpu_custom_call.1}
  #allocation0 [shape = 'u32[]', space=smem, size = 0x4, offset = 0x4, fixed_abs, tag = 'smem constant byte address 0x4 - core index']
  #allocation1 [shape = 'u32[144,128]{1,0:T(1,128)}', space=vmem, size = 0x12000, scoped, tag = 'internal scratch']
  %s0 = inlined_call_operand.hbm [shape: f32[2,4,16,32], index: 0, kind: input, shape index: {}]
  %s1 = inlined_call_operand.hbm [shape: f32[2,4,16,32], index: 1, kind: input, shape index: {}]
  %s2 = inlined_call_operand.hbm [shape: f32[2,4,16,32], index: 2, kind: input, shape index: {}]
  %s3 = inlined_call_operand.hbm [shape: f32[16,16], index: 3, kind: input, shape index: {}]
  %s4 = inlined_call_operand.hbm [shape: f32[2,4,16,32], index: 4, kind: output, shape index: {}]
  %s5 = sld [smem:[#allocation0]]
  $region65: #{tpu_custom_call.1} parent=0
    _
  %s7 = ssub.s32 1, %s5
  %s8 = scalar_select 0, %s7, %s5
  $region1: #{tpu_custom_call.1} parent=0
    #allocation2 [shape = 'u8[65536]{0}', space=vmem, size = 0x10000, scoped, tag = 'input window, operand 0']
    #allocation3 [shape = 's32[2]{0}', space=sflag, size = 0x8, scoped, tag = 'scoped memory for tpu_custom_call.1']
    #allocation4 [shape = 's32[2]{0}', space=sflag, size = 0x8, scoped, tag = 'scoped memory for tpu_custom_call.1']
    #allocation5 [shape = 'u8[65536]{0}', space=vmem, size = 0x10000, scoped, tag = 'input window, operand 1']
    #allocation6 [shape = 's32[2]{0}', space=sflag, size = 0x8, scoped, tag = 'scoped memory for tpu_custom_call.1']
    #allocation7 [shape = 'u8[65536]{0}', space=vmem, size = 0x10000, scoped, tag = 'input window, operand 2']
    #allocation8 [shape = 'u8[8192]{0}', space=vmem, size = 0x2000, scoped, tag = 'input window, operand 3, single buffered']
    #allocation9 [shape = 's32[1]{0}', space=sflag, size = 0x4, scoped, tag = 'scoped memory for tpu_custom_call.1']
    #allocation10 [shape = 'u8[65536]{0}', space=vmem, size = 0x10000, scoped, tag = 'output window, operand 0']
    %9 = vsyncpa [#allocation3], 0
    %s10 = scalar_lea.sflag [#allocation3], 1
    %11 = vsyncpa %s10, 0
    %12 = vsyncpa [#allocation6], 0
    %s13 = scalar_lea.sflag [#allocation6], 1
    %14 = vsyncpa %s13, 0
    %15 = vsyncpa [#allocation9], 0
    %16 = vsyncpa [#allocation4], 0
    %s17 = scalar_lea.sflag [#allocation4], 1
    %18 = vsyncpa %s17, 0
    loop: start=0, step=1, limit=4
    $region2: #{tpu_custom_call.1} parent=1 // loop_pre_header
      _
    $region3: #{tpu_custom_call.1} parent=1 // loop_header
      %s20 = sphi 0, %s24
      %p21 = scmp.ge.s32.totalorder %s20, 4
      %s30 = sphi 0, %s32
      %s33 = sphi 0, %s30
      %s34 = sphi 0, %s33
      %s50 = sphi 0, %s34
      %s56 = sphi 0, %s58
      %s59 = sphi 0, %s56
      %s60 = sphi 0, %s59
      %s76 = sphi 0, %s60
      %s82 = sphi 0, %s84
      %s85 = sphi 0, %s82
      %s86 = sphi 0, %s85
      %s102 = sphi 0, %s86
      %s106 = sphi 0, %s106
      %s108 = sphi 0, %s106
      %s109 = sphi 0, %s108
      %s123 = sphi 0, %s109
      %s129 = sphi 0, %s131
      %s132 = sphi 0, %s129
      %s133 = sphi 0, %s132
      %s149 = sphi 0, %s133
    $region4: #{tpu_custom_call.1} parent=1 // loop_header_branch
      %23 = sbr.rel (%p21) target = $region8
    $region5: #{tpu_custom_call.1} parent=1 // loop_body
      %s25 = ssub.s32 %s20, 1
      %s26 = ssub.s32 %s20, 2
      %s27 = sadd.s32 %s20, 1
      %s28 = ssub.s32 %s20, %s27
      %p29 = scmp.eq.s32.totalorder %s28, 0
      %s31 = sadd.s32 %s30, 1
      %s32 = scalar_select %p29, %s30, %s31
      %p35 = pneg %p29
      %p36 = scmp.eq.s32.totalorder %s20, 1
      %p37 = por %p35, %p36
      %p38 = scmp.ne.s32.totalorder %s30, %s33
      %p39 = scmp.eq.s32.totalorder %s20, 0
      %p40 = por %p38, %p39
      %p41 = scmp.ne.s32.totalorder %s30, %s33
      %p42 = scmp.eq.s32.totalorder %s25, 1
      %p43 = por %p41, %p42
      %p44 = scmp.ne.s32.totalorder %s33, %s34
      %p45 = scmp.eq.s32.totalorder %s25, 0
      %p46 = por %p44, %p45
      %p47 = scmp.ne.s32.totalorder %s33, %s34
      %p48 = scmp.eq.s32.totalorder %s26, 1
      %p49 = por %p47, %p48
      %p51 = scmp.ne.s32.totalorder %s34, %s50
      %p52 = scmp.eq.s32.totalorder %s26, 0
      %p53 = por %p51, %p52
      %s54 = ssub.s32 %s20, %s27
      %p55 = scmp.eq.s32.totalorder %s54, 0
      %s57 = sadd.s32 %s56, 1
      %s58 = scalar_select %p55, %s56, %s57
      %p61 = pneg %p55
      %p62 = scmp.eq.s32.totalorder %s20, 1
      %p63 = por %p61, %p62
      %p64 = scmp.ne.s32.totalorder %s56, %s59
      %p65 = scmp.eq.s32.totalorder %s20, 0
      %p66 = por %p64, %p65
      %p67 = scmp.ne.s32.totalorder %s56, %s59
      %p68 = scmp.eq.s32.totalorder %s25, 1
      %p69 = por %p67, %p68
      %p70 = scmp.ne.s32.totalorder %s59, %s60
      %p71 = scmp.eq.s32.totalorder %s25, 0
      %p72 = por %p70, %p71
      %p73 = scmp.ne.s32.totalorder %s59, %s60
      %p74 = scmp.eq.s32.totalorder %s26, 1
      %p75 = por %p73, %p74
      %p77 = scmp.ne.s32.totalorder %s60, %s76
      %p78 = scmp.eq.s32.totalorder %s26, 0
      %p79 = por %p77, %p78
      %s80 = ssub.s32 %s20, %s27
      %p81 = scmp.eq.s32.totalorder %s80, 0
      %s83 = sadd.s32 %s82, 1
      %s84 = scalar_select %p81, %s82, %s83
      %p87 = pneg %p81
      %p88 = scmp.eq.s32.totalorder %s20, 1
      %p89 = por %p87, %p88
      %p90 = scmp.ne.s32.totalorder %s82, %s85
      %p91 = scmp.eq.s32.totalorder %s20, 0
      %p92 = por %p90, %p91
      %p93 = scmp.ne.s32.totalorder %s82, %s85
      %p94 = scmp.eq.s32.totalorder %s25, 1
      %p95 = por %p93, %p94
      %p96 = scmp.ne.s32.totalorder %s85, %s86
      %p97 = scmp.eq.s32.totalorder %s25, 0
      %p98 = por %p96, %p97
      %p99 = scmp.ne.s32.totalorder %s85, %s86
      %p100 = scmp.eq.s32.totalorder %s26, 1
      %p101 = por %p99, %p100
      %p103 = scmp.ne.s32.totalorder %s86, %s102
      %p104 = scmp.eq.s32.totalorder %s26, 0
      %p105 = por %p103, %p104
      %s107 = sadd.s32 %s106, 1
      %p110 = scmp.eq.s32.totalorder %s20, 1
      %p111 = scmp.ne.s32.totalorder %s106, %s108
      %p112 = scmp.eq.s32.totalorder %s20, 0
      %p113 = por %p111, %p112
      %p114 = scmp.ne.s32.totalorder %s106, %s108
      %p115 = scmp.eq.s32.totalorder %s25, 1
      %p116 = por %p114, %p115
      %p117 = scmp.ne.s32.totalorder %s108, %s109
      %p118 = scmp.eq.s32.totalorder %s25, 0
      %p119 = por %p117, %p118
      %p120 = scmp.ne.s32.totalorder %s108, %s109
      %p121 = scmp.eq.s32.totalorder %s26, 1
      %p122 = por %p120, %p121
      %p124 = scmp.ne.s32.totalorder %s109, %s123
      %p125 = scmp.eq.s32.totalorder %s26, 0
      %p126 = por %p124, %p125
      %s127 = ssub.s32 %s20, %s27
      %p128 = scmp.eq.s32.totalorder %s127, 0
      %s130 = sadd.s32 %s129, 1
      %s131 = scalar_select %p128, %s129, %s130
      %p134 = pneg %p128
      %p135 = scmp.eq.s32.totalorder %s20, 1
      %p136 = por %p134, %p135
      %p137 = scmp.ne.s32.totalorder %s129, %s132
      %p138 = scmp.eq.s32.totalorder %s20, 0
      %p139 = por %p137, %p138
      %p140 = scmp.ne.s32.totalorder %s129, %s132
      %p141 = scmp.eq.s32.totalorder %s25, 1
      %p142 = por %p140, %p141
      %p143 = scmp.ne.s32.totalorder %s132, %s133
      %p144 = scmp.eq.s32.totalorder %s25, 0
      %p145 = por %p143, %p144
      %p146 = scmp.ne.s32.totalorder %s132, %s133
      %p147 = scmp.eq.s32.totalorder %s26, 1
      %p148 = por %p146, %p147
      %p150 = scmp.ne.s32.totalorder %s133, %s149
      %p151 = scmp.eq.s32.totalorder %s26, 0
      %p152 = por %p150, %p151
      %p153 = scmp.le.s32.totalorder 1, %s20
      %p154 = scmp.lt.s32.totalorder %s20, 3
      %p155 = pnand %p153, %p154
      %p156 = pneg %p155
      // Predicated region
      $region9: #{tpu_custom_call.1} parent=5 // pred_check
        _
      $region10: #{tpu_custom_call.1} parent=5 // pred_check_branch
        %158 = sbr.rel (%p155) target = $region12
      $region11: #{tpu_custom_call.1} parent=5 // pred_region
        %s159 = ssub.s32 %s20, 1
        // Predicated region
        $region13: #{tpu_custom_call.1} parent=11 // pred_check
          %p160 = pneg %p119
        $region14: #{tpu_custom_call.1} parent=11 // pred_check_branch
          %162 = sbr.rel (%p160) target = $region16
        $region15: #{tpu_custom_call.1} parent=11 // pred_region
          %s164 = ssub.s32 256, 256
          %165 = vsyncadd [#allocation9], %s164
          %s166 = sshll.u32 [#allocation8], 4
          %s167 = int_to_ptr.vmem [resolvable:$true] %s166
          %172 = dma.hbm_to_vmem [thread:$0]  %s3, 256, %s167, [#allocation9], 128, 128, 8
        $region16: #{tpu_custom_call.1} parent=11 // pred_fallthru
          _
      $region12: #{tpu_custom_call.1} parent=5 // pred_fallthru
        _
      %p173 = scmp.lt.s32.totalorder %s20, 2
      // Predicated region
      $region17: #{tpu_custom_call.1} parent=5 // pred_check
        %p174 = pneg %p173
      $region18: #{tpu_custom_call.1} parent=5 // pred_check_branch
        %176 = sbr.rel (%p174) target = $region20
      $region19: #{tpu_custom_call.1} parent=5 // pred_region
        // Predicated region
        $region21: #{tpu_custom_call.1} parent=19 // pred_check
          %p177 = pneg %p40
        $region22: #{tpu_custom_call.1} parent=19 // pred_check_branch
          %179 = sbr.rel (%p177) target = $region24
        $region23: #{tpu_custom_call.1} parent=19 // pred_region
          %s180 = sand.u32 %s30, 1
          %s181 = scalar_lea.sflag [#allocation3], %s180
          %s182 = sand.u32 %s30, 1
          %s183 = smul.addr %s182, 64
          %s184 = scalar_lea.vmem [#allocation2], %s183
          %s186 = ssub.s32 1024, 1024
          %187 = vsyncadd %s181, %s186
          %s188 = smul.addr %s20, 8
          %s189 = smul.addr %s188, 128
          %s190 = scalar_lea.hbm %s0, %s189
          %s191 = sshll.u32 %s184, 4
          %s192 = int_to_ptr.vmem [resolvable:$true] %s191
          %197 = dma.hbm_to_vmem [thread:$0]  %s190, 1024, %s192, %s181, 128, 128, 8
        $region24: #{tpu_custom_call.1} parent=19 // pred_fallthru
          _
        // Predicated region
        $region25: #{tpu_custom_call.1} parent=19 // pred_check
          %p198 = pneg %p66
        $region26: #{tpu_custom_call.1} parent=19 // pred_check_branch
          %200 = sbr.rel (%p198) target = $region28
        $region27: #{tpu_custom_call.1} parent=19 // pred_region
          %s201 = sand.u32 %s20, 1
          %s202 = scalar_lea.sflag [#allocation6], %s201
          %s203 = sand.u32 %s56, 1
          %s204 = smul.addr %s203, 64
          %s205 = scalar_lea.vmem [#allocation5], %s204
          %s207 = ssub.s32 1024, 1024
          %208 = vsyncadd %s202, %s207
          %s209 = smul.addr %s20, 8
          %s210 = smul.addr %s209, 128
          %s211 = scalar_lea.hbm %s1, %s210
          %s212 = sshll.u32 %s205, 4
          %s213 = int_to_ptr.vmem [resolvable:$true] %s212
          %218 = dma.hbm_to_vmem [thread:$0]  %s211, 1024, %s213, %s202, 128, 128, 8
        $region28: #{tpu_custom_call.1} parent=19 // pred_fallthru
          _
        // Predicated region
        $region29: #{tpu_custom_call.1} parent=19 // pred_check
          %p219 = pneg %p92
        $region30: #{tpu_custom_call.1} parent=19 // pred_check_branch
          %221 = sbr.rel (%p219) target = $region32
        $region31: #{tpu_custom_call.1} parent=19 // pred_region
          %s222 = sand.u32 %s20, 1
          %s223 = scalar_lea.sflag [#allocation6], %s222
          %s224 = sand.u32 %s82, 1
          %s225 = smul.addr %s224, 64
          %s226 = scalar_lea.vmem [#allocation7], %s225
          %s228 = ssub.s32 1024, 1024
          %229 = vsyncadd %s223, %s228
          %s230 = smul.addr %s20, 8
          %s231 = smul.addr %s230, 128
          %s232 = scalar_lea.hbm %s2, %s231
          %s233 = sshll.u32 %s226, 4
          %s234 = int_to_ptr.vmem [resolvable:$true] %s233
          %239 = dma.hbm_to_vmem [thread:$0]  %s232, 1024, %s234, %s223, 128, 128, 8
        $region32: #{tpu_custom_call.1} parent=19 // pred_fallthru
          _
      $region20: #{tpu_custom_call.1} parent=5 // pred_fallthru
        _
      %p240 = scmp.le.s32.totalorder 1, %s20
      %p241 = scmp.lt.s32.totalorder %s20, 3
      %p242 = pnand %p240, %p241
      %p243 = pneg %p242
      // Predicated region
      $region33: #{tpu_custom_call.1} parent=5 // pred_check
        _
      $region34: #{tpu_custom_call.1} parent=5 // pred_check_branch
        %245 = sbr.rel (%p242) target = $region36
      $region35: #{tpu_custom_call.1} parent=5 // pred_region
        %s246 = ssub.s32 %s20, 1
        %s247 = sand.u32 %s33, 1
        %s248 = scalar_lea.sflag [#allocation3], %s247
        %s249 = sand.u32 %s33, 1
        %s250 = smul.addr %s249, 64
        %s251 = scalar_lea.vmem [#allocation2], %s250
        // Predicated region
        $region37: #{tpu_custom_call.1} parent=35 // pred_check
          %p252 = pneg %p46
        $region38: #{tpu_custom_call.1} parent=35 // pred_check_branch
          %254 = sbr.rel (%p252) target = $region40
        $region39: #{tpu_custom_call.1} parent=35 // pred_region
          %255 = dma.done %s248, 1024
        $region40: #{tpu_custom_call.1} parent=35 // pred_fallthru
          _
        %s256 = sand.u32 %s25, 1
        %s257 = scalar_lea.sflag [#allocation6], %s256
        %s258 = sand.u32 %s59, 1
        %s259 = smul.addr %s258, 64
        %s260 = scalar_lea.vmem [#allocation5], %s259
        // Predicated region
        $region41: #{tpu_custom_call.1} parent=35 // pred_check
          %p261 = pneg %p72
        $region42: #{tpu_custom_call.1} parent=35 // pred_check_branch
          %263 = sbr.rel (%p261) target = $region44
        $region43: #{tpu_custom_call.1} parent=35 // pred_region
          %264 = dma.done %s257, 1024
        $region44: #{tpu_custom_call.1} parent=35 // pred_fallthru
          _
        %s265 = sand.u32 %s25, 1
        %s266 = scalar_lea.sflag [#allocation6], %s265
        %s267 = sand.u32 %s85, 1
        %s268 = smul.addr %s267, 64
        %s269 = scalar_lea.vmem [#allocation7], %s268
        // Predicated region
        $region45: #{tpu_custom_call.1} parent=35 // pred_check
          %p270 = pneg %p98
        $region46: #{tpu_custom_call.1} parent=35 // pred_check_branch
          %272 = sbr.rel (%p270) target = $region48
        $region47: #{tpu_custom_call.1} parent=35 // pred_region
          %273 = dma.done %s266, 1024
        $region48: #{tpu_custom_call.1} parent=35 // pred_fallthru
          _
        // Predicated region
        $region49: #{tpu_custom_call.1} parent=35 // pred_check
          %p274 = pneg %p119
        $region50: #{tpu_custom_call.1} parent=35 // pred_check_branch
          %276 = sbr.rel (%p274) target = $region52
        $region51: #{tpu_custom_call.1} parent=35 // pred_region
          %277 = dma.done [#allocation9], 256
        $region52: #{tpu_custom_call.1} parent=35 // pred_fallthru
          _
        %s278 = sand.u32 %s33, 1
        %s279 = scalar_lea.sflag [#allocation3], %s278
        %s280 = sand.u32 %s33, 1
        %s281 = smul.addr %s280, 64
        %s282 = scalar_lea.vmem [#allocation2], %s281
        %p283 = pneg %p46
        %p284 = pneg %p43
        %s285 = sand.u32 %s25, 1
        %s286 = scalar_lea.sflag [#allocation6], %s285
        %s287 = sand.u32 %s59, 1
        %s288 = smul.addr %s287, 64
        %s289 = scalar_lea.vmem [#allocation5], %s288
        %p290 = pneg %p72
        %p291 = pneg %p69
        %s292 = sand.u32 %s25, 1
        %s293 = scalar_lea.sflag [#allocation6], %s292
        %s294 = sand.u32 %s85, 1
        %s295 = smul.addr %s294, 64
        %s296 = scalar_lea.vmem [#allocation7], %s295
        %p297 = pneg %p98
        %p298 = pneg %p95
        %p299 = pneg %p119
        %p300 = pneg %p116
        %p301 = pneg %p145
        %p302 = pneg %p142
        %s303 = sand.u32 %s132, 1
        %s304 = scalar_lea.sflag [#allocation4], %s303
        %s305 = sand.u32 %s132, 1
        %s306 = smul.addr %s305, 64
        %s307 = scalar_lea.vmem [#allocation10], %s306
        %v308 = vld [vmem:[%s251] sm:$0xff]
        %v309 = vld [vmem:[%s251 + $0x8] sm:$0xff]
        %v310 = vld [vmem:[%s251 + $0x10] sm:$0xff]
        %v311 = vld [vmem:[%s251 + $0x18] sm:$0xff]
        %v312 = vld [vmem:[%s251 + $0x20] sm:$0xff]
        %v313 = vld [vmem:[%s251 + $0x28] sm:$0xff]
        %v314 = vld [vmem:[%s251 + $0x30] sm:$0xff]
        %v315 = vld [vmem:[%s251 + $0x38] sm:$0xff]
        %v316 = vld [vmem:[%s260] sm:$0xff]
        %v317 = vld [vmem:[%s260 + $0x8] sm:$0xff]
        %v318 = vld [vmem:[%s260 + $0x10] sm:$0xff]
        %v319 = vld [vmem:[%s260 + $0x18] sm:$0xff]
        %v320 = vld [vmem:[%s260 + $0x20] sm:$0xff]
        %v321 = vld [vmem:[%s260 + $0x28] sm:$0xff]
        %v322 = vld [vmem:[%s260 + $0x30] sm:$0xff]
        %v323 = vld [vmem:[%s260 + $0x38] sm:$0xff]
        %v324 = vld [vmem:[%s269] sm:$0xff]
        %v325 = vld [vmem:[%s269 + $0x8] sm:$0xff]
        %v326 = vld [vmem:[%s269 + $0x10] sm:$0xff]
        %v327 = vld [vmem:[%s269 + $0x18] sm:$0xff]
        %v328 = vld [vmem:[%s269 + $0x20] sm:$0xff]
        %v329 = vld [vmem:[%s269 + $0x28] sm:$0xff]
        %v330 = vld [vmem:[%s269 + $0x30] sm:$0xff]
        %v331 = vld [vmem:[%s269 + $0x38] sm:$0xff]
        %v332 = vld [vmem:[#allocation8] sm:$0xff]
        %v333 = vld [vmem:[#allocation8 + $0x8] sm:$0xff]
        %vm334 = vcmask 261120
        %v336 = vsel %vm334, %v308, 0
        %v339 = vsel %vm334, %v309, 0
        %v342 = vsel %vm334, %v316, 0
        %v345 = vsel %vm334, %v317, 0
        %347 = vmatprep.subr.mxu0 0.0
        %348 = vmatpush1.xpose.msra.mxu0 %v342
        %349 = vmatprep.subr.mxu0 0.0
        %350 = vmatpush1.xpose.msra.mxu0 %v345
        %351 = vmatprep.subr.mxu0 0.0
        %352 = vmatpush1.xpose.msra.mxu0 0.0
        %353 = vmatprep.subr.mxu0 0.0
        %354 = vmatpush1.xpose.msra.mxu0 0.0
        %355 = vmatprep.subr.mxu0 0.0
        %356 = vmatpush1.xpose.msra.mxu0 0.0
        %357 = vmatprep.subr.mxu0 0.0
        %358 = vmatpush1.xpose.msra.mxu0 0.0
        %359 = vmatprep.subr.mxu0 0.0
        %360 = vmatpush1.xpose.msra.mxu0 0.0
        %361 = vmatprep.subr.mxu0 0.0
        %362 = vmatpush1.xpose.msra.mxu0 0.0
        %363 = vmatprep.subr.mxu0 0.0
        %364 = vmatpush1.xpose.msra.mxu0 0.0
        %365 = vmatprep.subr.mxu0 0.0
        %366 = vmatpush1.xpose.msra.mxu0 0.0
        %367 = vmatprep.subr.mxu0 0.0
        %368 = vmatpush1.xpose.msra.mxu0 0.0
        %369 = vmatprep.subr.mxu0 0.0
        %370 = vmatpush1.xpose.msra.mxu0 0.0
        %371 = vmatprep.subr.mxu0 0.0
        %372 = vmatpush1.xpose.msra.mxu0 0.0
        %373 = vmatprep.subr.mxu0 0.0
        %374 = vmatpush1.xpose.msra.mxu0 0.0
        %375 = vmatprep.subr.mxu0 0.0
        %376 = vmatpush1.xpose.msra.mxu0 0.0
        %377 = vmatprep.subr.mxu0 0.0
        %378 = vmatpush1.xpose.msra.mxu0 0.0
        %379 = vmatprep.subr.mxu0 0.0
        %380 = vmatpush1.xpose.msra.mxu0 0.0
        %381 = vmatprep.subr.mxu0 0.0
        %382 = vmatpush1.xpose.msra.mxu0 0.0
        %383 = vmatprep.subr.mxu0 0.0
        %384 = vmatpush1.xpose.msra.mxu0 0.0
        %385 = vmatprep.subr.mxu0 0.0
        %386 = vmatpush1.xpose.msra.mxu0 0.0
        %387 = vmatprep.subr.mxu0 0.0
        %388 = vmatpush1.xpose.msra.mxu0 0.0
        %389 = vmatprep.subr.mxu0 0.0
        %390 = vmatpush1.xpose.msra.mxu0 0.0
        %391 = vmatprep.subr.mxu0 0.0
        %392 = vmatpush1.xpose.msra.mxu0 0.0
        %393 = vmatprep.subr.mxu0 0.0
        %394 = vmatpush1.xpose.msra.mxu0 0.0
        %395 = vmatprep.subr.mxu0 0.0
        %396 = vmatpush1.xpose.msra.mxu0 0.0
        %397 = vmatprep.subr.mxu0 0.0
        %398 = vmatpush1.xpose.msra.mxu0 0.0
        %399 = vmatprep.subr.mxu0 0.0
        %400 = vmatpush1.xpose.msra.mxu0 0.0
        %401 = vmatprep.subr.mxu0 0.0
        %402 = vmatpush1.xpose.msra.mxu0 0.0
        %403 = vmatprep.subr.mxu0 0.0
        %404 = vmatpush1.xpose.msra.mxu0 0.0
        %405 = vmatprep.subr.mxu0 0.0
        %406 = vmatpush1.xpose.msra.mxu0 0.0
        %407 = vmatprep.subr.mxu0 0.0
        %408 = vmatpush1.xpose.msra.mxu0 0.0
        %409 = vmatprep.subr.mxu0 0.0
        %410 = vmatpush1.xpose.msra.mxu0 0.0
        %411 = vmatprep.mubr.f32.mxu0 0.0
        %412 = vmatmul.mubr.f32.gmra.mrb[0].mxu0 %v336
        %v413 = vpop.f32.mrb[0].mxu0
        %v414 = vadd.f32 0.0, %v413
        %v415 = vpop.f32.mrb[0].mxu0
        %416 = vmatprep.mubr.f32.mxu0 0.0
        %417 = vmatmul.mubr.f32.gmra.mrb[0].mxu0 %v339
        %v418 = vpop.f32.mrb[0].mxu0
        %v419 = vadd.f32 0.0, %v418
        %v420 = vpop.f32.mrb[0].mxu0
        %421 = vdwg.mxu0
        %v423 = vsel %vm334, %v310, 0
        %v426 = vsel %vm334, %v311, 0
        %v429 = vsel %vm334, %v318, 0
        %v432 = vsel %vm334, %v319, 0
        %434 = vmatprep.subr.mxu0 0.0
        %435 = vmatpush1.xpose.msra.mxu0 %v429
        %436 = vmatprep.subr.mxu0 0.0
        %437 = vmatpush1.xpose.msra.mxu0 %v432
        %438 = vmatprep.subr.mxu0 0.0
        %439 = vmatpush1.xpose.msra.mxu0 0.0
        %440 = vmatprep.subr.mxu0 0.0
        %441 = vmatpush1.xpose.msra.mxu0 0.0
        %442 = vmatprep.subr.mxu0 0.0
        %443 = vmatpush1.xpose.msra.mxu0 0.0
        %444 = vmatprep.subr.mxu0 0.0
        %445 = vmatpush1.xpose.msra.mxu0 0.0
        %446 = vmatprep.subr.mxu0 0.0
        %447 = vmatpush1.xpose.msra.mxu0 0.0
        %448 = vmatprep.subr.mxu0 0.0
        %449 = vmatpush1.xpose.msra.mxu0 0.0
        %450 = vmatprep.subr.mxu0 0.0
        %451 = vmatpush1.xpose.msra.mxu0 0.0
        %452 = vmatprep.subr.mxu0 0.0
        %453 = vmatpush1.xpose.msra.mxu0 0.0
        %454 = vmatprep.subr.mxu0 0.0
        %455 = vmatpush1.xpose.msra.mxu0 0.0
        %456 = vmatprep.subr.mxu0 0.0
        %457 = vmatpush1.xpose.msra.mxu0 0.0
        %458 = vmatprep.subr.mxu0 0.0
        %459 = vmatpush1.xpose.msra.mxu0 0.0
        %460 = vmatprep.subr.mxu0 0.0
        %461 = vmatpush1.xpose.msra.mxu0 0.0
        %462 = vmatprep.subr.mxu0 0.0
        %463 = vmatpush1.xpose.msra.mxu0 0.0
        %464 = vmatprep.subr.mxu0 0.0
        %465 = vmatpush1.xpose.msra.mxu0 0.0
        %466 = vmatprep.subr.mxu0 0.0
        %467 = vmatpush1.xpose.msra.mxu0 0.0
        %468 = vmatprep.subr.mxu0 0.0
        %469 = vmatpush1.xpose.msra.mxu0 0.0
        %470 = vmatprep.subr.mxu0 0.0
        %471 = vmatpush1.xpose.msra.mxu0 0.0
        %472 = vmatprep.subr.mxu0 0.0
        %473 = vmatpush1.xpose.msra.mxu0 0.0
        %474 = vmatprep.subr.mxu0 0.0
        %475 = vmatpush1.xpose.msra.mxu0 0.0
        %476 = vmatprep.subr.mxu0 0.0
        %477 = vmatpush1.xpose.msra.mxu0 0.0
        %478 = vmatprep.subr.mxu0 0.0
        %479 = vmatpush1.xpose.msra.mxu0 0.0
        %480 = vmatprep.subr.mxu0 0.0
        %481 = vmatpush1.xpose.msra.mxu0 0.0
        %482 = vmatprep.subr.mxu0 0.0
        %483 = vmatpush1.xpose.msra.mxu0 0.0
        %484 = vmatprep.subr.mxu0 0.0
        %485 = vmatpush1.xpose.msra.mxu0 0.0
        %486 = vmatprep.subr.mxu0 0.0
        %487 = vmatpush1.xpose.msra.mxu0 0.0
        %488 = vmatprep.subr.mxu0 0.0
        %489 = vmatpush1.xpose.msra.mxu0 0.0
        %490 = vmatprep.subr.mxu0 0.0
        %491 = vmatpush1.xpose.msra.mxu0 0.0
        %492 = vmatprep.subr.mxu0 0.0
        %493 = vmatpush1.xpose.msra.mxu0 0.0
        %494 = vmatprep.subr.mxu0 0.0
        %495 = vmatpush1.xpose.msra.mxu0 0.0
        %496 = vmatprep.subr.mxu0 0.0
        %497 = vmatpush1.xpose.msra.mxu0 0.0
        %498 = vmatprep.mubr.f32.mxu0 0.0
        %499 = vmatmul.mubr.f32.gmra.mrb[0].mxu0 %v423
        %v500 = vpop.f32.mrb[0].mxu0
        %v501 = vadd.f32 0.0, %v500
        %v502 = vpop.f32.mrb[0].mxu0
        %503 = vmatprep.mubr.f32.mxu0 0.0
        %504 = vmatmul.mubr.f32.gmra.mrb[0].mxu0 %v426
        %v505 = vpop.f32.mrb[0].mxu0
        %v506 = vadd.f32 0.0, %v505
        %v507 = vpop.f32.mrb[0].mxu0
        %508 = vdwg.mxu0
        %v510 = vsel %vm334, %v312, 0
        %v513 = vsel %vm334, %v313, 0
        %v516 = vsel %vm334, %v320, 0
        %v519 = vsel %vm334, %v321, 0
        %521 = vmatprep.subr.mxu0 0.0
        %522 = vmatpush1.xpose.msra.mxu0 %v516
        %523 = vmatprep.subr.mxu0 0.0
        %524 = vmatpush1.xpose.msra.mxu0 %v519
        %525 = vmatprep.subr.mxu0 0.0
        %526 = vmatpush1.xpose.msra.mxu0 0.0
        %527 = vmatprep.subr.mxu0 0.0
        %528 = vmatpush1.xpose.msra.mxu0 0.0
        %529 = vmatprep.subr.mxu0 0.0
        %530 = vmatpush1.xpose.msra.mxu0 0.0
        %531 = vmatprep.subr.mxu0 0.0
        %532 = vmatpush1.xpose.msra.mxu0 0.0
        %533 = vmatprep.subr.mxu0 0.0
        %534 = vmatpush1.xpose.msra.mxu0 0.0
        %535 = vmatprep.subr.mxu0 0.0
        %536 = vmatpush1.xpose.msra.mxu0 0.0
        %537 = vmatprep.subr.mxu0 0.0
        %538 = vmatpush1.xpose.msra.mxu0 0.0
        %539 = vmatprep.subr.mxu0 0.0
        %540 = vmatpush1.xpose.msra.mxu0 0.0
        %541 = vmatprep.subr.mxu0 0.0
        %542 = vmatpush1.xpose.msra.mxu0 0.0
        %543 = vmatprep.subr.mxu0 0.0
        %544 = vmatpush1.xpose.msra.mxu0 0.0
        %545 = vmatprep.subr.mxu0 0.0
        %546 = vmatpush1.xpose.msra.mxu0 0.0
        %547 = vmatprep.subr.mxu0 0.0
        %548 = vmatpush1.xpose.msra.mxu0 0.0
        %549 = vmatprep.subr.mxu0 0.0
        %550 = vmatpush1.xpose.msra.mxu0 0.0
        %551 = vmatprep.subr.mxu0 0.0
        %552 = vmatpush1.xpose.msra.mxu0 0.0
        %553 = vmatprep.subr.mxu0 0.0
        %554 = vmatpush1.xpose.msra.mxu0 0.0
        %555 = vmatprep.subr.mxu0 0.0
        %556 = vmatpush1.xpose.msra.mxu0 0.0
        %557 = vmatprep.subr.mxu0 0.0
        %558 = vmatpush1.xpose.msra.mxu0 0.0
        %559 = vmatprep.subr.mxu0 0.0
        %560 = vmatpush1.xpose.msra.mxu0 0.0
        %561 = vmatprep.subr.mxu0 0.0
        %562 = vmatpush1.xpose.msra.mxu0 0.0
        %563 = vmatprep.subr.mxu0 0.0
        %564 = vmatpush1.xpose.msra.mxu0 0.0
        %565 = vmatprep.subr.mxu0 0.0
        %566 = vmatpush1.xpose.msra.mxu0 0.0
        %567 = vmatprep.subr.mxu0 0.0
        %568 = vmatpush1.xpose.msra.mxu0 0.0
        %569 = vmatprep.subr.mxu0 0.0
        %570 = vmatpush1.xpose.msra.mxu0 0.0
        %571 = vmatprep.subr.mxu0 0.0
        %572 = vmatpush1.xpose.msra.mxu0 0.0
        %573 = vmatprep.subr.mxu0 0.0
        %574 = vmatpush1.xpose.msra.mxu0 0.0
        %575 = vmatprep.subr.mxu0 0.0
        %576 = vmatpush1.xpose.msra.mxu0 0.0
        %577 = vmatprep.subr.mxu0 0.0
        %578 = vmatpush1.xpose.msra.mxu0 0.0
        %579 = vmatprep.subr.mxu0 0.0
        %580 = vmatpush1.xpose.msra.mxu0 0.0
        %581 = vmatprep.subr.mxu0 0.0
        %582 = vmatpush1.xpose.msra.mxu0 0.0
        %583 = vmatprep.subr.mxu0 0.0
        %584 = vmatpush1.xpose.msra.mxu0 0.0
        %585 = vmatprep.mubr.f32.mxu0 0.0
        %586 = vmatmul.mubr.f32.gmra.mrb[0].mxu0 %v510
        %v587 = vpop.f32.mrb[0].mxu0
        %v588 = vadd.f32 0.0, %v587
        %v589 = vpop.f32.mrb[0].mxu0
        %590 = vmatprep.mubr.f32.mxu0 0.0
        %591 = vmatmul.mubr.f32.gmra.mrb[0].mxu0 %v513
        %v592 = vpop.f32.mrb[0].mxu0
        %v593 = vadd.f32 0.0, %v592
        %v594 = vpop.f32.mrb[0].mxu0
        %595 = vdwg.mxu0
        %v597 = vsel %vm334, %v314, 0
        %v600 = vsel %vm334, %v315, 0
        %v603 = vsel %vm334, %v322, 0
        %v606 = vsel %vm334, %v323, 0
        %608 = vmatprep.subr.mxu0 0.0
        %609 = vmatpush1.xpose.msra.mxu0 %v603
        %610 = vmatprep.subr.mxu0 0.0
        %611 = vmatpush1.xpose.msra.mxu0 %v606
        %612 = vmatprep.subr.mxu0 0.0
        %613 = vmatpush1.xpose.msra.mxu0 0.0
        %614 = vmatprep.subr.mxu0 0.0
        %615 = vmatpush1.xpose.msra.mxu0 0.0
        %616 = vmatprep.subr.mxu0 0.0
        %617 = vmatpush1.xpose.msra.mxu0 0.0
        %618 = vmatprep.subr.mxu0 0.0
        %619 = vmatpush1.xpose.msra.mxu0 0.0
        %620 = vmatprep.subr.mxu0 0.0
        %621 = vmatpush1.xpose.msra.mxu0 0.0
        %622 = vmatprep.subr.mxu0 0.0
        %623 = vmatpush1.xpose.msra.mxu0 0.0
        %624 = vmatprep.subr.mxu0 0.0
        %625 = vmatpush1.xpose.msra.mxu0 0.0
        %626 = vmatprep.subr.mxu0 0.0
        %627 = vmatpush1.xpose.msra.mxu0 0.0
        %628 = vmatprep.subr.mxu0 0.0
        %629 = vmatpush1.xpose.msra.mxu0 0.0
        %630 = vmatprep.subr.mxu0 0.0
        %631 = vmatpush1.xpose.msra.mxu0 0.0
        %632 = vmatprep.subr.mxu0 0.0
        %633 = vmatpush1.xpose.msra.mxu0 0.0
        %634 = vmatprep.subr.mxu0 0.0
        %635 = vmatpush1.xpose.msra.mxu0 0.0
        %636 = vmatprep.subr.mxu0 0.0
        %637 = vmatpush1.xpose.msra.mxu0 0.0
        %638 = vmatprep.subr.mxu0 0.0
        %639 = vmatpush1.xpose.msra.mxu0 0.0
        %640 = vmatprep.subr.mxu0 0.0
        %641 = vmatpush1.xpose.msra.mxu0 0.0
        %642 = vmatprep.subr.mxu0 0.0
        %643 = vmatpush1.xpose.msra.mxu0 0.0
        %644 = vmatprep.subr.mxu0 0.0
        %645 = vmatpush1.xpose.msra.mxu0 0.0
        %646 = vmatprep.subr.mxu0 0.0
        %647 = vmatpush1.xpose.msra.mxu0 0.0
        %648 = vmatprep.subr.mxu0 0.0
        %649 = vmatpush1.xpose.msra.mxu0 0.0
        %650 = vmatprep.subr.mxu0 0.0
        %651 = vmatpush1.xpose.msra.mxu0 0.0
        %652 = vmatprep.subr.mxu0 0.0
        %653 = vmatpush1.xpose.msra.mxu0 0.0
        %654 = vmatprep.subr.mxu0 0.0
        %655 = vmatpush1.xpose.msra.mxu0 0.0
        %656 = vmatprep.subr.mxu0 0.0
        %657 = vmatpush1.xpose.msra.mxu0 0.0
        %658 = vmatprep.subr.mxu0 0.0
        %659 = vmatpush1.xpose.msra.mxu0 0.0
        %660 = vmatprep.subr.mxu0 0.0
        %661 = vmatpush1.xpose.msra.mxu0 0.0
        %662 = vmatprep.subr.mxu0 0.0
        %663 = vmatpush1.xpose.msra.mxu0 0.0
        %664 = vmatprep.subr.mxu0 0.0
        %665 = vmatpush1.xpose.msra.mxu0 0.0
        %666 = vmatprep.subr.mxu0 0.0
        %667 = vmatpush1.xpose.msra.mxu0 0.0
        %668 = vmatprep.subr.mxu0 0.0
        %669 = vmatpush1.xpose.msra.mxu0 0.0
        %670 = vmatprep.subr.mxu0 0.0
        %671 = vmatpush1.xpose.msra.mxu0 0.0
        %672 = vmatprep.mubr.f32.mxu0 0.0
        %673 = vmatmul.mubr.f32.gmra.mrb[0].mxu0 %v597
        %v674 = vpop.f32.mrb[0].mxu0
        %v675 = vadd.f32 0.0, %v674
        %v676 = vpop.f32.mrb[0].mxu0
        %677 = vmatprep.mubr.f32.mxu0 0.0
        %678 = vmatmul.mubr.f32.gmra.mrb[0].mxu0 %v600
        %v679 = vpop.f32.mrb[0].mxu0
        %v680 = vadd.f32 0.0, %v679
        %v681 = vpop.f32.mrb[0].mxu0
        %682 = vdwg.mxu0
        %vm683 = vcmp.gt.f32.partialorder %v332, 0.0
        %vm684 = vcmp.gt.f32.partialorder %v333, 0.0
        %v685 = vsel %vm683, 1, 0
        %v686 = vsel %vm684, 1, 0
        %vm687 = vcmp.eq.s32.totalorder %v685, 1
        %vm688 = vcmp.eq.s32.totalorder %v686, 1
        %v689 = vsel %vm687, %v414, -1e+30
        %v690 = vsel %vm688, %v419, -1e+30
        %v691 = vsel %vm687, %v501, -1e+30
        %v692 = vsel %vm688, %v506, -1e+30
        %v693 = vsel %vm687, %v588, -1e+30
        %v694 = vsel %vm688, %v593, -1e+30
        %v695 = vsel %vm687, %v675, -1e+30
        %v696 = vsel %vm688, %v680, -1e+30
        %vm697 = vcmask 130048
        %v698 = vsel %vm697, %v689, -inf
        %699 = vmax.xlane.f32.xlu0 %v698
        %v700 = vpop.xlane.xlu0 %699
        %v701 = vsel %vm697, %v690, -inf
        %702 = vmax.xlane.f32.xlu0 %v701
        %v703 = vpop.xlane.xlu0 %702
        %v704 = vsel %vm697, %v691, -inf
        %705 = vmax.xlane.f32.xlu0 %v704
        %v706 = vpop.xlane.xlu0 %705
        %v707 = vsel %vm697, %v692, -inf
        %708 = vmax.xlane.f32.xlu0 %v707
        %v709 = vpop.xlane.xlu0 %708
        %v710 = vsel %vm697, %v693, -inf
        %711 = vmax.xlane.f32.xlu0 %v710
        %v712 = vpop.xlane.xlu0 %711
        %v713 = vsel %vm697, %v694, -inf
        %714 = vmax.xlane.f32.xlu0 %v713
        %v715 = vpop.xlane.xlu0 %714
        %v716 = vsel %vm697, %v695, -inf
        %717 = vmax.xlane.f32.xlu0 %v716
        %v718 = vpop.xlane.xlu0 %717
        %v719 = vsel %vm697, %v696, -inf
        %720 = vmax.xlane.f32.xlu0 %v719
        %v721 = vpop.xlane.xlu0 %720
        %v722 = vmul.f32 %v414, %v332
        %v723 = vmul.f32 %v419, %v333
        %v724 = vmul.f32 %v501, %v332
        %v725 = vmul.f32 %v506, %v333
        %v726 = vmul.f32 %v588, %v332
        %v727 = vmul.f32 %v593, %v333
        %v728 = vmul.f32 %v675, %v332
        %v729 = vmul.f32 %v680, %v333
        %v730 = vsel %vm697, %v722, 0.0
        %731 = vadd.xlane.f32.xlu0 %v730
        %v732 = vpop.xlane.xlu0 %731
        %v733 = vsel %vm697, %v723, 0.0
        %734 = vadd.xlane.f32.xlu0 %v733
        %v735 = vpop.xlane.xlu0 %734
        %v736 = vsel %vm697, %v724, 0.0
        %737 = vadd.xlane.f32.xlu0 %v736
        %v738 = vpop.xlane.xlu0 %737
        %v739 = vsel %vm697, %v725, 0.0
        %740 = vadd.xlane.f32.xlu0 %v739
        %v741 = vpop.xlane.xlu0 %740
        %v742 = vsel %vm697, %v726, 0.0
        %743 = vadd.xlane.f32.xlu0 %v742
        %v744 = vpop.xlane.xlu0 %743
        %v745 = vsel %vm697, %v727, 0.0
        %746 = vadd.xlane.f32.xlu0 %v745
        %v747 = vpop.xlane.xlu0 %746
        %v748 = vsel %vm697, %v728, 0.0
        %749 = vadd.xlane.f32.xlu0 %v748
        %v750 = vpop.xlane.xlu0 %749
        %v751 = vsel %vm697, %v729, 0.0
        %752 = vadd.xlane.f32.xlu0 %v751
        %v753 = vpop.xlane.xlu0 %752
        %v754 = vrcp.pop 16.0
        %v755 = vmul.f32 %v732, %v754
        %v756 = vmul.f32 %v735, %v754
        %v757 = vmul.f32 %v738, %v754
        %v758 = vmul.f32 %v741, %v754
        %v759 = vmul.f32 %v744, %v754
        %v760 = vmul.f32 %v747, %v754
        %v761 = vmul.f32 %v750, %v754
        %v762 = vmul.f32 %v753, %v754
        %v763 = vsub.f32 %v700, %v755
        %v764 = vsub.f32 %v703, %v756
        %v765 = vsub.f32 %v706, %v757
        %v766 = vsub.f32 %v709, %v758
        %v767 = vsub.f32 %v712, %v759
        %v768 = vsub.f32 %v715, %v760
        %v769 = vsub.f32 %v718, %v761
        %v770 = vsub.f32 %v721, %v762
        %v771 = vlaneseq
        %v772 = vand.u32 %v771, 127
        %v773 = vcvt.s32.f32 %v772
        %v774 = vlaneseq
        %v775 = vshrl.u32 %v774, 7
        %v776 = vadd.s32 %v775, 8
        %v785 = vlaneseq
        %v786 = vshrl.u32 %v785, 7
        %v787 = vsub.s32 %v772, %v786
        %v788 = vrot.slane %v763, %v787
        %v789 = vadd.s32 %v772, 4294967288
        %v790 = vlaneseq
        %v791 = vshrl.u32 %v790, 7
        %v792 = vsub.s32 %v789, %v791
        %v793 = vrot.slane %v764, %v792
        %vm794 = vcmask 130112
        %v795 = vsel %vm794, %v793, %v788
        %v796 = vlaneseq
        %v797 = vshrl.u32 %v796, 7
        %v798 = vsub.s32 %v772, %v797
        %v799 = vrot.slane %v765, %v798
        %v800 = vlaneseq
        %v801 = vshrl.u32 %v800, 7
        %v802 = vsub.s32 %v789, %v801
        %v803 = vrot.slane %v766, %v802
        %v804 = vsel %vm794, %v803, %v799
        %v805 = vlaneseq
        %v806 = vshrl.u32 %v805, 7
        %v807 = vsub.s32 %v772, %v806
        %v808 = vrot.slane %v767, %v807
        %v809 = vlaneseq
        %v810 = vshrl.u32 %v809, 7
        %v811 = vsub.s32 %v789, %v810
        %v812 = vrot.slane %v768, %v811
        %v813 = vsel %vm794, %v812, %v808
        %v814 = vlaneseq
        %v815 = vshrl.u32 %v814, 7
        %v816 = vsub.s32 %v772, %v815
        %v817 = vrot.slane %v769, %v816
        %v818 = vlaneseq
        %v819 = vshrl.u32 %v818, 7
        %v820 = vsub.s32 %v789, %v819
        %v821 = vrot.slane %v770, %v820
        %v822 = vsel %vm794, %v821, %v817
        %vm823 = vcmask 1041409
        %v824 = vsel %vm823, %v804, %v795
        %vm825 = vcmask 1042434
        %v826 = vsel %vm825, %v813, %v824
        %vm827 = vcmask 1043459
        %v828 = vsel %vm827, %v822, %v826
        %vm830 = vcmask 125952
        %v831 = vsel %vm830, %v828, -inf
        %832 = vmax.xlane.f32.xlu0 %v831
        %v833 = vpop.xlane.xlu0 %832
        %v835 = vlaneseq
        %v836 = vshrl.u32 %v835, 7
        %v837 = vsub.s32 0, %v836
        %v838 = vrot.slane %v833, %v837
        %v839 = vlaneseq
        %v840 = vshrl.u32 %v839, 7
        %v841 = vsub.s32 1, %v840
        %v842 = vrot.slane %v833, %v841
        %v843 = vlaneseq
        %v844 = vshrl.u32 %v843, 7
        %v845 = vsub.s32 2, %v844
        %v846 = vrot.slane %v833, %v845
        %v847 = vlaneseq
        %v848 = vshrl.u32 %v847, 7
        %v849 = vsub.s32 3, %v848
        %v850 = vrot.slane %v833, %v849
        %vm855 = vcmp.ge.f32.partialorder %v763, %v838
        %vm856 = vcmp.ge.f32.partialorder %v764, %v838
        %vm857 = vcmp.ge.f32.partialorder %v765, %v842
        %vm858 = vcmp.ge.f32.partialorder %v766, %v842
        %vm859 = vcmp.ge.f32.partialorder %v767, %v846
        %vm860 = vcmp.ge.f32.partialorder %v768, %v846
        %vm861 = vcmp.ge.f32.partialorder %v769, %v850
        %vm862 = vcmp.ge.f32.partialorder %v770, %v850
        %865 = vbcast.lane.b32.xlu0 %v773, 256
        %v866 = vpop.permute.xlu0 %865
        %s868 = sor.u32 256, 8
        %869 = vbcast.lane.b32.xlu0 %v773, %s868
        %v870 = vpop.permute.xlu0 %869
        %v873 = vsel %vm855, %v866, 16.0
        %v874 = vsel %vm856, %v870, 16.0
        %v875 = vsel %vm857, %v866, 16.0
        %v876 = vsel %vm858, %v870, 16.0
        %v877 = vsel %vm859, %v866, 16.0
        %v878 = vsel %vm860, %v870, 16.0
        %v879 = vsel %vm861, %v866, 16.0
        %v880 = vsel %vm862, %v870, 16.0
        %889 = vset.pattern.permute.xlu0 0
        %890 = vperm.xlu0 %889, %v873
        %v891 = vpop.permute.xlu0 %890
        %892 = vset.pattern.permute.xlu0 0
        %893 = vperm.xlu0 %892, %v874
        %v894 = vpop.permute.xlu0 %893
        %895 = vset.pattern.permute.xlu0 0
        %896 = vperm.xlu0 %895, %v875
        %v897 = vpop.permute.xlu0 %896
        %898 = vset.pattern.permute.xlu0 0
        %899 = vperm.xlu0 %898, %v876
        %v900 = vpop.permute.xlu0 %899
        %901 = vset.pattern.permute.xlu0 0
        %902 = vperm.xlu0 %901, %v877
        %v903 = vpop.permute.xlu0 %902
        %904 = vset.pattern.permute.xlu0 0
        %905 = vperm.xlu0 %904, %v878
        %v906 = vpop.permute.xlu0 %905
        %907 = vset.pattern.permute.xlu0 0
        %908 = vperm.xlu0 %907, %v879
        %v909 = vpop.permute.xlu0 %908
        %910 = vset.pattern.permute.xlu0 0
        %911 = vperm.xlu0 %910, %v880
        %v912 = vpop.permute.xlu0 %911
        %v913 = vlaneseq
        %v914 = vshrl.u32 %v913, 7
        %v915 = vsub.s32 %v772, %v914
        %v916 = vrot.slane %v891, %v915
        %v917 = vlaneseq
        %v918 = vshrl.u32 %v917, 7
        %v919 = vsub.s32 %v789, %v918
        %v920 = vrot.slane %v894, %v919
        %v921 = vsel %vm794, %v920, %v916
        %v922 = vlaneseq
        %v923 = vshrl.u32 %v922, 7
        %v924 = vsub.s32 %v772, %v923
        %v925 = vrot.slane %v897, %v924
        %v926 = vlaneseq
        %v927 = vshrl.u32 %v926, 7
        %v928 = vsub.s32 %v789, %v927
        %v929 = vrot.slane %v900, %v928
        %v930 = vsel %vm794, %v929, %v925
        %v931 = vlaneseq
        %v932 = vshrl.u32 %v931, 7
        %v933 = vsub.s32 %v772, %v932
        %v934 = vrot.slane %v903, %v933
        %v935 = vlaneseq
        %v936 = vshrl.u32 %v935, 7
        %v937 = vsub.s32 %v789, %v936
        %v938 = vrot.slane %v906, %v937
        %v939 = vsel %vm794, %v938, %v934
        %v940 = vlaneseq
        %v941 = vshrl.u32 %v940, 7
        %v942 = vsub.s32 %v772, %v941
        %v943 = vrot.slane %v909, %v942
        %v944 = vlaneseq
        %v945 = vshrl.u32 %v944, 7
        %v946 = vsub.s32 %v789, %v945
        %v947 = vrot.slane %v912, %v946
        %v948 = vsel %vm794, %v947, %v943
        %v949 = vsel %vm823, %v930, %v921
        %v950 = vsel %vm825, %v939, %v949
        %v951 = vsel %vm827, %v948, %v950
        %v953 = vsel %vm830, %v951, inf
        %954 = vmin.xlane.f32.xlu0 %v953
        %v955 = vpop.xlane.xlu0 %954
        %vm956 = vcmp.eq.f32.partialorder %v773, %v955
        %v957 = vsel %vm956, 1, 0
        %v958 = vcvt.s32.f32 %v957
        %vm959 = vcmp.eq.s32.totalorder %v775, 0
        %vm960 = vcmp.eq.s32.totalorder %v776, 0
        %v961 = vsel %vm959, 1, 0
        %v962 = vsel %vm960, 1, 0
        %v963 = vcvt.s32.f32 %v961
        %v964 = vcvt.s32.f32 %v962
        %vm965 = vcmp.eq.s32.totalorder %v772, 0
        %v966 = vsel %vm965, 1, 0
        %v967 = vcvt.s32.f32 %v966
        %v970 = vunpack.c.l.s4 1966171168
        %v971 = vunpack.c.0.s8 %v970
        %v972 = vlaneseq
        %v973 = vshrl.u32 %v972, 7
        %v974 = vsub.s32 %v971, %v973
        %v975 = vrot.slane %v958, %v974
        %v976 = vcombine.high %v975, %v975
        %v978 = vunpack.c.l.s4 1966171168
        %v979 = vunpack.c.0.s8 %v978
        %v980 = vlaneseq
        %v981 = vshrl.u32 %v980, 7
        %v982 = vsub.s32 %v979, %v981
        %v983 = vrot.slane %v975, %v982
        %v985 = vunpack.c.l.s4 1966171168
        %v986 = vunpack.c.0.s8 %v985
        %v987 = vlaneseq
        %v988 = vshrl.u32 %v987, 7
        %v989 = vsub.s32 %v986, %v988
        %v990 = vrot.slane %v976, %v989
        %v991 = vcombine.high %v983, %v983
        %v992 = vcombine.high %v990, %v990
        %v993 = vlaneseq
        %v994 = vshrl.u32 %v993, 7
        %v995 = vsub.s32 0, %v994
        %v996 = vrot.slane %v983, %v995
        %v997 = vlaneseq
        %v998 = vshrl.u32 %v997, 7
        %v999 = vsub.s32 0, %v998
        %v1000 = vrot.slane %v990, %v999
        %v1001 = vlaneseq
        %v1002 = vshrl.u32 %v1001, 7
        %v1003 = vsub.s32 0, %v1002
        %v1004 = vrot.slane %v991, %v1003
        %v1005 = vlaneseq
        %v1006 = vshrl.u32 %v1005, 7
        %v1007 = vsub.s32 0, %v1006
        %v1008 = vrot.slane %v992, %v1007
        %v1013 = vmul.f32 %v996, %v963
        %v1014 = vmul.f32 %v996, %v964
        %v1015 = vmul.f32 %v1000, %v963
        %v1016 = vmul.f32 %v1000, %v964
        %v1017 = vmul.f32 %v1004, %v963
        %v1018 = vmul.f32 %v1004, %v964
        %v1019 = vmul.f32 %v1008, %v963
        %v1020 = vmul.f32 %v1008, %v964
        %v1021 = vadd.f32 %v1013, 0.0
        %v1022 = vadd.f32 %v1014, 0.0
        %v1023 = vadd.f32 %v1015, 0.0
        %v1024 = vadd.f32 %v1016, 0.0
        %v1025 = vadd.f32 %v1017, 0.0
        %v1026 = vadd.f32 %v1018, 0.0
        %v1027 = vadd.f32 %v1019, 0.0
        %v1028 = vadd.f32 %v1020, 0.0
        %v1029 = vlaneseq
        %v1030 = vshrl.u32 %v1029, 7
        %v1031 = vsub.s32 0, %v1030
        %v1032 = vrot.slane %v958, %v1031
        %1034 = vbcast.lane.b32.xlu0 %v1032, 256
        %v1035 = vpop.permute.xlu0 %1034
        %s1037 = sor.u32 256, 8
        %1038 = vbcast.lane.b32.xlu0 %v1032, %s1037
        %v1039 = vpop.permute.xlu0 %1038
        %v1040 = vlaneseq
        %v1041 = vshrl.u32 %v1040, 7
        %v1042 = vsub.s32 1, %v1041
        %v1043 = vrot.slane %v958, %v1042
        %1045 = vbcast.lane.b32.xlu0 %v1043, 256
        %v1046 = vpop.permute.xlu0 %1045
        %s1048 = sor.u32 256, 8
        %1049 = vbcast.lane.b32.xlu0 %v1043, %s1048
        %v1050 = vpop.permute.xlu0 %1049
        %v1051 = vlaneseq
        %v1052 = vshrl.u32 %v1051, 7
        %v1053 = vsub.s32 2, %v1052
        %v1054 = vrot.slane %v958, %v1053
        %1056 = vbcast.lane.b32.xlu0 %v1054, 256
        %v1057 = vpop.permute.xlu0 %1056
        %s1059 = sor.u32 256, 8
        %1060 = vbcast.lane.b32.xlu0 %v1054, %s1059
        %v1061 = vpop.permute.xlu0 %1060
        %v1062 = vlaneseq
        %v1063 = vshrl.u32 %v1062, 7
        %v1064 = vsub.s32 3, %v1063
        %v1065 = vrot.slane %v958, %v1064
        %1067 = vbcast.lane.b32.xlu0 %v1065, 256
        %v1068 = vpop.permute.xlu0 %1067
        %s1070 = sor.u32 256, 8
        %1071 = vbcast.lane.b32.xlu0 %v1065, %s1070
        %v1072 = vpop.permute.xlu0 %1071
        %v1073 = vmul.f32 %v1035, %v967
        %v1074 = vmul.f32 %v1039, %v967
        %v1075 = vmul.f32 %v1046, %v967
        %v1076 = vmul.f32 %v1050, %v967
        %v1077 = vmul.f32 %v1057, %v967
        %v1078 = vmul.f32 %v1061, %v967
        %v1079 = vmul.f32 %v1068, %v967
        %v1080 = vmul.f32 %v1072, %v967
        %v1081 = vadd.f32 %v1073, 0.0
        %v1082 = vadd.f32 %v1074, 0.0
        %v1083 = vadd.f32 %v1075, 0.0
        %v1084 = vadd.f32 %v1076, 0.0
        %v1085 = vadd.f32 %v1077, 0.0
        %v1086 = vadd.f32 %v1078, 0.0
        %v1087 = vadd.f32 %v1079, 0.0
        %v1088 = vadd.f32 %v1080, 0.0
        %vm1089 = vcmp.gt.f32.partialorder %v958, 0.0
        %v1090 = vsel %vm1089, -1e+30, %v828
        %v1091 = vsel %vm830, %v1090, -inf
        %1092 = vmax.xlane.f32.xlu0 %v1091
        %v1093 = vpop.xlane.xlu0 %1092
        %vm1094 = vcmp.ge.f32.partialorder %v1090, %v1093
        %v1095 = vsel %vm1094, %v773, 16.0
        %v1096 = vsel %vm830, %v1095, inf
        %1097 = vmin.xlane.f32.xlu0 %v1096
        %v1098 = vpop.xlane.xlu0 %1097
        %vm1099 = vcmp.eq.f32.partialorder %v773, %v1098
        %v1100 = vsel %vm1099, 1, 0
        %v1101 = vcvt.s32.f32 %v1100
        %vm1102 = vcmp.eq.s32.totalorder %v775, 1
        %vm1103 = vcmp.eq.s32.totalorder %v776, 1
        %v1104 = vsel %vm1102, 1, 0
        %v1105 = vsel %vm1103, 1, 0
        %v1106 = vcvt.s32.f32 %v1104
        %v1107 = vcvt.s32.f32 %v1105
        %vm1108 = vcmp.eq.s32.totalorder %v772, 1
        %v1109 = vsel %vm1108, 1, 0
        %v1110 = vcvt.s32.f32 %v1109
        %v1113 = vunpack.c.l.s4 1966171168
        %v1114 = vunpack.c.0.s8 %v1113
        %v1115 = vlaneseq
        %v1116 = vshrl.u32 %v1115, 7
        %v1117 = vsub.s32 %v1114, %v1116
        %v1118 = vrot.slane %v1101, %v1117
        %v1119 = vcombine.high %v1118, %v1118
        %v1121 = vunpack.c.l.s4 1966171168
        %v1122 = vunpack.c.0.s8 %v1121
        %v1123 = vlaneseq
        %v1124 = vshrl.u32 %v1123, 7
        %v1125 = vsub.s32 %v1122, %v1124
        %v1126 = vrot.slane %v1118, %v1125
        %v1128 = vunpack.c.l.s4 1966171168
        %v1129 = vunpack.c.0.s8 %v1128
        %v1130 = vlaneseq
        %v1131 = vshrl.u32 %v1130, 7
        %v1132 = vsub.s32 %v1129, %v1131
        %v1133 = vrot.slane %v1119, %v1132
        %v1134 = vcombine.high %v1126, %v1126
        %v1135 = vcombine.high %v1133, %v1133
        %v1136 = vlaneseq
        %v1137 = vshrl.u32 %v1136, 7
        %v1138 = vsub.s32 0, %v1137
        %v1139 = vrot.slane %v1126, %v1138
        %v1140 = vlaneseq
        %v1141 = vshrl.u32 %v1140, 7
        %v1142 = vsub.s32 0, %v1141
        %v1143 = vrot.slane %v1133, %v1142
        %v1144 = vlaneseq
        %v1145 = vshrl.u32 %v1144, 7
        %v1146 = vsub.s32 0, %v1145
        %v1147 = vrot.slane %v1134, %v1146
        %v1148 = vlaneseq
        %v1149 = vshrl.u32 %v1148, 7
        %v1150 = vsub.s32 0, %v1149
        %v1151 = vrot.slane %v1135, %v1150
        %v1156 = vmul.f32 %v1139, %v1106
        %v1157 = vmul.f32 %v1139, %v1107
        %v1158 = vmul.f32 %v1143, %v1106
        %v1159 = vmul.f32 %v1143, %v1107
        %v1160 = vmul.f32 %v1147, %v1106
        %v1161 = vmul.f32 %v1147, %v1107
        %v1162 = vmul.f32 %v1151, %v1106
        %v1163 = vmul.f32 %v1151, %v1107
        %v1164 = vadd.f32 %v1021, %v1156
        %v1165 = vadd.f32 %v1022, %v1157
        %v1166 = vadd.f32 %v1023, %v1158
        %v1167 = vadd.f32 %v1024, %v1159
        %v1168 = vadd.f32 %v1025, %v1160
        %v1169 = vadd.f32 %v1026, %v1161
        %v1170 = vadd.f32 %v1027, %v1162
        %v1171 = vadd.f32 %v1028, %v1163
        %v1172 = vlaneseq
        %v1173 = vshrl.u32 %v1172, 7
        %v1174 = vsub.s32 0, %v1173
        %v1175 = vrot.slane %v1101, %v1174
        %1177 = vbcast.lane.b32.xlu0 %v1175, 256
        %v1178 = vpop.permute.xlu0 %1177
        %s1180 = sor.u32 256, 8
        %1181 = vbcast.lane.b32.xlu0 %v1175, %s1180
        %v1182 = vpop.permute.xlu0 %1181
        %v1183 = vlaneseq
        %v1184 = vshrl.u32 %v1183, 7
        %v1185 = vsub.s32 1, %v1184
        %v1186 = vrot.slane %v1101, %v1185
        %1188 = vbcast.lane.b32.xlu0 %v1186, 256
        %v1189 = vpop.permute.xlu0 %1188
        %s1191 = sor.u32 256, 8
        %1192 = vbcast.lane.b32.xlu0 %v1186, %s1191
        %v1193 = vpop.permute.xlu0 %1192
        %v1194 = vlaneseq
        %v1195 = vshrl.u32 %v1194, 7
        %v1196 = vsub.s32 2, %v1195
        %v1197 = vrot.slane %v1101, %v1196
        %1199 = vbcast.lane.b32.xlu0 %v1197, 256
        %v1200 = vpop.permute.xlu0 %1199
        %s1202 = sor.u32 256, 8
        %1203 = vbcast.lane.b32.xlu0 %v1197, %s1202
        %v1204 = vpop.permute.xlu0 %1203
        %v1205 = vlaneseq
        %v1206 = vshrl.u32 %v1205, 7
        %v1207 = vsub.s32 3, %v1206
        %v1208 = vrot.slane %v1101, %v1207
        %1210 = vbcast.lane.b32.xlu0 %v1208, 256
        %v1211 = vpop.permute.xlu0 %1210
        %s1213 = sor.u32 256, 8
        %1214 = vbcast.lane.b32.xlu0 %v1208, %s1213
        %v1215 = vpop.permute.xlu0 %1214
        %v1216 = vmul.f32 %v1178, %v1110
        %v1217 = vmul.f32 %v1182, %v1110
        %v1218 = vmul.f32 %v1189, %v1110
        %v1219 = vmul.f32 %v1193, %v1110
        %v1220 = vmul.f32 %v1200, %v1110
        %v1221 = vmul.f32 %v1204, %v1110
        %v1222 = vmul.f32 %v1211, %v1110
        %v1223 = vmul.f32 %v1215, %v1110
        %v1224 = vadd.f32 %v1081, %v1216
        %v1225 = vadd.f32 %v1082, %v1217
        %v1226 = vadd.f32 %v1083, %v1218
        %v1227 = vadd.f32 %v1084, %v1219
        %v1228 = vadd.f32 %v1085, %v1220
        %v1229 = vadd.f32 %v1086, %v1221
        %v1230 = vadd.f32 %v1087, %v1222
        %v1231 = vadd.f32 %v1088, %v1223
        %vm1232 = vcmp.gt.f32.partialorder %v1101, 0.0
        %v1233 = vsel %vm1232, -1e+30, %v1090
        %v1234 = vsel %vm830, %v1233, -inf
        %1235 = vmax.xlane.f32.xlu0 %v1234
        %v1236 = vpop.xlane.xlu0 %1235
        %vm1237 = vcmp.ge.f32.partialorder %v1233, %v1236
        %v1238 = vsel %vm1237, %v773, 16.0
        %v1239 = vsel %vm830, %v1238, inf
        %1240 = vmin.xlane.f32.xlu0 %v1239
        %v1241 = vpop.xlane.xlu0 %1240
        %vm1242 = vcmp.eq.f32.partialorder %v773, %v1241
        %v1243 = vsel %vm1242, 1, 0
        %v1244 = vcvt.s32.f32 %v1243
        %vm1245 = vcmp.eq.s32.totalorder %v775, 2
        %vm1246 = vcmp.eq.s32.totalorder %v776, 2
        %v1247 = vsel %vm1245, 1, 0
        %v1248 = vsel %vm1246, 1, 0
        %v1249 = vcvt.s32.f32 %v1247
        %v1250 = vcvt.s32.f32 %v1248
        %vm1251 = vcmp.eq.s32.totalorder %v772, 2
        %v1252 = vsel %vm1251, 1, 0
        %v1253 = vcvt.s32.f32 %v1252
        %v1256 = vunpack.c.l.s4 1966171168
        %v1257 = vunpack.c.0.s8 %v1256
        %v1258 = vlaneseq
        %v1259 = vshrl.u32 %v1258, 7
        %v1260 = vsub.s32 %v1257, %v1259
        %v1261 = vrot.slane %v1244, %v1260
        %v1262 = vcombine.high %v1261, %v1261
        %v1264 = vunpack.c.l.s4 1966171168
        %v1265 = vunpack.c.0.s8 %v1264
        %v1266 = vlaneseq
        %v1267 = vshrl.u32 %v1266, 7
        %v1268 = vsub.s32 %v1265, %v1267
        %v1269 = vrot.slane %v1261, %v1268
        %v1271 = vunpack.c.l.s4 1966171168
        %v1272 = vunpack.c.0.s8 %v1271
        %v1273 = vlaneseq
        %v1274 = vshrl.u32 %v1273, 7
        %v1275 = vsub.s32 %v1272, %v1274
        %v1276 = vrot.slane %v1262, %v1275
        %v1277 = vcombine.high %v1269, %v1269
        %v1278 = vcombine.high %v1276, %v1276
        %v1279 = vlaneseq
        %v1280 = vshrl.u32 %v1279, 7
        %v1281 = vsub.s32 0, %v1280
        %v1282 = vrot.slane %v1269, %v1281
        %v1283 = vlaneseq
        %v1284 = vshrl.u32 %v1283, 7
        %v1285 = vsub.s32 0, %v1284
        %v1286 = vrot.slane %v1276, %v1285
        %v1287 = vlaneseq
        %v1288 = vshrl.u32 %v1287, 7
        %v1289 = vsub.s32 0, %v1288
        %v1290 = vrot.slane %v1277, %v1289
        %v1291 = vlaneseq
        %v1292 = vshrl.u32 %v1291, 7
        %v1293 = vsub.s32 0, %v1292
        %v1294 = vrot.slane %v1278, %v1293
        %v1299 = vmul.f32 %v1282, %v1249
        %v1300 = vmul.f32 %v1282, %v1250
        %v1301 = vmul.f32 %v1286, %v1249
        %v1302 = vmul.f32 %v1286, %v1250
        %v1303 = vmul.f32 %v1290, %v1249
        %v1304 = vmul.f32 %v1290, %v1250
        %v1305 = vmul.f32 %v1294, %v1249
        %v1306 = vmul.f32 %v1294, %v1250
        %v1307 = vadd.f32 %v1164, %v1299
        %v1308 = vadd.f32 %v1165, %v1300
        %v1309 = vadd.f32 %v1166, %v1301
        %v1310 = vadd.f32 %v1167, %v1302
        %v1311 = vadd.f32 %v1168, %v1303
        %v1312 = vadd.f32 %v1169, %v1304
        %v1313 = vadd.f32 %v1170, %v1305
        %v1314 = vadd.f32 %v1171, %v1306
        %v1315 = vlaneseq
        %v1316 = vshrl.u32 %v1315, 7
        %v1317 = vsub.s32 0, %v1316
        %v1318 = vrot.slane %v1244, %v1317
        %1320 = vbcast.lane.b32.xlu0 %v1318, 256
        %v1321 = vpop.permute.xlu0 %1320
        %s1323 = sor.u32 256, 8
        %1324 = vbcast.lane.b32.xlu0 %v1318, %s1323
        %v1325 = vpop.permute.xlu0 %1324
        %v1326 = vlaneseq
        %v1327 = vshrl.u32 %v1326, 7
        %v1328 = vsub.s32 1, %v1327
        %v1329 = vrot.slane %v1244, %v1328
        %1331 = vbcast.lane.b32.xlu0 %v1329, 256
        %v1332 = vpop.permute.xlu0 %1331
        %s1334 = sor.u32 256, 8
        %1335 = vbcast.lane.b32.xlu0 %v1329, %s1334
        %v1336 = vpop.permute.xlu0 %1335
        %v1337 = vlaneseq
        %v1338 = vshrl.u32 %v1337, 7
        %v1339 = vsub.s32 2, %v1338
        %v1340 = vrot.slane %v1244, %v1339
        %1342 = vbcast.lane.b32.xlu0 %v1340, 256
        %v1343 = vpop.permute.xlu0 %1342
        %s1345 = sor.u32 256, 8
        %1346 = vbcast.lane.b32.xlu0 %v1340, %s1345
        %v1347 = vpop.permute.xlu0 %1346
        %v1348 = vlaneseq
        %v1349 = vshrl.u32 %v1348, 7
        %v1350 = vsub.s32 3, %v1349
        %v1351 = vrot.slane %v1244, %v1350
        %1353 = vbcast.lane.b32.xlu0 %v1351, 256
        %v1354 = vpop.permute.xlu0 %1353
        %s1356 = sor.u32 256, 8
        %1357 = vbcast.lane.b32.xlu0 %v1351, %s1356
        %v1358 = vpop.permute.xlu0 %1357
        %v1359 = vmul.f32 %v1321, %v1253
        %v1360 = vmul.f32 %v1325, %v1253
        %v1361 = vmul.f32 %v1332, %v1253
        %v1362 = vmul.f32 %v1336, %v1253
        %v1363 = vmul.f32 %v1343, %v1253
        %v1364 = vmul.f32 %v1347, %v1253
        %v1365 = vmul.f32 %v1354, %v1253
        %v1366 = vmul.f32 %v1358, %v1253
        %v1367 = vadd.f32 %v1224, %v1359
        %v1368 = vadd.f32 %v1225, %v1360
        %v1369 = vadd.f32 %v1226, %v1361
        %v1370 = vadd.f32 %v1227, %v1362
        %v1371 = vadd.f32 %v1228, %v1363
        %v1372 = vadd.f32 %v1229, %v1364
        %v1373 = vadd.f32 %v1230, %v1365
        %v1374 = vadd.f32 %v1231, %v1366
        %vm1375 = vcmp.gt.f32.partialorder %v1244, 0.0
        %v1376 = vsel %vm1375, -1e+30, %v1233
        %v1377 = vsel %vm830, %v1376, -inf
        %1378 = vmax.xlane.f32.xlu0 %v1377
        %v1379 = vpop.xlane.xlu0 %1378
        %vm1380 = vcmp.ge.f32.partialorder %v1376, %v1379
        %v1381 = vsel %vm1380, %v773, 16.0
        %v1382 = vsel %vm830, %v1381, inf
        %1383 = vmin.xlane.f32.xlu0 %v1382
        %v1384 = vpop.xlane.xlu0 %1383
        %vm1385 = vcmp.eq.f32.partialorder %v773, %v1384
        %v1386 = vsel %vm1385, 1, 0
        %v1387 = vcvt.s32.f32 %v1386
        %vm1388 = vcmp.eq.s32.totalorder %v775, 3
        %vm1389 = vcmp.eq.s32.totalorder %v776, 3
        %v1390 = vsel %vm1388, 1, 0
        %v1391 = vsel %vm1389, 1, 0
        %v1392 = vcvt.s32.f32 %v1390
        %v1393 = vcvt.s32.f32 %v1391
        %vm1394 = vcmp.eq.s32.totalorder %v772, 3
        %v1395 = vsel %vm1394, 1, 0
        %v1396 = vcvt.s32.f32 %v1395
        %v1399 = vunpack.c.l.s4 1966171168
        %v1400 = vunpack.c.0.s8 %v1399
        %v1401 = vlaneseq
        %v1402 = vshrl.u32 %v1401, 7
        %v1403 = vsub.s32 %v1400, %v1402
        %v1404 = vrot.slane %v1387, %v1403
        %v1405 = vcombine.high %v1404, %v1404
        %v1407 = vunpack.c.l.s4 1966171168
        %v1408 = vunpack.c.0.s8 %v1407
        %v1409 = vlaneseq
        %v1410 = vshrl.u32 %v1409, 7
        %v1411 = vsub.s32 %v1408, %v1410
        %v1412 = vrot.slane %v1404, %v1411
        %v1414 = vunpack.c.l.s4 1966171168
        %v1415 = vunpack.c.0.s8 %v1414
        %v1416 = vlaneseq
        %v1417 = vshrl.u32 %v1416, 7
        %v1418 = vsub.s32 %v1415, %v1417
        %v1419 = vrot.slane %v1405, %v1418
        %v1420 = vcombine.high %v1412, %v1412
        %v1421 = vcombine.high %v1419, %v1419
        %v1422 = vlaneseq
        %v1423 = vshrl.u32 %v1422, 7
        %v1424 = vsub.s32 0, %v1423
        %v1425 = vrot.slane %v1412, %v1424
        %v1426 = vlaneseq
        %v1427 = vshrl.u32 %v1426, 7
        %v1428 = vsub.s32 0, %v1427
        %v1429 = vrot.slane %v1419, %v1428
        %v1430 = vlaneseq
        %v1431 = vshrl.u32 %v1430, 7
        %v1432 = vsub.s32 0, %v1431
        %v1433 = vrot.slane %v1420, %v1432
        %v1434 = vlaneseq
        %v1435 = vshrl.u32 %v1434, 7
        %v1436 = vsub.s32 0, %v1435
        %v1437 = vrot.slane %v1421, %v1436
        %v1442 = vmul.f32 %v1425, %v1392
        %v1443 = vmul.f32 %v1425, %v1393
        %v1444 = vmul.f32 %v1429, %v1392
        %v1445 = vmul.f32 %v1429, %v1393
        %v1446 = vmul.f32 %v1433, %v1392
        %v1447 = vmul.f32 %v1433, %v1393
        %v1448 = vmul.f32 %v1437, %v1392
        %v1449 = vmul.f32 %v1437, %v1393
        %v1450 = vadd.f32 %v1307, %v1442
        %v1451 = vadd.f32 %v1308, %v1443
        %v1452 = vadd.f32 %v1309, %v1444
        %v1453 = vadd.f32 %v1310, %v1445
        %v1454 = vadd.f32 %v1311, %v1446
        %v1455 = vadd.f32 %v1312, %v1447
        %v1456 = vadd.f32 %v1313, %v1448
        %v1457 = vadd.f32 %v1314, %v1449
        %v1458 = vlaneseq
        %v1459 = vshrl.u32 %v1458, 7
        %v1460 = vsub.s32 0, %v1459
        %v1461 = vrot.slane %v1387, %v1460
        %1463 = vbcast.lane.b32.xlu0 %v1461, 256
        %v1464 = vpop.permute.xlu0 %1463
        %s1466 = sor.u32 256, 8
        %1467 = vbcast.lane.b32.xlu0 %v1461, %s1466
        %v1468 = vpop.permute.xlu0 %1467
        %v1469 = vlaneseq
        %v1470 = vshrl.u32 %v1469, 7
        %v1471 = vsub.s32 1, %v1470
        %v1472 = vrot.slane %v1387, %v1471
        %1474 = vbcast.lane.b32.xlu0 %v1472, 256
        %v1475 = vpop.permute.xlu0 %1474
        %s1477 = sor.u32 256, 8
        %1478 = vbcast.lane.b32.xlu0 %v1472, %s1477
        %v1479 = vpop.permute.xlu0 %1478
        %v1480 = vlaneseq
        %v1481 = vshrl.u32 %v1480, 7
        %v1482 = vsub.s32 2, %v1481
        %v1483 = vrot.slane %v1387, %v1482
        %1485 = vbcast.lane.b32.xlu0 %v1483, 256
        %v1486 = vpop.permute.xlu0 %1485
        %s1488 = sor.u32 256, 8
        %1489 = vbcast.lane.b32.xlu0 %v1483, %s1488
        %v1490 = vpop.permute.xlu0 %1489
        %v1491 = vlaneseq
        %v1492 = vshrl.u32 %v1491, 7
        %v1493 = vsub.s32 3, %v1492
        %v1494 = vrot.slane %v1387, %v1493
        %1496 = vbcast.lane.b32.xlu0 %v1494, 256
        %v1497 = vpop.permute.xlu0 %1496
        %s1499 = sor.u32 256, 8
        %1500 = vbcast.lane.b32.xlu0 %v1494, %s1499
        %v1501 = vpop.permute.xlu0 %1500
        %v1502 = vmul.f32 %v1464, %v1396
        %v1503 = vmul.f32 %v1468, %v1396
        %v1504 = vmul.f32 %v1475, %v1396
        %v1505 = vmul.f32 %v1479, %v1396
        %v1506 = vmul.f32 %v1486, %v1396
        %v1507 = vmul.f32 %v1490, %v1396
        %v1508 = vmul.f32 %v1497, %v1396
        %v1509 = vmul.f32 %v1501, %v1396
        %v1510 = vadd.f32 %v1367, %v1502
        %v1511 = vadd.f32 %v1368, %v1503
        %v1512 = vadd.f32 %v1369, %v1504
        %v1513 = vadd.f32 %v1370, %v1505
        %v1514 = vadd.f32 %v1371, %v1506
        %v1515 = vadd.f32 %v1372, %v1507
        %v1516 = vadd.f32 %v1373, %v1508
        %v1517 = vadd.f32 %v1374, %v1509
        %vm1518 = vcmp.gt.f32.partialorder %v1387, 0.0
        %v1519 = vsel %vm1518, -1e+30, %v1376
        %v1520 = vsel %vm830, %v1519, -inf
        %1521 = vmax.xlane.f32.xlu0 %v1520
        %v1522 = vpop.xlane.xlu0 %1521
        %vm1523 = vcmp.ge.f32.partialorder %v1519, %v1522
        %v1524 = vsel %vm1523, %v773, 16.0
        %v1525 = vsel %vm830, %v1524, inf
        %1526 = vmin.xlane.f32.xlu0 %v1525
        %v1527 = vpop.xlane.xlu0 %1526
        %vm1528 = vcmp.eq.f32.partialorder %v773, %v1527
        %v1529 = vsel %vm1528, 1, 0
        %v1530 = vcvt.s32.f32 %v1529
        %vm1531 = vcmp.eq.s32.totalorder %v775, 4
        %vm1532 = vcmp.eq.s32.totalorder %v776, 4
        %v1533 = vsel %vm1531, 1, 0
        %v1534 = vsel %vm1532, 1, 0
        %v1535 = vcvt.s32.f32 %v1533
        %v1536 = vcvt.s32.f32 %v1534
        %vm1537 = vcmp.eq.s32.totalorder %v772, 4
        %v1538 = vsel %vm1537, 1, 0
        %v1539 = vcvt.s32.f32 %v1538
        %v1542 = vunpack.c.l.s4 1966171168
        %v1543 = vunpack.c.0.s8 %v1542
        %v1544 = vlaneseq
        %v1545 = vshrl.u32 %v1544, 7
        %v1546 = vsub.s32 %v1543, %v1545
        %v1547 = vrot.slane %v1530, %v1546
        %v1548 = vcombine.high %v1547, %v1547
        %v1550 = vunpack.c.l.s4 1966171168
        %v1551 = vunpack.c.0.s8 %v1550
        %v1552 = vlaneseq
        %v1553 = vshrl.u32 %v1552, 7
        %v1554 = vsub.s32 %v1551, %v1553
        %v1555 = vrot.slane %v1547, %v1554
        %v1557 = vunpack.c.l.s4 1966171168
        %v1558 = vunpack.c.0.s8 %v1557
        %v1559 = vlaneseq
        %v1560 = vshrl.u32 %v1559, 7
        %v1561 = vsub.s32 %v1558, %v1560
        %v1562 = vrot.slane %v1548, %v1561
        %v1563 = vcombine.high %v1555, %v1555
        %v1564 = vcombine.high %v1562, %v1562
        %v1565 = vlaneseq
        %v1566 = vshrl.u32 %v1565, 7
        %v1567 = vsub.s32 0, %v1566
        %v1568 = vrot.slane %v1555, %v1567
        %v1569 = vlaneseq
        %v1570 = vshrl.u32 %v1569, 7
        %v1571 = vsub.s32 0, %v1570
        %v1572 = vrot.slane %v1562, %v1571
        %v1573 = vlaneseq
        %v1574 = vshrl.u32 %v1573, 7
        %v1575 = vsub.s32 0, %v1574
        %v1576 = vrot.slane %v1563, %v1575
        %v1577 = vlaneseq
        %v1578 = vshrl.u32 %v1577, 7
        %v1579 = vsub.s32 0, %v1578
        %v1580 = vrot.slane %v1564, %v1579
        %v1585 = vmul.f32 %v1568, %v1535
        %v1586 = vmul.f32 %v1568, %v1536
        %v1587 = vmul.f32 %v1572, %v1535
        %v1588 = vmul.f32 %v1572, %v1536
        %v1589 = vmul.f32 %v1576, %v1535
        %v1590 = vmul.f32 %v1576, %v1536
        %v1591 = vmul.f32 %v1580, %v1535
        %v1592 = vmul.f32 %v1580, %v1536
        %v1593 = vadd.f32 %v1450, %v1585
        %v1594 = vadd.f32 %v1451, %v1586
        %v1595 = vadd.f32 %v1452, %v1587
        %v1596 = vadd.f32 %v1453, %v1588
        %v1597 = vadd.f32 %v1454, %v1589
        %v1598 = vadd.f32 %v1455, %v1590
        %v1599 = vadd.f32 %v1456, %v1591
        %v1600 = vadd.f32 %v1457, %v1592
        %v1601 = vlaneseq
        %v1602 = vshrl.u32 %v1601, 7
        %v1603 = vsub.s32 0, %v1602
        %v1604 = vrot.slane %v1530, %v1603
        %1606 = vbcast.lane.b32.xlu0 %v1604, 256
        %v1607 = vpop.permute.xlu0 %1606
        %s1609 = sor.u32 256, 8
        %1610 = vbcast.lane.b32.xlu0 %v1604, %s1609
        %v1611 = vpop.permute.xlu0 %1610
        %v1612 = vlaneseq
        %v1613 = vshrl.u32 %v1612, 7
        %v1614 = vsub.s32 1, %v1613
        %v1615 = vrot.slane %v1530, %v1614
        %1617 = vbcast.lane.b32.xlu0 %v1615, 256
        %v1618 = vpop.permute.xlu0 %1617
        %s1620 = sor.u32 256, 8
        %1621 = vbcast.lane.b32.xlu0 %v1615, %s1620
        %v1622 = vpop.permute.xlu0 %1621
        %v1623 = vlaneseq
        %v1624 = vshrl.u32 %v1623, 7
        %v1625 = vsub.s32 2, %v1624
        %v1626 = vrot.slane %v1530, %v1625
        %1628 = vbcast.lane.b32.xlu0 %v1626, 256
        %v1629 = vpop.permute.xlu0 %1628
        %s1631 = sor.u32 256, 8
        %1632 = vbcast.lane.b32.xlu0 %v1626, %s1631
        %v1633 = vpop.permute.xlu0 %1632
        %v1634 = vlaneseq
        %v1635 = vshrl.u32 %v1634, 7
        %v1636 = vsub.s32 3, %v1635
        %v1637 = vrot.slane %v1530, %v1636
        %1639 = vbcast.lane.b32.xlu0 %v1637, 256
        %v1640 = vpop.permute.xlu0 %1639
        %s1642 = sor.u32 256, 8
        %1643 = vbcast.lane.b32.xlu0 %v1637, %s1642
        %v1644 = vpop.permute.xlu0 %1643
        %v1645 = vmul.f32 %v1607, %v1539
        %v1646 = vmul.f32 %v1611, %v1539
        %v1647 = vmul.f32 %v1618, %v1539
        %v1648 = vmul.f32 %v1622, %v1539
        %v1649 = vmul.f32 %v1629, %v1539
        %v1650 = vmul.f32 %v1633, %v1539
        %v1651 = vmul.f32 %v1640, %v1539
        %v1652 = vmul.f32 %v1644, %v1539
        %v1653 = vadd.f32 %v1510, %v1645
        %v1654 = vadd.f32 %v1511, %v1646
        %v1655 = vadd.f32 %v1512, %v1647
        %v1656 = vadd.f32 %v1513, %v1648
        %v1657 = vadd.f32 %v1514, %v1649
        %v1658 = vadd.f32 %v1515, %v1650
        %v1659 = vadd.f32 %v1516, %v1651
        %v1660 = vadd.f32 %v1517, %v1652
        %vm1661 = vcmp.gt.f32.partialorder %v1530, 0.0
        %v1662 = vsel %vm1661, -1e+30, %v1519
        %v1663 = vsel %vm830, %v1662, -inf
        %1664 = vmax.xlane.f32.xlu0 %v1663
        %v1665 = vpop.xlane.xlu0 %1664
        %vm1666 = vcmp.ge.f32.partialorder %v1662, %v1665
        %v1667 = vsel %vm1666, %v773, 16.0
        %v1668 = vsel %vm830, %v1667, inf
        %1669 = vmin.xlane.f32.xlu0 %v1668
        %v1670 = vpop.xlane.xlu0 %1669
        %vm1671 = vcmp.eq.f32.partialorder %v773, %v1670
        %v1672 = vsel %vm1671, 1, 0
        %v1673 = vcvt.s32.f32 %v1672
        %vm1674 = vcmp.eq.s32.totalorder %v775, 5
        %vm1675 = vcmp.eq.s32.totalorder %v776, 5
        %v1676 = vsel %vm1674, 1, 0
        %v1677 = vsel %vm1675, 1, 0
        %v1678 = vcvt.s32.f32 %v1676
        %v1679 = vcvt.s32.f32 %v1677
        %vm1680 = vcmp.eq.s32.totalorder %v772, 5
        %v1681 = vsel %vm1680, 1, 0
        %v1682 = vcvt.s32.f32 %v1681
        %v1685 = vunpack.c.l.s4 1966171168
        %v1686 = vunpack.c.0.s8 %v1685
        %v1687 = vlaneseq
        %v1688 = vshrl.u32 %v1687, 7
        %v1689 = vsub.s32 %v1686, %v1688
        %v1690 = vrot.slane %v1673, %v1689
        %v1691 = vcombine.high %v1690, %v1690
        %v1693 = vunpack.c.l.s4 1966171168
        %v1694 = vunpack.c.0.s8 %v1693
        %v1695 = vlaneseq
        %v1696 = vshrl.u32 %v1695, 7
        %v1697 = vsub.s32 %v1694, %v1696
        %v1698 = vrot.slane %v1690, %v1697
        %v1700 = vunpack.c.l.s4 1966171168
        %v1701 = vunpack.c.0.s8 %v1700
        %v1702 = vlaneseq
        %v1703 = vshrl.u32 %v1702, 7
        %v1704 = vsub.s32 %v1701, %v1703
        %v1705 = vrot.slane %v1691, %v1704
        %v1706 = vcombine.high %v1698, %v1698
        %v1707 = vcombine.high %v1705, %v1705
        %v1708 = vlaneseq
        %v1709 = vshrl.u32 %v1708, 7
        %v1710 = vsub.s32 0, %v1709
        %v1711 = vrot.slane %v1698, %v1710
        %v1712 = vlaneseq
        %v1713 = vshrl.u32 %v1712, 7
        %v1714 = vsub.s32 0, %v1713
        %v1715 = vrot.slane %v1705, %v1714
        %v1716 = vlaneseq
        %v1717 = vshrl.u32 %v1716, 7
        %v1718 = vsub.s32 0, %v1717
        %v1719 = vrot.slane %v1706, %v1718
        %v1720 = vlaneseq
        %v1721 = vshrl.u32 %v1720, 7
        %v1722 = vsub.s32 0, %v1721
        %v1723 = vrot.slane %v1707, %v1722
        %v1728 = vmul.f32 %v1711, %v1678
        %v1729 = vmul.f32 %v1711, %v1679
        %v1730 = vmul.f32 %v1715, %v1678
        %v1731 = vmul.f32 %v1715, %v1679
        %v1732 = vmul.f32 %v1719, %v1678
        %v1733 = vmul.f32 %v1719, %v1679
        %v1734 = vmul.f32 %v1723, %v1678
        %v1735 = vmul.f32 %v1723, %v1679
        %v1736 = vadd.f32 %v1593, %v1728
        %v1737 = vadd.f32 %v1594, %v1729
        %v1738 = vadd.f32 %v1595, %v1730
        %v1739 = vadd.f32 %v1596, %v1731
        %v1740 = vadd.f32 %v1597, %v1732
        %v1741 = vadd.f32 %v1598, %v1733
        %v1742 = vadd.f32 %v1599, %v1734
        %v1743 = vadd.f32 %v1600, %v1735
        %v1744 = vlaneseq
        %v1745 = vshrl.u32 %v1744, 7
        %v1746 = vsub.s32 0, %v1745
        %v1747 = vrot.slane %v1673, %v1746
        %1749 = vbcast.lane.b32.xlu0 %v1747, 256
        %v1750 = vpop.permute.xlu0 %1749
        %s1752 = sor.u32 256, 8
        %1753 = vbcast.lane.b32.xlu0 %v1747, %s1752
        %v1754 = vpop.permute.xlu0 %1753
        %v1755 = vlaneseq
        %v1756 = vshrl.u32 %v1755, 7
        %v1757 = vsub.s32 1, %v1756
        %v1758 = vrot.slane %v1673, %v1757
        %1760 = vbcast.lane.b32.xlu0 %v1758, 256
        %v1761 = vpop.permute.xlu0 %1760
        %s1763 = sor.u32 256, 8
        %1764 = vbcast.lane.b32.xlu0 %v1758, %s1763
        %v1765 = vpop.permute.xlu0 %1764
        %v1766 = vlaneseq
        %v1767 = vshrl.u32 %v1766, 7
        %v1768 = vsub.s32 2, %v1767
        %v1769 = vrot.slane %v1673, %v1768
        %1771 = vbcast.lane.b32.xlu0 %v1769, 256
        %v1772 = vpop.permute.xlu0 %1771
        %s1774 = sor.u32 256, 8
        %1775 = vbcast.lane.b32.xlu0 %v1769, %s1774
        %v1776 = vpop.permute.xlu0 %1775
        %v1777 = vlaneseq
        %v1778 = vshrl.u32 %v1777, 7
        %v1779 = vsub.s32 3, %v1778
        %v1780 = vrot.slane %v1673, %v1779
        %1782 = vbcast.lane.b32.xlu0 %v1780, 256
        %v1783 = vpop.permute.xlu0 %1782
        %s1785 = sor.u32 256, 8
        %1786 = vbcast.lane.b32.xlu0 %v1780, %s1785
        %v1787 = vpop.permute.xlu0 %1786
        %v1788 = vmul.f32 %v1750, %v1682
        %v1789 = vmul.f32 %v1754, %v1682
        %v1790 = vmul.f32 %v1761, %v1682
        %v1791 = vmul.f32 %v1765, %v1682
        %v1792 = vmul.f32 %v1772, %v1682
        %v1793 = vmul.f32 %v1776, %v1682
        %v1794 = vmul.f32 %v1783, %v1682
        %v1795 = vmul.f32 %v1787, %v1682
        %v1796 = vadd.f32 %v1653, %v1788
        %v1797 = vadd.f32 %v1654, %v1789
        %v1798 = vadd.f32 %v1655, %v1790
        %v1799 = vadd.f32 %v1656, %v1791
        %v1800 = vadd.f32 %v1657, %v1792
        %v1801 = vadd.f32 %v1658, %v1793
        %v1802 = vadd.f32 %v1659, %v1794
        %v1803 = vadd.f32 %v1660, %v1795
        %vm1804 = vcmp.gt.f32.partialorder %v1673, 0.0
        %v1805 = vsel %vm1804, -1e+30, %v1662
        %v1806 = vsel %vm830, %v1805, -inf
        %1807 = vmax.xlane.f32.xlu0 %v1806
        %v1808 = vpop.xlane.xlu0 %1807
        %vm1809 = vcmp.ge.f32.partialorder %v1805, %v1808
        %v1810 = vsel %vm1809, %v773, 16.0
        %v1811 = vsel %vm830, %v1810, inf
        %1812 = vmin.xlane.f32.xlu0 %v1811
        %v1813 = vpop.xlane.xlu0 %1812
        %vm1814 = vcmp.eq.f32.partialorder %v773, %v1813
        %v1815 = vsel %vm1814, 1, 0
        %v1816 = vcvt.s32.f32 %v1815
        %vm1817 = vcmp.eq.s32.totalorder %v775, 6
        %vm1818 = vcmp.eq.s32.totalorder %v776, 6
        %v1819 = vsel %vm1817, 1, 0
        %v1820 = vsel %vm1818, 1, 0
        %v1821 = vcvt.s32.f32 %v1819
        %v1822 = vcvt.s32.f32 %v1820
        %vm1823 = vcmp.eq.s32.totalorder %v772, 6
        %v1824 = vsel %vm1823, 1, 0
        %v1825 = vcvt.s32.f32 %v1824
        %v1828 = vunpack.c.l.s4 1966171168
        %v1829 = vunpack.c.0.s8 %v1828
        %v1830 = vlaneseq
        %v1831 = vshrl.u32 %v1830, 7
        %v1832 = vsub.s32 %v1829, %v1831
        %v1833 = vrot.slane %v1816, %v1832
        %v1834 = vcombine.high %v1833, %v1833
        %v1836 = vunpack.c.l.s4 1966171168
        %v1837 = vunpack.c.0.s8 %v1836
        %v1838 = vlaneseq
        %v1839 = vshrl.u32 %v1838, 7
        %v1840 = vsub.s32 %v1837, %v1839
        %v1841 = vrot.slane %v1833, %v1840
        %v1843 = vunpack.c.l.s4 1966171168
        %v1844 = vunpack.c.0.s8 %v1843
        %v1845 = vlaneseq
        %v1846 = vshrl.u32 %v1845, 7
        %v1847 = vsub.s32 %v1844, %v1846
        %v1848 = vrot.slane %v1834, %v1847
        %v1849 = vcombine.high %v1841, %v1841
        %v1850 = vcombine.high %v1848, %v1848
        %v1851 = vlaneseq
        %v1852 = vshrl.u32 %v1851, 7
        %v1853 = vsub.s32 0, %v1852
        %v1854 = vrot.slane %v1841, %v1853
        %v1855 = vlaneseq
        %v1856 = vshrl.u32 %v1855, 7
        %v1857 = vsub.s32 0, %v1856
        %v1858 = vrot.slane %v1848, %v1857
        %v1859 = vlaneseq
        %v1860 = vshrl.u32 %v1859, 7
        %v1861 = vsub.s32 0, %v1860
        %v1862 = vrot.slane %v1849, %v1861
        %v1863 = vlaneseq
        %v1864 = vshrl.u32 %v1863, 7
        %v1865 = vsub.s32 0, %v1864
        %v1866 = vrot.slane %v1850, %v1865
        %v1871 = vmul.f32 %v1854, %v1821
        %v1872 = vmul.f32 %v1854, %v1822
        %v1873 = vmul.f32 %v1858, %v1821
        %v1874 = vmul.f32 %v1858, %v1822
        %v1875 = vmul.f32 %v1862, %v1821
        %v1876 = vmul.f32 %v1862, %v1822
        %v1877 = vmul.f32 %v1866, %v1821
        %v1878 = vmul.f32 %v1866, %v1822
        %v1879 = vadd.f32 %v1736, %v1871
        %v1880 = vadd.f32 %v1737, %v1872
        %v1881 = vadd.f32 %v1738, %v1873
        %v1882 = vadd.f32 %v1739, %v1874
        %v1883 = vadd.f32 %v1740, %v1875
        %v1884 = vadd.f32 %v1741, %v1876
        %v1885 = vadd.f32 %v1742, %v1877
        %v1886 = vadd.f32 %v1743, %v1878
        %v1887 = vlaneseq
        %v1888 = vshrl.u32 %v1887, 7
        %v1889 = vsub.s32 0, %v1888
        %v1890 = vrot.slane %v1816, %v1889
        %1892 = vbcast.lane.b32.xlu0 %v1890, 256
        %v1893 = vpop.permute.xlu0 %1892
        %s1895 = sor.u32 256, 8
        %1896 = vbcast.lane.b32.xlu0 %v1890, %s1895
        %v1897 = vpop.permute.xlu0 %1896
        %v1898 = vlaneseq
        %v1899 = vshrl.u32 %v1898, 7
        %v1900 = vsub.s32 1, %v1899
        %v1901 = vrot.slane %v1816, %v1900
        %1903 = vbcast.lane.b32.xlu0 %v1901, 256
        %v1904 = vpop.permute.xlu0 %1903
        %s1906 = sor.u32 256, 8
        %1907 = vbcast.lane.b32.xlu0 %v1901, %s1906
        %v1908 = vpop.permute.xlu0 %1907
        %v1909 = vlaneseq
        %v1910 = vshrl.u32 %v1909, 7
        %v1911 = vsub.s32 2, %v1910
        %v1912 = vrot.slane %v1816, %v1911
        %1914 = vbcast.lane.b32.xlu0 %v1912, 256
        %v1915 = vpop.permute.xlu0 %1914
        %s1917 = sor.u32 256, 8
        %1918 = vbcast.lane.b32.xlu0 %v1912, %s1917
        %v1919 = vpop.permute.xlu0 %1918
        %v1920 = vlaneseq
        %v1921 = vshrl.u32 %v1920, 7
        %v1922 = vsub.s32 3, %v1921
        %v1923 = vrot.slane %v1816, %v1922
        %1925 = vbcast.lane.b32.xlu0 %v1923, 256
        %v1926 = vpop.permute.xlu0 %1925
        %s1928 = sor.u32 256, 8
        %1929 = vbcast.lane.b32.xlu0 %v1923, %s1928
        %v1930 = vpop.permute.xlu0 %1929
        %v1931 = vmul.f32 %v1893, %v1825
        %v1932 = vmul.f32 %v1897, %v1825
        %v1933 = vmul.f32 %v1904, %v1825
        %v1934 = vmul.f32 %v1908, %v1825
        %v1935 = vmul.f32 %v1915, %v1825
        %v1936 = vmul.f32 %v1919, %v1825
        %v1937 = vmul.f32 %v1926, %v1825
        %v1938 = vmul.f32 %v1930, %v1825
        %v1939 = vadd.f32 %v1796, %v1931
        %v1940 = vadd.f32 %v1797, %v1932
        %v1941 = vadd.f32 %v1798, %v1933
        %v1942 = vadd.f32 %v1799, %v1934
        %v1943 = vadd.f32 %v1800, %v1935
        %v1944 = vadd.f32 %v1801, %v1936
        %v1945 = vadd.f32 %v1802, %v1937
        %v1946 = vadd.f32 %v1803, %v1938
        %vm1947 = vcmp.gt.f32.partialorder %v1816, 0.0
        %v1948 = vsel %vm1947, -1e+30, %v1805
        %v1949 = vsel %vm830, %v1948, -inf
        %1950 = vmax.xlane.f32.xlu0 %v1949
        %v1951 = vpop.xlane.xlu0 %1950
        %vm1952 = vcmp.ge.f32.partialorder %v1948, %v1951
        %v1953 = vsel %vm1952, %v773, 16.0
        %v1954 = vsel %vm830, %v1953, inf
        %1955 = vmin.xlane.f32.xlu0 %v1954
        %v1956 = vpop.xlane.xlu0 %1955
        %vm1957 = vcmp.eq.f32.partialorder %v773, %v1956
        %v1958 = vsel %vm1957, 1, 0
        %v1959 = vcvt.s32.f32 %v1958
        %vm1960 = vcmp.eq.s32.totalorder %v775, 7
        %vm1961 = vcmp.eq.s32.totalorder %v776, 7
        %v1962 = vsel %vm1960, 1, 0
        %v1963 = vsel %vm1961, 1, 0
        %v1964 = vcvt.s32.f32 %v1962
        %v1965 = vcvt.s32.f32 %v1963
        %vm1966 = vcmp.eq.s32.totalorder %v772, 7
        %v1967 = vsel %vm1966, 1, 0
        %v1968 = vcvt.s32.f32 %v1967
        %v1971 = vunpack.c.l.s4 1966171168
        %v1972 = vunpack.c.0.s8 %v1971
        %v1973 = vlaneseq
        %v1974 = vshrl.u32 %v1973, 7
        %v1975 = vsub.s32 %v1972, %v1974
        %v1976 = vrot.slane %v1959, %v1975
        %v1977 = vcombine.high %v1976, %v1976
        %v1979 = vunpack.c.l.s4 1966171168
        %v1980 = vunpack.c.0.s8 %v1979
        %v1981 = vlaneseq
        %v1982 = vshrl.u32 %v1981, 7
        %v1983 = vsub.s32 %v1980, %v1982
        %v1984 = vrot.slane %v1976, %v1983
        %v1986 = vunpack.c.l.s4 1966171168
        %v1987 = vunpack.c.0.s8 %v1986
        %v1988 = vlaneseq
        %v1989 = vshrl.u32 %v1988, 7
        %v1990 = vsub.s32 %v1987, %v1989
        %v1991 = vrot.slane %v1977, %v1990
        %v1992 = vcombine.high %v1984, %v1984
        %v1993 = vcombine.high %v1991, %v1991
        %v1994 = vlaneseq
        %v1995 = vshrl.u32 %v1994, 7
        %v1996 = vsub.s32 0, %v1995
        %v1997 = vrot.slane %v1984, %v1996
        %v1998 = vlaneseq
        %v1999 = vshrl.u32 %v1998, 7
        %v2000 = vsub.s32 0, %v1999
        %v2001 = vrot.slane %v1991, %v2000
        %v2002 = vlaneseq
        %v2003 = vshrl.u32 %v2002, 7
        %v2004 = vsub.s32 0, %v2003
        %v2005 = vrot.slane %v1992, %v2004
        %v2006 = vlaneseq
        %v2007 = vshrl.u32 %v2006, 7
        %v2008 = vsub.s32 0, %v2007
        %v2009 = vrot.slane %v1993, %v2008
        %v2014 = vmul.f32 %v1997, %v1964
        %v2015 = vmul.f32 %v1997, %v1965
        %v2016 = vmul.f32 %v2001, %v1964
        %v2017 = vmul.f32 %v2001, %v1965
        %v2018 = vmul.f32 %v2005, %v1964
        %v2019 = vmul.f32 %v2005, %v1965
        %v2020 = vmul.f32 %v2009, %v1964
        %v2021 = vmul.f32 %v2009, %v1965
        %v2022 = vadd.f32 %v1879, %v2014
        %v2023 = vadd.f32 %v1880, %v2015
        %v2024 = vadd.f32 %v1881, %v2016
        %v2025 = vadd.f32 %v1882, %v2017
        %v2026 = vadd.f32 %v1883, %v2018
        %v2027 = vadd.f32 %v1884, %v2019
        %v2028 = vadd.f32 %v1885, %v2020
        %v2029 = vadd.f32 %v1886, %v2021
        %v2030 = vlaneseq
        %v2031 = vshrl.u32 %v2030, 7
        %v2032 = vsub.s32 0, %v2031
        %v2033 = vrot.slane %v1959, %v2032
        %2035 = vbcast.lane.b32.xlu0 %v2033, 256
        %v2036 = vpop.permute.xlu0 %2035
        %s2038 = sor.u32 256, 8
        %2039 = vbcast.lane.b32.xlu0 %v2033, %s2038
        %v2040 = vpop.permute.xlu0 %2039
        %v2041 = vlaneseq
        %v2042 = vshrl.u32 %v2041, 7
        %v2043 = vsub.s32 1, %v2042
        %v2044 = vrot.slane %v1959, %v2043
        %2046 = vbcast.lane.b32.xlu0 %v2044, 256
        %v2047 = vpop.permute.xlu0 %2046
        %s2049 = sor.u32 256, 8
        %2050 = vbcast.lane.b32.xlu0 %v2044, %s2049
        %v2051 = vpop.permute.xlu0 %2050
        %v2052 = vlaneseq
        %v2053 = vshrl.u32 %v2052, 7
        %v2054 = vsub.s32 2, %v2053
        %v2055 = vrot.slane %v1959, %v2054
        %2057 = vbcast.lane.b32.xlu0 %v2055, 256
        %v2058 = vpop.permute.xlu0 %2057
        %s2060 = sor.u32 256, 8
        %2061 = vbcast.lane.b32.xlu0 %v2055, %s2060
        %v2062 = vpop.permute.xlu0 %2061
        %v2063 = vlaneseq
        %v2064 = vshrl.u32 %v2063, 7
        %v2065 = vsub.s32 3, %v2064
        %v2066 = vrot.slane %v1959, %v2065
        %2068 = vbcast.lane.b32.xlu0 %v2066, 256
        %v2069 = vpop.permute.xlu0 %2068
        %s2071 = sor.u32 256, 8
        %2072 = vbcast.lane.b32.xlu0 %v2066, %s2071
        %v2073 = vpop.permute.xlu0 %2072
        %v2074 = vmul.f32 %v2036, %v1968
        %v2075 = vmul.f32 %v2040, %v1968
        %v2076 = vmul.f32 %v2047, %v1968
        %v2077 = vmul.f32 %v2051, %v1968
        %v2078 = vmul.f32 %v2058, %v1968
        %v2079 = vmul.f32 %v2062, %v1968
        %v2080 = vmul.f32 %v2069, %v1968
        %v2081 = vmul.f32 %v2073, %v1968
        %v2082 = vadd.f32 %v1939, %v2074
        %v2083 = vadd.f32 %v1940, %v2075
        %v2084 = vadd.f32 %v1941, %v2076
        %v2085 = vadd.f32 %v1942, %v2077
        %v2086 = vadd.f32 %v1943, %v2078
        %v2087 = vadd.f32 %v1944, %v2079
        %v2088 = vadd.f32 %v1945, %v2080
        %v2089 = vadd.f32 %v1946, %v2081
        %vm2090 = vcmp.gt.f32.partialorder %v1959, 0.0
        %v2091 = vsel %vm2090, -1e+30, %v1948
        %v2092 = vsel %vm830, %v2091, -inf
        %2093 = vmax.xlane.f32.xlu0 %v2092
        %v2094 = vpop.xlane.xlu0 %2093
        %vm2095 = vcmp.ge.f32.partialorder %v2091, %v2094
        %v2096 = vsel %vm2095, %v773, 16.0
        %v2097 = vsel %vm830, %v2096, inf
        %2098 = vmin.xlane.f32.xlu0 %v2097
        %v2099 = vpop.xlane.xlu0 %2098
        %vm2100 = vcmp.eq.f32.partialorder %v773, %v2099
        %v2101 = vsel %vm2100, 1, 0
        %v2102 = vcvt.s32.f32 %v2101
        %vm2103 = vcmp.eq.s32.totalorder %v775, 8
        %vm2104 = vcmp.eq.s32.totalorder %v776, 8
        %v2105 = vsel %vm2103, 1, 0
        %v2106 = vsel %vm2104, 1, 0
        %v2107 = vcvt.s32.f32 %v2105
        %v2108 = vcvt.s32.f32 %v2106
        %vm2109 = vcmp.eq.s32.totalorder %v772, 8
        %v2110 = vsel %vm2109, 1, 0
        %v2111 = vcvt.s32.f32 %v2110
        %v2114 = vunpack.c.l.s4 1966171168
        %v2115 = vunpack.c.0.s8 %v2114
        %v2116 = vlaneseq
        %v2117 = vshrl.u32 %v2116, 7
        %v2118 = vsub.s32 %v2115, %v2117
        %v2119 = vrot.slane %v2102, %v2118
        %v2120 = vcombine.high %v2119, %v2119
        %v2122 = vunpack.c.l.s4 1966171168
        %v2123 = vunpack.c.0.s8 %v2122
        %v2124 = vlaneseq
        %v2125 = vshrl.u32 %v2124, 7
        %v2126 = vsub.s32 %v2123, %v2125
        %v2127 = vrot.slane %v2119, %v2126
        %v2129 = vunpack.c.l.s4 1966171168
        %v2130 = vunpack.c.0.s8 %v2129
        %v2131 = vlaneseq
        %v2132 = vshrl.u32 %v2131, 7
        %v2133 = vsub.s32 %v2130, %v2132
        %v2134 = vrot.slane %v2120, %v2133
        %v2135 = vcombine.high %v2127, %v2127
        %v2136 = vcombine.high %v2134, %v2134
        %v2137 = vlaneseq
        %v2138 = vshrl.u32 %v2137, 7
        %v2139 = vsub.s32 0, %v2138
        %v2140 = vrot.slane %v2127, %v2139
        %v2141 = vlaneseq
        %v2142 = vshrl.u32 %v2141, 7
        %v2143 = vsub.s32 0, %v2142
        %v2144 = vrot.slane %v2134, %v2143
        %v2145 = vlaneseq
        %v2146 = vshrl.u32 %v2145, 7
        %v2147 = vsub.s32 0, %v2146
        %v2148 = vrot.slane %v2135, %v2147
        %v2149 = vlaneseq
        %v2150 = vshrl.u32 %v2149, 7
        %v2151 = vsub.s32 0, %v2150
        %v2152 = vrot.slane %v2136, %v2151
        %v2157 = vmul.f32 %v2140, %v2107
        %v2158 = vmul.f32 %v2140, %v2108
        %v2159 = vmul.f32 %v2144, %v2107
        %v2160 = vmul.f32 %v2144, %v2108
        %v2161 = vmul.f32 %v2148, %v2107
        %v2162 = vmul.f32 %v2148, %v2108
        %v2163 = vmul.f32 %v2152, %v2107
        %v2164 = vmul.f32 %v2152, %v2108
        %v2165 = vadd.f32 %v2022, %v2157
        %v2166 = vadd.f32 %v2023, %v2158
        %v2167 = vadd.f32 %v2024, %v2159
        %v2168 = vadd.f32 %v2025, %v2160
        %v2169 = vadd.f32 %v2026, %v2161
        %v2170 = vadd.f32 %v2027, %v2162
        %v2171 = vadd.f32 %v2028, %v2163
        %v2172 = vadd.f32 %v2029, %v2164
        %v2173 = vlaneseq
        %v2174 = vshrl.u32 %v2173, 7
        %v2175 = vsub.s32 0, %v2174
        %v2176 = vrot.slane %v2102, %v2175
        %2178 = vbcast.lane.b32.xlu0 %v2176, 256
        %v2179 = vpop.permute.xlu0 %2178
        %s2181 = sor.u32 256, 8
        %2182 = vbcast.lane.b32.xlu0 %v2176, %s2181
        %v2183 = vpop.permute.xlu0 %2182
        %v2184 = vlaneseq
        %v2185 = vshrl.u32 %v2184, 7
        %v2186 = vsub.s32 1, %v2185
        %v2187 = vrot.slane %v2102, %v2186
        %2189 = vbcast.lane.b32.xlu0 %v2187, 256
        %v2190 = vpop.permute.xlu0 %2189
        %s2192 = sor.u32 256, 8
        %2193 = vbcast.lane.b32.xlu0 %v2187, %s2192
        %v2194 = vpop.permute.xlu0 %2193
        %v2195 = vlaneseq
        %v2196 = vshrl.u32 %v2195, 7
        %v2197 = vsub.s32 2, %v2196
        %v2198 = vrot.slane %v2102, %v2197
        %2200 = vbcast.lane.b32.xlu0 %v2198, 256
        %v2201 = vpop.permute.xlu0 %2200
        %s2203 = sor.u32 256, 8
        %2204 = vbcast.lane.b32.xlu0 %v2198, %s2203
        %v2205 = vpop.permute.xlu0 %2204
        %v2206 = vlaneseq
        %v2207 = vshrl.u32 %v2206, 7
        %v2208 = vsub.s32 3, %v2207
        %v2209 = vrot.slane %v2102, %v2208
        %2211 = vbcast.lane.b32.xlu0 %v2209, 256
        %v2212 = vpop.permute.xlu0 %2211
        %s2214 = sor.u32 256, 8
        %2215 = vbcast.lane.b32.xlu0 %v2209, %s2214
        %v2216 = vpop.permute.xlu0 %2215
        %v2217 = vmul.f32 %v2179, %v2111
        %v2218 = vmul.f32 %v2183, %v2111
        %v2219 = vmul.f32 %v2190, %v2111
        %v2220 = vmul.f32 %v2194, %v2111
        %v2221 = vmul.f32 %v2201, %v2111
        %v2222 = vmul.f32 %v2205, %v2111
        %v2223 = vmul.f32 %v2212, %v2111
        %v2224 = vmul.f32 %v2216, %v2111
        %v2225 = vadd.f32 %v2082, %v2217
        %v2226 = vadd.f32 %v2083, %v2218
        %v2227 = vadd.f32 %v2084, %v2219
        %v2228 = vadd.f32 %v2085, %v2220
        %v2229 = vadd.f32 %v2086, %v2221
        %v2230 = vadd.f32 %v2087, %v2222
        %v2231 = vadd.f32 %v2088, %v2223
        %v2232 = vadd.f32 %v2089, %v2224
        %vm2233 = vcmp.gt.f32.partialorder %v2102, 0.0
        %v2234 = vsel %vm2233, -1e+30, %v2091
        %v2235 = vsel %vm830, %v2234, -inf
        %2236 = vmax.xlane.f32.xlu0 %v2235
        %v2237 = vpop.xlane.xlu0 %2236
        %vm2238 = vcmp.ge.f32.partialorder %v2234, %v2237
        %v2239 = vsel %vm2238, %v773, 16.0
        %v2240 = vsel %vm830, %v2239, inf
        %2241 = vmin.xlane.f32.xlu0 %v2240
        %v2242 = vpop.xlane.xlu0 %2241
        %vm2243 = vcmp.eq.f32.partialorder %v773, %v2242
        %v2244 = vsel %vm2243, 1, 0
        %v2245 = vcvt.s32.f32 %v2244
        %vm2246 = vcmp.eq.s32.totalorder %v775, 9
        %vm2247 = vcmp.eq.s32.totalorder %v776, 9
        %v2248 = vsel %vm2246, 1, 0
        %v2249 = vsel %vm2247, 1, 0
        %v2250 = vcvt.s32.f32 %v2248
        %v2251 = vcvt.s32.f32 %v2249
        %vm2252 = vcmp.eq.s32.totalorder %v772, 9
        %v2253 = vsel %vm2252, 1, 0
        %v2254 = vcvt.s32.f32 %v2253
        %v2257 = vunpack.c.l.s4 1966171168
        %v2258 = vunpack.c.0.s8 %v2257
        %v2259 = vlaneseq
        %v2260 = vshrl.u32 %v2259, 7
        %v2261 = vsub.s32 %v2258, %v2260
        %v2262 = vrot.slane %v2245, %v2261
        %v2263 = vcombine.high %v2262, %v2262
        %v2265 = vunpack.c.l.s4 1966171168
        %v2266 = vunpack.c.0.s8 %v2265
        %v2267 = vlaneseq
        %v2268 = vshrl.u32 %v2267, 7
        %v2269 = vsub.s32 %v2266, %v2268
        %v2270 = vrot.slane %v2262, %v2269
        %v2272 = vunpack.c.l.s4 1966171168
        %v2273 = vunpack.c.0.s8 %v2272
        %v2274 = vlaneseq
        %v2275 = vshrl.u32 %v2274, 7
        %v2276 = vsub.s32 %v2273, %v2275
        %v2277 = vrot.slane %v2263, %v2276
        %v2278 = vcombine.high %v2270, %v2270
        %v2279 = vcombine.high %v2277, %v2277
        %v2280 = vlaneseq
        %v2281 = vshrl.u32 %v2280, 7
        %v2282 = vsub.s32 0, %v2281
        %v2283 = vrot.slane %v2270, %v2282
        %v2284 = vlaneseq
        %v2285 = vshrl.u32 %v2284, 7
        %v2286 = vsub.s32 0, %v2285
        %v2287 = vrot.slane %v2277, %v2286
        %v2288 = vlaneseq
        %v2289 = vshrl.u32 %v2288, 7
        %v2290 = vsub.s32 0, %v2289
        %v2291 = vrot.slane %v2278, %v2290
        %v2292 = vlaneseq
        %v2293 = vshrl.u32 %v2292, 7
        %v2294 = vsub.s32 0, %v2293
        %v2295 = vrot.slane %v2279, %v2294
        %v2300 = vmul.f32 %v2283, %v2250
        %v2301 = vmul.f32 %v2283, %v2251
        %v2302 = vmul.f32 %v2287, %v2250
        %v2303 = vmul.f32 %v2287, %v2251
        %v2304 = vmul.f32 %v2291, %v2250
        %v2305 = vmul.f32 %v2291, %v2251
        %v2306 = vmul.f32 %v2295, %v2250
        %v2307 = vmul.f32 %v2295, %v2251
        %v2308 = vadd.f32 %v2165, %v2300
        %v2309 = vadd.f32 %v2166, %v2301
        %v2310 = vadd.f32 %v2167, %v2302
        %v2311 = vadd.f32 %v2168, %v2303
        %v2312 = vadd.f32 %v2169, %v2304
        %v2313 = vadd.f32 %v2170, %v2305
        %v2314 = vadd.f32 %v2171, %v2306
        %v2315 = vadd.f32 %v2172, %v2307
        %v2316 = vlaneseq
        %v2317 = vshrl.u32 %v2316, 7
        %v2318 = vsub.s32 0, %v2317
        %v2319 = vrot.slane %v2245, %v2318
        %2321 = vbcast.lane.b32.xlu0 %v2319, 256
        %v2322 = vpop.permute.xlu0 %2321
        %s2324 = sor.u32 256, 8
        %2325 = vbcast.lane.b32.xlu0 %v2319, %s2324
        %v2326 = vpop.permute.xlu0 %2325
        %v2327 = vlaneseq
        %v2328 = vshrl.u32 %v2327, 7
        %v2329 = vsub.s32 1, %v2328
        %v2330 = vrot.slane %v2245, %v2329
        %2332 = vbcast.lane.b32.xlu0 %v2330, 256
        %v2333 = vpop.permute.xlu0 %2332
        %s2335 = sor.u32 256, 8
        %2336 = vbcast.lane.b32.xlu0 %v2330, %s2335
        %v2337 = vpop.permute.xlu0 %2336
        %v2338 = vlaneseq
        %v2339 = vshrl.u32 %v2338, 7
        %v2340 = vsub.s32 2, %v2339
        %v2341 = vrot.slane %v2245, %v2340
        %2343 = vbcast.lane.b32.xlu0 %v2341, 256
        %v2344 = vpop.permute.xlu0 %2343
        %s2346 = sor.u32 256, 8
        %2347 = vbcast.lane.b32.xlu0 %v2341, %s2346
        %v2348 = vpop.permute.xlu0 %2347
        %v2349 = vlaneseq
        %v2350 = vshrl.u32 %v2349, 7
        %v2351 = vsub.s32 3, %v2350
        %v2352 = vrot.slane %v2245, %v2351
        %2354 = vbcast.lane.b32.xlu0 %v2352, 256
        %v2355 = vpop.permute.xlu0 %2354
        %s2357 = sor.u32 256, 8
        %2358 = vbcast.lane.b32.xlu0 %v2352, %s2357
        %v2359 = vpop.permute.xlu0 %2358
        %v2360 = vmul.f32 %v2322, %v2254
        %v2361 = vmul.f32 %v2326, %v2254
        %v2362 = vmul.f32 %v2333, %v2254
        %v2363 = vmul.f32 %v2337, %v2254
        %v2364 = vmul.f32 %v2344, %v2254
        %v2365 = vmul.f32 %v2348, %v2254
        %v2366 = vmul.f32 %v2355, %v2254
        %v2367 = vmul.f32 %v2359, %v2254
        %v2368 = vadd.f32 %v2225, %v2360
        %v2369 = vadd.f32 %v2226, %v2361
        %v2370 = vadd.f32 %v2227, %v2362
        %v2371 = vadd.f32 %v2228, %v2363
        %v2372 = vadd.f32 %v2229, %v2364
        %v2373 = vadd.f32 %v2230, %v2365
        %v2374 = vadd.f32 %v2231, %v2366
        %v2375 = vadd.f32 %v2232, %v2367
        %vm2376 = vcmp.gt.f32.partialorder %v2245, 0.0
        %v2377 = vsel %vm2376, -1e+30, %v2234
        %v2378 = vsel %vm830, %v2377, -inf
        %2379 = vmax.xlane.f32.xlu0 %v2378
        %v2380 = vpop.xlane.xlu0 %2379
        %vm2381 = vcmp.ge.f32.partialorder %v2377, %v2380
        %v2382 = vsel %vm2381, %v773, 16.0
        %v2383 = vsel %vm830, %v2382, inf
        %2384 = vmin.xlane.f32.xlu0 %v2383
        %v2385 = vpop.xlane.xlu0 %2384
        %vm2386 = vcmp.eq.f32.partialorder %v773, %v2385
        %v2387 = vsel %vm2386, 1, 0
        %v2388 = vcvt.s32.f32 %v2387
        %vm2389 = vcmp.eq.s32.totalorder %v775, 10
        %vm2390 = vcmp.eq.s32.totalorder %v776, 10
        %v2391 = vsel %vm2389, 1, 0
        %v2392 = vsel %vm2390, 1, 0
        %v2393 = vcvt.s32.f32 %v2391
        %v2394 = vcvt.s32.f32 %v2392
        %vm2395 = vcmp.eq.s32.totalorder %v772, 10
        %v2396 = vsel %vm2395, 1, 0
        %v2397 = vcvt.s32.f32 %v2396
        %v2400 = vunpack.c.l.s4 1966171168
        %v2401 = vunpack.c.0.s8 %v2400
        %v2402 = vlaneseq
        %v2403 = vshrl.u32 %v2402, 7
        %v2404 = vsub.s32 %v2401, %v2403
        %v2405 = vrot.slane %v2388, %v2404
        %v2406 = vcombine.high %v2405, %v2405
        %v2408 = vunpack.c.l.s4 1966171168
        %v2409 = vunpack.c.0.s8 %v2408
        %v2410 = vlaneseq
        %v2411 = vshrl.u32 %v2410, 7
        %v2412 = vsub.s32 %v2409, %v2411
        %v2413 = vrot.slane %v2405, %v2412
        %v2415 = vunpack.c.l.s4 1966171168
        %v2416 = vunpack.c.0.s8 %v2415
        %v2417 = vlaneseq
        %v2418 = vshrl.u32 %v2417, 7
        %v2419 = vsub.s32 %v2416, %v2418
        %v2420 = vrot.slane %v2406, %v2419
        %v2421 = vcombine.high %v2413, %v2413
        %v2422 = vcombine.high %v2420, %v2420
        %v2423 = vlaneseq
        %v2424 = vshrl.u32 %v2423, 7
        %v2425 = vsub.s32 0, %v2424
        %v2426 = vrot.slane %v2413, %v2425
        %v2427 = vlaneseq
        %v2428 = vshrl.u32 %v2427, 7
        %v2429 = vsub.s32 0, %v2428
        %v2430 = vrot.slane %v2420, %v2429
        %v2431 = vlaneseq
        %v2432 = vshrl.u32 %v2431, 7
        %v2433 = vsub.s32 0, %v2432
        %v2434 = vrot.slane %v2421, %v2433
        %v2435 = vlaneseq
        %v2436 = vshrl.u32 %v2435, 7
        %v2437 = vsub.s32 0, %v2436
        %v2438 = vrot.slane %v2422, %v2437
        %v2443 = vmul.f32 %v2426, %v2393
        %v2444 = vmul.f32 %v2426, %v2394
        %v2445 = vmul.f32 %v2430, %v2393
        %v2446 = vmul.f32 %v2430, %v2394
        %v2447 = vmul.f32 %v2434, %v2393
        %v2448 = vmul.f32 %v2434, %v2394
        %v2449 = vmul.f32 %v2438, %v2393
        %v2450 = vmul.f32 %v2438, %v2394
        %v2451 = vadd.f32 %v2308, %v2443
        %v2452 = vadd.f32 %v2309, %v2444
        %v2453 = vadd.f32 %v2310, %v2445
        %v2454 = vadd.f32 %v2311, %v2446
        %v2455 = vadd.f32 %v2312, %v2447
        %v2456 = vadd.f32 %v2313, %v2448
        %v2457 = vadd.f32 %v2314, %v2449
        %v2458 = vadd.f32 %v2315, %v2450
        %v2459 = vlaneseq
        %v2460 = vshrl.u32 %v2459, 7
        %v2461 = vsub.s32 0, %v2460
        %v2462 = vrot.slane %v2388, %v2461
        %2464 = vbcast.lane.b32.xlu0 %v2462, 256
        %v2465 = vpop.permute.xlu0 %2464
        %s2467 = sor.u32 256, 8
        %2468 = vbcast.lane.b32.xlu0 %v2462, %s2467
        %v2469 = vpop.permute.xlu0 %2468
        %v2470 = vlaneseq
        %v2471 = vshrl.u32 %v2470, 7
        %v2472 = vsub.s32 1, %v2471
        %v2473 = vrot.slane %v2388, %v2472
        %2475 = vbcast.lane.b32.xlu0 %v2473, 256
        %v2476 = vpop.permute.xlu0 %2475
        %s2478 = sor.u32 256, 8
        %2479 = vbcast.lane.b32.xlu0 %v2473, %s2478
        %v2480 = vpop.permute.xlu0 %2479
        %v2481 = vlaneseq
        %v2482 = vshrl.u32 %v2481, 7
        %v2483 = vsub.s32 2, %v2482
        %v2484 = vrot.slane %v2388, %v2483
        %2486 = vbcast.lane.b32.xlu0 %v2484, 256
        %v2487 = vpop.permute.xlu0 %2486
        %s2489 = sor.u32 256, 8
        %2490 = vbcast.lane.b32.xlu0 %v2484, %s2489
        %v2491 = vpop.permute.xlu0 %2490
        %v2492 = vlaneseq
        %v2493 = vshrl.u32 %v2492, 7
        %v2494 = vsub.s32 3, %v2493
        %v2495 = vrot.slane %v2388, %v2494
        %2497 = vbcast.lane.b32.xlu0 %v2495, 256
        %v2498 = vpop.permute.xlu0 %2497
        %s2500 = sor.u32 256, 8
        %2501 = vbcast.lane.b32.xlu0 %v2495, %s2500
        %v2502 = vpop.permute.xlu0 %2501
        %v2503 = vmul.f32 %v2465, %v2397
        %v2504 = vmul.f32 %v2469, %v2397
        %v2505 = vmul.f32 %v2476, %v2397
        %v2506 = vmul.f32 %v2480, %v2397
        %v2507 = vmul.f32 %v2487, %v2397
        %v2508 = vmul.f32 %v2491, %v2397
        %v2509 = vmul.f32 %v2498, %v2397
        %v2510 = vmul.f32 %v2502, %v2397
        %v2511 = vadd.f32 %v2368, %v2503
        %v2512 = vadd.f32 %v2369, %v2504
        %v2513 = vadd.f32 %v2370, %v2505
        %v2514 = vadd.f32 %v2371, %v2506
        %v2515 = vadd.f32 %v2372, %v2507
        %v2516 = vadd.f32 %v2373, %v2508
        %v2517 = vadd.f32 %v2374, %v2509
        %v2518 = vadd.f32 %v2375, %v2510
        %vm2519 = vcmp.gt.f32.partialorder %v2388, 0.0
        %v2520 = vsel %vm2519, -1e+30, %v2377
        %v2521 = vsel %vm830, %v2520, -inf
        %2522 = vmax.xlane.f32.xlu0 %v2521
        %v2523 = vpop.xlane.xlu0 %2522
        %vm2524 = vcmp.ge.f32.partialorder %v2520, %v2523
        %v2525 = vsel %vm2524, %v773, 16.0
        %v2526 = vsel %vm830, %v2525, inf
        %2527 = vmin.xlane.f32.xlu0 %v2526
        %v2528 = vpop.xlane.xlu0 %2527
        %vm2529 = vcmp.eq.f32.partialorder %v773, %v2528
        %v2530 = vsel %vm2529, 1, 0
        %v2531 = vcvt.s32.f32 %v2530
        %vm2532 = vcmp.eq.s32.totalorder %v775, 11
        %vm2533 = vcmp.eq.s32.totalorder %v776, 11
        %v2534 = vsel %vm2532, 1, 0
        %v2535 = vsel %vm2533, 1, 0
        %v2536 = vcvt.s32.f32 %v2534
        %v2537 = vcvt.s32.f32 %v2535
        %vm2538 = vcmp.eq.s32.totalorder %v772, 11
        %v2539 = vsel %vm2538, 1, 0
        %v2540 = vcvt.s32.f32 %v2539
        %v2543 = vunpack.c.l.s4 1966171168
        %v2544 = vunpack.c.0.s8 %v2543
        %v2545 = vlaneseq
        %v2546 = vshrl.u32 %v2545, 7
        %v2547 = vsub.s32 %v2544, %v2546
        %v2548 = vrot.slane %v2531, %v2547
        %v2549 = vcombine.high %v2548, %v2548
        %v2551 = vunpack.c.l.s4 1966171168
        %v2552 = vunpack.c.0.s8 %v2551
        %v2553 = vlaneseq
        %v2554 = vshrl.u32 %v2553, 7
        %v2555 = vsub.s32 %v2552, %v2554
        %v2556 = vrot.slane %v2548, %v2555
        %v2558 = vunpack.c.l.s4 1966171168
        %v2559 = vunpack.c.0.s8 %v2558
        %v2560 = vlaneseq
        %v2561 = vshrl.u32 %v2560, 7
        %v2562 = vsub.s32 %v2559, %v2561
        %v2563 = vrot.slane %v2549, %v2562
        %v2564 = vcombine.high %v2556, %v2556
        %v2565 = vcombine.high %v2563, %v2563
        %v2566 = vlaneseq
        %v2567 = vshrl.u32 %v2566, 7
        %v2568 = vsub.s32 0, %v2567
        %v2569 = vrot.slane %v2556, %v2568
        %v2570 = vlaneseq
        %v2571 = vshrl.u32 %v2570, 7
        %v2572 = vsub.s32 0, %v2571
        %v2573 = vrot.slane %v2563, %v2572
        %v2574 = vlaneseq
        %v2575 = vshrl.u32 %v2574, 7
        %v2576 = vsub.s32 0, %v2575
        %v2577 = vrot.slane %v2564, %v2576
        %v2578 = vlaneseq
        %v2579 = vshrl.u32 %v2578, 7
        %v2580 = vsub.s32 0, %v2579
        %v2581 = vrot.slane %v2565, %v2580
        %v2586 = vmul.f32 %v2569, %v2536
        %v2587 = vmul.f32 %v2569, %v2537
        %v2588 = vmul.f32 %v2573, %v2536
        %v2589 = vmul.f32 %v2573, %v2537
        %v2590 = vmul.f32 %v2577, %v2536
        %v2591 = vmul.f32 %v2577, %v2537
        %v2592 = vmul.f32 %v2581, %v2536
        %v2593 = vmul.f32 %v2581, %v2537
        %v2594 = vadd.f32 %v2451, %v2586
        %v2595 = vadd.f32 %v2452, %v2587
        %v2596 = vadd.f32 %v2453, %v2588
        %v2597 = vadd.f32 %v2454, %v2589
        %v2598 = vadd.f32 %v2455, %v2590
        %v2599 = vadd.f32 %v2456, %v2591
        %v2600 = vadd.f32 %v2457, %v2592
        %v2601 = vadd.f32 %v2458, %v2593
        %v2602 = vlaneseq
        %v2603 = vshrl.u32 %v2602, 7
        %v2604 = vsub.s32 0, %v2603
        %v2605 = vrot.slane %v2531, %v2604
        %2607 = vbcast.lane.b32.xlu0 %v2605, 256
        %v2608 = vpop.permute.xlu0 %2607
        %s2610 = sor.u32 256, 8
        %2611 = vbcast.lane.b32.xlu0 %v2605, %s2610
        %v2612 = vpop.permute.xlu0 %2611
        %v2613 = vlaneseq
        %v2614 = vshrl.u32 %v2613, 7
        %v2615 = vsub.s32 1, %v2614
        %v2616 = vrot.slane %v2531, %v2615
        %2618 = vbcast.lane.b32.xlu0 %v2616, 256
        %v2619 = vpop.permute.xlu0 %2618
        %s2621 = sor.u32 256, 8
        %2622 = vbcast.lane.b32.xlu0 %v2616, %s2621
        %v2623 = vpop.permute.xlu0 %2622
        %v2624 = vlaneseq
        %v2625 = vshrl.u32 %v2624, 7
        %v2626 = vsub.s32 2, %v2625
        %v2627 = vrot.slane %v2531, %v2626
        %2629 = vbcast.lane.b32.xlu0 %v2627, 256
        %v2630 = vpop.permute.xlu0 %2629
        %s2632 = sor.u32 256, 8
        %2633 = vbcast.lane.b32.xlu0 %v2627, %s2632
        %v2634 = vpop.permute.xlu0 %2633
        %v2635 = vlaneseq
        %v2636 = vshrl.u32 %v2635, 7
        %v2637 = vsub.s32 3, %v2636
        %v2638 = vrot.slane %v2531, %v2637
        %2640 = vbcast.lane.b32.xlu0 %v2638, 256
        %v2641 = vpop.permute.xlu0 %2640
        %s2643 = sor.u32 256, 8
        %2644 = vbcast.lane.b32.xlu0 %v2638, %s2643
        %v2645 = vpop.permute.xlu0 %2644
        %v2646 = vmul.f32 %v2608, %v2540
        %v2647 = vmul.f32 %v2612, %v2540
        %v2648 = vmul.f32 %v2619, %v2540
        %v2649 = vmul.f32 %v2623, %v2540
        %v2650 = vmul.f32 %v2630, %v2540
        %v2651 = vmul.f32 %v2634, %v2540
        %v2652 = vmul.f32 %v2641, %v2540
        %v2653 = vmul.f32 %v2645, %v2540
        %v2654 = vadd.f32 %v2511, %v2646
        %v2655 = vadd.f32 %v2512, %v2647
        %v2656 = vadd.f32 %v2513, %v2648
        %v2657 = vadd.f32 %v2514, %v2649
        %v2658 = vadd.f32 %v2515, %v2650
        %v2659 = vadd.f32 %v2516, %v2651
        %v2660 = vadd.f32 %v2517, %v2652
        %v2661 = vadd.f32 %v2518, %v2653
        %vm2662 = vcmp.gt.f32.partialorder %v2531, 0.0
        %v2663 = vsel %vm2662, -1e+30, %v2520
        %v2664 = vsel %vm830, %v2663, -inf
        %2665 = vmax.xlane.f32.xlu0 %v2664
        %v2666 = vpop.xlane.xlu0 %2665
        %vm2667 = vcmp.ge.f32.partialorder %v2663, %v2666
        %v2668 = vsel %vm2667, %v773, 16.0
        %v2669 = vsel %vm830, %v2668, inf
        %2670 = vmin.xlane.f32.xlu0 %v2669
        %v2671 = vpop.xlane.xlu0 %2670
        %vm2672 = vcmp.eq.f32.partialorder %v773, %v2671
        %v2673 = vsel %vm2672, 1, 0
        %v2674 = vcvt.s32.f32 %v2673
        %vm2675 = vcmp.eq.s32.totalorder %v775, 12
        %vm2676 = vcmp.eq.s32.totalorder %v776, 12
        %v2677 = vsel %vm2675, 1, 0
        %v2678 = vsel %vm2676, 1, 0
        %v2679 = vcvt.s32.f32 %v2677
        %v2680 = vcvt.s32.f32 %v2678
        %vm2681 = vcmp.eq.s32.totalorder %v772, 12
        %v2682 = vsel %vm2681, 1, 0
        %v2683 = vcvt.s32.f32 %v2682
        %v2686 = vunpack.c.l.s4 1966171168
        %v2687 = vunpack.c.0.s8 %v2686
        %v2688 = vlaneseq
        %v2689 = vshrl.u32 %v2688, 7
        %v2690 = vsub.s32 %v2687, %v2689
        %v2691 = vrot.slane %v2674, %v2690
        %v2692 = vcombine.high %v2691, %v2691
        %v2694 = vunpack.c.l.s4 1966171168
        %v2695 = vunpack.c.0.s8 %v2694
        %v2696 = vlaneseq
        %v2697 = vshrl.u32 %v2696, 7
        %v2698 = vsub.s32 %v2695, %v2697
        %v2699 = vrot.slane %v2691, %v2698
        %v2701 = vunpack.c.l.s4 1966171168
        %v2702 = vunpack.c.0.s8 %v2701
        %v2703 = vlaneseq
        %v2704 = vshrl.u32 %v2703, 7
        %v2705 = vsub.s32 %v2702, %v2704
        %v2706 = vrot.slane %v2692, %v2705
        %v2707 = vcombine.high %v2699, %v2699
        %v2708 = vcombine.high %v2706, %v2706
        %v2709 = vlaneseq
        %v2710 = vshrl.u32 %v2709, 7
        %v2711 = vsub.s32 0, %v2710
        %v2712 = vrot.slane %v2699, %v2711
        %v2713 = vlaneseq
        %v2714 = vshrl.u32 %v2713, 7
        %v2715 = vsub.s32 0, %v2714
        %v2716 = vrot.slane %v2706, %v2715
        %v2717 = vlaneseq
        %v2718 = vshrl.u32 %v2717, 7
        %v2719 = vsub.s32 0, %v2718
        %v2720 = vrot.slane %v2707, %v2719
        %v2721 = vlaneseq
        %v2722 = vshrl.u32 %v2721, 7
        %v2723 = vsub.s32 0, %v2722
        %v2724 = vrot.slane %v2708, %v2723
        %v2729 = vmul.f32 %v2712, %v2679
        %v2730 = vmul.f32 %v2712, %v2680
        %v2731 = vmul.f32 %v2716, %v2679
        %v2732 = vmul.f32 %v2716, %v2680
        %v2733 = vmul.f32 %v2720, %v2679
        %v2734 = vmul.f32 %v2720, %v2680
        %v2735 = vmul.f32 %v2724, %v2679
        %v2736 = vmul.f32 %v2724, %v2680
        %v2737 = vadd.f32 %v2594, %v2729
        %v2738 = vadd.f32 %v2595, %v2730
        %v2739 = vadd.f32 %v2596, %v2731
        %v2740 = vadd.f32 %v2597, %v2732
        %v2741 = vadd.f32 %v2598, %v2733
        %v2742 = vadd.f32 %v2599, %v2734
        %v2743 = vadd.f32 %v2600, %v2735
        %v2744 = vadd.f32 %v2601, %v2736
        %v2745 = vlaneseq
        %v2746 = vshrl.u32 %v2745, 7
        %v2747 = vsub.s32 0, %v2746
        %v2748 = vrot.slane %v2674, %v2747
        %2750 = vbcast.lane.b32.xlu0 %v2748, 256
        %v2751 = vpop.permute.xlu0 %2750
        %s2753 = sor.u32 256, 8
        %2754 = vbcast.lane.b32.xlu0 %v2748, %s2753
        %v2755 = vpop.permute.xlu0 %2754
        %v2756 = vlaneseq
        %v2757 = vshrl.u32 %v2756, 7
        %v2758 = vsub.s32 1, %v2757
        %v2759 = vrot.slane %v2674, %v2758
        %2761 = vbcast.lane.b32.xlu0 %v2759, 256
        %v2762 = vpop.permute.xlu0 %2761
        %s2764 = sor.u32 256, 8
        %2765 = vbcast.lane.b32.xlu0 %v2759, %s2764
        %v2766 = vpop.permute.xlu0 %2765
        %v2767 = vlaneseq
        %v2768 = vshrl.u32 %v2767, 7
        %v2769 = vsub.s32 2, %v2768
        %v2770 = vrot.slane %v2674, %v2769
        %2772 = vbcast.lane.b32.xlu0 %v2770, 256
        %v2773 = vpop.permute.xlu0 %2772
        %s2775 = sor.u32 256, 8
        %2776 = vbcast.lane.b32.xlu0 %v2770, %s2775
        %v2777 = vpop.permute.xlu0 %2776
        %v2778 = vlaneseq
        %v2779 = vshrl.u32 %v2778, 7
        %v2780 = vsub.s32 3, %v2779
        %v2781 = vrot.slane %v2674, %v2780
        %2783 = vbcast.lane.b32.xlu0 %v2781, 256
        %v2784 = vpop.permute.xlu0 %2783
        %s2786 = sor.u32 256, 8
        %2787 = vbcast.lane.b32.xlu0 %v2781, %s2786
        %v2788 = vpop.permute.xlu0 %2787
        %v2789 = vmul.f32 %v2751, %v2683
        %v2790 = vmul.f32 %v2755, %v2683
        %v2791 = vmul.f32 %v2762, %v2683
        %v2792 = vmul.f32 %v2766, %v2683
        %v2793 = vmul.f32 %v2773, %v2683
        %v2794 = vmul.f32 %v2777, %v2683
        %v2795 = vmul.f32 %v2784, %v2683
        %v2796 = vmul.f32 %v2788, %v2683
        %v2797 = vadd.f32 %v2654, %v2789
        %v2798 = vadd.f32 %v2655, %v2790
        %v2799 = vadd.f32 %v2656, %v2791
        %v2800 = vadd.f32 %v2657, %v2792
        %v2801 = vadd.f32 %v2658, %v2793
        %v2802 = vadd.f32 %v2659, %v2794
        %v2803 = vadd.f32 %v2660, %v2795
        %v2804 = vadd.f32 %v2661, %v2796
        %vm2805 = vcmp.gt.f32.partialorder %v2674, 0.0
        %v2806 = vsel %vm2805, -1e+30, %v2663
        %v2807 = vsel %vm830, %v2806, -inf
        %2808 = vmax.xlane.f32.xlu0 %v2807
        %v2809 = vpop.xlane.xlu0 %2808
        %vm2810 = vcmp.ge.f32.partialorder %v2806, %v2809
        %v2811 = vsel %vm2810, %v773, 16.0
        %v2812 = vsel %vm830, %v2811, inf
        %2813 = vmin.xlane.f32.xlu0 %v2812
        %v2814 = vpop.xlane.xlu0 %2813
        %vm2815 = vcmp.eq.f32.partialorder %v773, %v2814
        %v2816 = vsel %vm2815, 1, 0
        %v2817 = vcvt.s32.f32 %v2816
        %vm2818 = vcmp.eq.s32.totalorder %v775, 13
        %vm2819 = vcmp.eq.s32.totalorder %v776, 13
        %v2820 = vsel %vm2818, 1, 0
        %v2821 = vsel %vm2819, 1, 0
        %v2822 = vcvt.s32.f32 %v2820
        %v2823 = vcvt.s32.f32 %v2821
        %vm2824 = vcmp.eq.s32.totalorder %v772, 13
        %v2825 = vsel %vm2824, 1, 0
        %v2826 = vcvt.s32.f32 %v2825
        %v2829 = vunpack.c.l.s4 1966171168
        %v2830 = vunpack.c.0.s8 %v2829
        %v2831 = vlaneseq
        %v2832 = vshrl.u32 %v2831, 7
        %v2833 = vsub.s32 %v2830, %v2832
        %v2834 = vrot.slane %v2817, %v2833
        %v2835 = vcombine.high %v2834, %v2834
        %v2837 = vunpack.c.l.s4 1966171168
        %v2838 = vunpack.c.0.s8 %v2837
        %v2839 = vlaneseq
        %v2840 = vshrl.u32 %v2839, 7
        %v2841 = vsub.s32 %v2838, %v2840
        %v2842 = vrot.slane %v2834, %v2841
        %v2844 = vunpack.c.l.s4 1966171168
        %v2845 = vunpack.c.0.s8 %v2844
        %v2846 = vlaneseq
        %v2847 = vshrl.u32 %v2846, 7
        %v2848 = vsub.s32 %v2845, %v2847
        %v2849 = vrot.slane %v2835, %v2848
        %v2850 = vcombine.high %v2842, %v2842
        %v2851 = vcombine.high %v2849, %v2849
        %v2852 = vlaneseq
        %v2853 = vshrl.u32 %v2852, 7
        %v2854 = vsub.s32 0, %v2853
        %v2855 = vrot.slane %v2842, %v2854
        %v2856 = vlaneseq
        %v2857 = vshrl.u32 %v2856, 7
        %v2858 = vsub.s32 0, %v2857
        %v2859 = vrot.slane %v2849, %v2858
        %v2860 = vlaneseq
        %v2861 = vshrl.u32 %v2860, 7
        %v2862 = vsub.s32 0, %v2861
        %v2863 = vrot.slane %v2850, %v2862
        %v2864 = vlaneseq
        %v2865 = vshrl.u32 %v2864, 7
        %v2866 = vsub.s32 0, %v2865
        %v2867 = vrot.slane %v2851, %v2866
        %v2872 = vmul.f32 %v2855, %v2822
        %v2873 = vmul.f32 %v2855, %v2823
        %v2874 = vmul.f32 %v2859, %v2822
        %v2875 = vmul.f32 %v2859, %v2823
        %v2876 = vmul.f32 %v2863, %v2822
        %v2877 = vmul.f32 %v2863, %v2823
        %v2878 = vmul.f32 %v2867, %v2822
        %v2879 = vmul.f32 %v2867, %v2823
        %v2880 = vadd.f32 %v2737, %v2872
        %v2881 = vadd.f32 %v2738, %v2873
        %v2882 = vadd.f32 %v2739, %v2874
        %v2883 = vadd.f32 %v2740, %v2875
        %v2884 = vadd.f32 %v2741, %v2876
        %v2885 = vadd.f32 %v2742, %v2877
        %v2886 = vadd.f32 %v2743, %v2878
        %v2887 = vadd.f32 %v2744, %v2879
        %v2888 = vlaneseq
        %v2889 = vshrl.u32 %v2888, 7
        %v2890 = vsub.s32 0, %v2889
        %v2891 = vrot.slane %v2817, %v2890
        %2893 = vbcast.lane.b32.xlu0 %v2891, 256
        %v2894 = vpop.permute.xlu0 %2893
        %s2896 = sor.u32 256, 8
        %2897 = vbcast.lane.b32.xlu0 %v2891, %s2896
        %v2898 = vpop.permute.xlu0 %2897
        %v2899 = vlaneseq
        %v2900 = vshrl.u32 %v2899, 7
        %v2901 = vsub.s32 1, %v2900
        %v2902 = vrot.slane %v2817, %v2901
        %2904 = vbcast.lane.b32.xlu0 %v2902, 256
        %v2905 = vpop.permute.xlu0 %2904
        %s2907 = sor.u32 256, 8
        %2908 = vbcast.lane.b32.xlu0 %v2902, %s2907
        %v2909 = vpop.permute.xlu0 %2908
        %v2910 = vlaneseq
        %v2911 = vshrl.u32 %v2910, 7
        %v2912 = vsub.s32 2, %v2911
        %v2913 = vrot.slane %v2817, %v2912
        %2915 = vbcast.lane.b32.xlu0 %v2913, 256
        %v2916 = vpop.permute.xlu0 %2915
        %s2918 = sor.u32 256, 8
        %2919 = vbcast.lane.b32.xlu0 %v2913, %s2918
        %v2920 = vpop.permute.xlu0 %2919
        %v2921 = vlaneseq
        %v2922 = vshrl.u32 %v2921, 7
        %v2923 = vsub.s32 3, %v2922
        %v2924 = vrot.slane %v2817, %v2923
        %2926 = vbcast.lane.b32.xlu0 %v2924, 256
        %v2927 = vpop.permute.xlu0 %2926
        %s2929 = sor.u32 256, 8
        %2930 = vbcast.lane.b32.xlu0 %v2924, %s2929
        %v2931 = vpop.permute.xlu0 %2930
        %v2932 = vmul.f32 %v2894, %v2826
        %v2933 = vmul.f32 %v2898, %v2826
        %v2934 = vmul.f32 %v2905, %v2826
        %v2935 = vmul.f32 %v2909, %v2826
        %v2936 = vmul.f32 %v2916, %v2826
        %v2937 = vmul.f32 %v2920, %v2826
        %v2938 = vmul.f32 %v2927, %v2826
        %v2939 = vmul.f32 %v2931, %v2826
        %v2940 = vadd.f32 %v2797, %v2932
        %v2941 = vadd.f32 %v2798, %v2933
        %v2942 = vadd.f32 %v2799, %v2934
        %v2943 = vadd.f32 %v2800, %v2935
        %v2944 = vadd.f32 %v2801, %v2936
        %v2945 = vadd.f32 %v2802, %v2937
        %v2946 = vadd.f32 %v2803, %v2938
        %v2947 = vadd.f32 %v2804, %v2939
        %vm2948 = vcmp.gt.f32.partialorder %v2817, 0.0
        %v2949 = vsel %vm2948, -1e+30, %v2806
        %v2950 = vsel %vm830, %v2949, -inf
        %2951 = vmax.xlane.f32.xlu0 %v2950
        %v2952 = vpop.xlane.xlu0 %2951
        %vm2953 = vcmp.ge.f32.partialorder %v2949, %v2952
        %v2954 = vsel %vm2953, %v773, 16.0
        %v2955 = vsel %vm830, %v2954, inf
        %2956 = vmin.xlane.f32.xlu0 %v2955
        %v2957 = vpop.xlane.xlu0 %2956
        %vm2958 = vcmp.eq.f32.partialorder %v773, %v2957
        %v2959 = vsel %vm2958, 1, 0
        %v2960 = vcvt.s32.f32 %v2959
        %vm2961 = vcmp.eq.s32.totalorder %v775, 14
        %vm2962 = vcmp.eq.s32.totalorder %v776, 14
        %v2963 = vsel %vm2961, 1, 0
        %v2964 = vsel %vm2962, 1, 0
        %v2965 = vcvt.s32.f32 %v2963
        %v2966 = vcvt.s32.f32 %v2964
        %vm2967 = vcmp.eq.s32.totalorder %v772, 14
        %v2968 = vsel %vm2967, 1, 0
        %v2969 = vcvt.s32.f32 %v2968
        %v2972 = vunpack.c.l.s4 1966171168
        %v2973 = vunpack.c.0.s8 %v2972
        %v2974 = vlaneseq
        %v2975 = vshrl.u32 %v2974, 7
        %v2976 = vsub.s32 %v2973, %v2975
        %v2977 = vrot.slane %v2960, %v2976
        %v2978 = vcombine.high %v2977, %v2977
        %v2980 = vunpack.c.l.s4 1966171168
        %v2981 = vunpack.c.0.s8 %v2980
        %v2982 = vlaneseq
        %v2983 = vshrl.u32 %v2982, 7
        %v2984 = vsub.s32 %v2981, %v2983
        %v2985 = vrot.slane %v2977, %v2984
        %v2987 = vunpack.c.l.s4 1966171168
        %v2988 = vunpack.c.0.s8 %v2987
        %v2989 = vlaneseq
        %v2990 = vshrl.u32 %v2989, 7
        %v2991 = vsub.s32 %v2988, %v2990
        %v2992 = vrot.slane %v2978, %v2991
        %v2993 = vcombine.high %v2985, %v2985
        %v2994 = vcombine.high %v2992, %v2992
        %v2995 = vlaneseq
        %v2996 = vshrl.u32 %v2995, 7
        %v2997 = vsub.s32 0, %v2996
        %v2998 = vrot.slane %v2985, %v2997
        %v2999 = vlaneseq
        %v3000 = vshrl.u32 %v2999, 7
        %v3001 = vsub.s32 0, %v3000
        %v3002 = vrot.slane %v2992, %v3001
        %v3003 = vlaneseq
        %v3004 = vshrl.u32 %v3003, 7
        %v3005 = vsub.s32 0, %v3004
        %v3006 = vrot.slane %v2993, %v3005
        %v3007 = vlaneseq
        %v3008 = vshrl.u32 %v3007, 7
        %v3009 = vsub.s32 0, %v3008
        %v3010 = vrot.slane %v2994, %v3009
        %v3015 = vmul.f32 %v2998, %v2965
        %v3016 = vmul.f32 %v2998, %v2966
        %v3017 = vmul.f32 %v3002, %v2965
        %v3018 = vmul.f32 %v3002, %v2966
        %v3019 = vmul.f32 %v3006, %v2965
        %v3020 = vmul.f32 %v3006, %v2966
        %v3021 = vmul.f32 %v3010, %v2965
        %v3022 = vmul.f32 %v3010, %v2966
        %v3023 = vadd.f32 %v2880, %v3015
        %v3024 = vadd.f32 %v2881, %v3016
        %v3025 = vadd.f32 %v2882, %v3017
        %v3026 = vadd.f32 %v2883, %v3018
        %v3027 = vadd.f32 %v2884, %v3019
        %v3028 = vadd.f32 %v2885, %v3020
        %v3029 = vadd.f32 %v2886, %v3021
        %v3030 = vadd.f32 %v2887, %v3022
        %v3031 = vlaneseq
        %v3032 = vshrl.u32 %v3031, 7
        %v3033 = vsub.s32 0, %v3032
        %v3034 = vrot.slane %v2960, %v3033
        %3036 = vbcast.lane.b32.xlu0 %v3034, 256
        %v3037 = vpop.permute.xlu0 %3036
        %s3039 = sor.u32 256, 8
        %3040 = vbcast.lane.b32.xlu0 %v3034, %s3039
        %v3041 = vpop.permute.xlu0 %3040
        %v3042 = vlaneseq
        %v3043 = vshrl.u32 %v3042, 7
        %v3044 = vsub.s32 1, %v3043
        %v3045 = vrot.slane %v2960, %v3044
        %3047 = vbcast.lane.b32.xlu0 %v3045, 256
        %v3048 = vpop.permute.xlu0 %3047
        %s3050 = sor.u32 256, 8
        %3051 = vbcast.lane.b32.xlu0 %v3045, %s3050
        %v3052 = vpop.permute.xlu0 %3051
        %v3053 = vlaneseq
        %v3054 = vshrl.u32 %v3053, 7
        %v3055 = vsub.s32 2, %v3054
        %v3056 = vrot.slane %v2960, %v3055
        %3058 = vbcast.lane.b32.xlu0 %v3056, 256
        %v3059 = vpop.permute.xlu0 %3058
        %s3061 = sor.u32 256, 8
        %3062 = vbcast.lane.b32.xlu0 %v3056, %s3061
        %v3063 = vpop.permute.xlu0 %3062
        %v3064 = vlaneseq
        %v3065 = vshrl.u32 %v3064, 7
        %v3066 = vsub.s32 3, %v3065
        %v3067 = vrot.slane %v2960, %v3066
        %3069 = vbcast.lane.b32.xlu0 %v3067, 256
        %v3070 = vpop.permute.xlu0 %3069
        %s3072 = sor.u32 256, 8
        %3073 = vbcast.lane.b32.xlu0 %v3067, %s3072
        %v3074 = vpop.permute.xlu0 %3073
        %v3075 = vmul.f32 %v3037, %v2969
        %v3076 = vmul.f32 %v3041, %v2969
        %v3077 = vmul.f32 %v3048, %v2969
        %v3078 = vmul.f32 %v3052, %v2969
        %v3079 = vmul.f32 %v3059, %v2969
        %v3080 = vmul.f32 %v3063, %v2969
        %v3081 = vmul.f32 %v3070, %v2969
        %v3082 = vmul.f32 %v3074, %v2969
        %v3083 = vadd.f32 %v2940, %v3075
        %v3084 = vadd.f32 %v2941, %v3076
        %v3085 = vadd.f32 %v2942, %v3077
        %v3086 = vadd.f32 %v2943, %v3078
        %v3087 = vadd.f32 %v2944, %v3079
        %v3088 = vadd.f32 %v2945, %v3080
        %v3089 = vadd.f32 %v2946, %v3081
        %v3090 = vadd.f32 %v2947, %v3082
        %v3092 = vunpack.c.l.s4 1966171168
        %v3093 = vunpack.c.0.s8 %v3092
        %v3094 = vlaneseq
        %v3095 = vshrl.u32 %v3094, 7
        %v3096 = vsub.s32 %v3093, %v3095
        %v3097 = vrot.slane %v773, %v3096
        %v3098 = vcombine.high %v3097, %v3097
        %v3100 = vunpack.c.l.s4 1966171168
        %v3101 = vunpack.c.0.s8 %v3100
        %v3102 = vlaneseq
        %v3103 = vshrl.u32 %v3102, 7
        %v3104 = vsub.s32 %v3101, %v3103
        %v3105 = vrot.slane %v3097, %v3104
        %v3107 = vunpack.c.l.s4 1966171168
        %v3108 = vunpack.c.0.s8 %v3107
        %v3109 = vlaneseq
        %v3110 = vshrl.u32 %v3109, 7
        %v3111 = vsub.s32 %v3108, %v3110
        %v3112 = vrot.slane %v3098, %v3111
        %v3113 = vcombine.high %v3105, %v3105
        %v3114 = vcombine.high %v3112, %v3112
        %v3115 = vlaneseq
        %v3116 = vshrl.u32 %v3115, 7
        %v3117 = vsub.s32 0, %v3116
        %v3118 = vrot.slane %v3105, %v3117
        %v3119 = vlaneseq
        %v3120 = vshrl.u32 %v3119, 7
        %v3121 = vsub.s32 0, %v3120
        %v3122 = vrot.slane %v3112, %v3121
        %v3123 = vlaneseq
        %v3124 = vshrl.u32 %v3123, 7
        %v3125 = vsub.s32 0, %v3124
        %v3126 = vrot.slane %v3113, %v3125
        %v3127 = vlaneseq
        %v3128 = vshrl.u32 %v3127, 7
        %v3129 = vsub.s32 0, %v3128
        %v3130 = vrot.slane %v3114, %v3129
        %v3135 = vmul.f32 %v3023, %v3118
        %v3136 = vmul.f32 %v3024, %v3118
        %v3137 = vmul.f32 %v3025, %v3122
        %v3138 = vmul.f32 %v3026, %v3122
        %v3139 = vmul.f32 %v3027, %v3126
        %v3140 = vmul.f32 %v3028, %v3126
        %v3141 = vmul.f32 %v3029, %v3130
        %v3142 = vmul.f32 %v3030, %v3130
        %v3143 = vsel %vm697, %v3135, 0.0
        %3144 = vadd.xlane.f32.xlu0 %v3143
        %v3145 = vpop.xlane.xlu0 %3144
        %vm3146 = vcmask 129024
        %v3147 = vsel %vm3146, %v3136, 0.0
        %3148 = vadd.xlane.f32.xlu0 %v3147
        %v3149 = vpop.xlane.xlu0 %3148
        %v3150 = vsel %vm697, %v3137, 0.0
        %3151 = vadd.xlane.f32.xlu0 %v3150
        %v3152 = vpop.xlane.xlu0 %3151
        %v3153 = vsel %vm3146, %v3138, 0.0
        %3154 = vadd.xlane.f32.xlu0 %v3153
        %v3155 = vpop.xlane.xlu0 %3154
        %v3156 = vsel %vm697, %v3139, 0.0
        %3157 = vadd.xlane.f32.xlu0 %v3156
        %v3158 = vpop.xlane.xlu0 %3157
        %v3159 = vsel %vm3146, %v3140, 0.0
        %3160 = vadd.xlane.f32.xlu0 %v3159
        %v3161 = vpop.xlane.xlu0 %3160
        %v3162 = vsel %vm697, %v3141, 0.0
        %3163 = vadd.xlane.f32.xlu0 %v3162
        %v3164 = vpop.xlane.xlu0 %3163
        %v3165 = vsel %vm3146, %v3142, 0.0
        %3166 = vadd.xlane.f32.xlu0 %v3165
        %v3167 = vpop.xlane.xlu0 %3166
        %v3169 = vsel %vm697, %v3023, 0
        %v3172 = vsel %vm697, %v3024, 0
        %3174 = vmatprep.subr.mxu0 0.0
        %3175 = vmatpush1.msra.mxu0 %v414
        %3176 = vmatprep.subr.mxu0 0.0
        %3177 = vmatpush1.msra.mxu0 %v419
        %3178 = vmatprep.subr.mxu0 0.0
        %3179 = vmatpush1.msra.mxu0 0.0
        %3180 = vmatprep.subr.mxu0 0.0
        %3181 = vmatpush1.msra.mxu0 0.0
        %3182 = vmatprep.subr.mxu0 0.0
        %3183 = vmatpush1.msra.mxu0 0.0
        %3184 = vmatprep.subr.mxu0 0.0
        %3185 = vmatpush1.msra.mxu0 0.0
        %3186 = vmatprep.subr.mxu0 0.0
        %3187 = vmatpush1.msra.mxu0 0.0
        %3188 = vmatprep.subr.mxu0 0.0
        %3189 = vmatpush1.msra.mxu0 0.0
        %3190 = vmatprep.subr.mxu0 0.0
        %3191 = vmatpush1.msra.mxu0 0.0
        %3192 = vmatprep.subr.mxu0 0.0
        %3193 = vmatpush1.msra.mxu0 0.0
        %3194 = vmatprep.subr.mxu0 0.0
        %3195 = vmatpush1.msra.mxu0 0.0
        %3196 = vmatprep.subr.mxu0 0.0
        %3197 = vmatpush1.msra.mxu0 0.0
        %3198 = vmatprep.subr.mxu0 0.0
        %3199 = vmatpush1.msra.mxu0 0.0
        %3200 = vmatprep.subr.mxu0 0.0
        %3201 = vmatpush1.msra.mxu0 0.0
        %3202 = vmatprep.subr.mxu0 0.0
        %3203 = vmatpush1.msra.mxu0 0.0
        %3204 = vmatprep.subr.mxu0 0.0
        %3205 = vmatpush1.msra.mxu0 0.0
        %3206 = vmatprep.subr.mxu0 0.0
        %3207 = vmatpush1.msra.mxu0 0.0
        %3208 = vmatprep.subr.mxu0 0.0
        %3209 = vmatpush1.msra.mxu0 0.0
        %3210 = vmatprep.subr.mxu0 0.0
        %3211 = vmatpush1.msra.mxu0 0.0
        %3212 = vmatprep.subr.mxu0 0.0
        %3213 = vmatpush1.msra.mxu0 0.0
        %3214 = vmatprep.subr.mxu0 0.0
        %3215 = vmatpush1.msra.mxu0 0.0
        %3216 = vmatprep.subr.mxu0 0.0
        %3217 = vmatpush1.msra.mxu0 0.0
        %3218 = vmatprep.subr.mxu0 0.0
        %3219 = vmatpush1.msra.mxu0 0.0
        %3220 = vmatprep.subr.mxu0 0.0
        %3221 = vmatpush1.msra.mxu0 0.0
        %3222 = vmatprep.subr.mxu0 0.0
        %3223 = vmatpush1.msra.mxu0 0.0
        %3224 = vmatprep.subr.mxu0 0.0
        %3225 = vmatpush1.msra.mxu0 0.0
        %3226 = vmatprep.subr.mxu0 0.0
        %3227 = vmatpush1.msra.mxu0 0.0
        %3228 = vmatprep.subr.mxu0 0.0
        %3229 = vmatpush1.msra.mxu0 0.0
        %3230 = vmatprep.subr.mxu0 0.0
        %3231 = vmatpush1.msra.mxu0 0.0
        %3232 = vmatprep.subr.mxu0 0.0
        %3233 = vmatpush1.msra.mxu0 0.0
        %3234 = vmatprep.subr.mxu0 0.0
        %3235 = vmatpush1.msra.mxu0 0.0
        %3236 = vmatprep.subr.mxu0 0.0
        %3237 = vmatpush1.msra.mxu0 0.0
        %3238 = vmatprep.mubr.f32.mxu0 0.0
        %3239 = vmatmul.mubr.f32.gmra.mrb[0].mxu0 %v3169
        %v3240 = vpop.f32.mrb[0].mxu0
        %v3241 = vadd.f32 0.0, %v3240
        %v3242 = vpop.f32.mrb[0].mxu0
        %3243 = vmatprep.mubr.f32.mxu0 0.0
        %3244 = vmatmul.mubr.f32.gmra.mrb[0].mxu0 %v3172
        %v3245 = vpop.f32.mrb[0].mxu0
        %v3246 = vadd.f32 0.0, %v3245
        %v3247 = vpop.f32.mrb[0].mxu0
        %3248 = vdwg.mxu0
        %v3250 = vsel %vm697, %v3025, 0
        %v3253 = vsel %vm697, %v3026, 0
        %3255 = vmatprep.subr.mxu0 0.0
        %3256 = vmatpush1.msra.mxu0 %v501
        %3257 = vmatprep.subr.mxu0 0.0
        %3258 = vmatpush1.msra.mxu0 %v506
        %3259 = vmatprep.subr.mxu0 0.0
        %3260 = vmatpush1.msra.mxu0 0.0
        %3261 = vmatprep.subr.mxu0 0.0
        %3262 = vmatpush1.msra.mxu0 0.0
        %3263 = vmatprep.subr.mxu0 0.0
        %3264 = vmatpush1.msra.mxu0 0.0
        %3265 = vmatprep.subr.mxu0 0.0
        %3266 = vmatpush1.msra.mxu0 0.0
        %3267 = vmatprep.subr.mxu0 0.0
        %3268 = vmatpush1.msra.mxu0 0.0
        %3269 = vmatprep.subr.mxu0 0.0
        %3270 = vmatpush1.msra.mxu0 0.0
        %3271 = vmatprep.subr.mxu0 0.0
        %3272 = vmatpush1.msra.mxu0 0.0
        %3273 = vmatprep.subr.mxu0 0.0
        %3274 = vmatpush1.msra.mxu0 0.0
        %3275 = vmatprep.subr.mxu0 0.0
        %3276 = vmatpush1.msra.mxu0 0.0
        %3277 = vmatprep.subr.mxu0 0.0
        %3278 = vmatpush1.msra.mxu0 0.0
        %3279 = vmatprep.subr.mxu0 0.0
        %3280 = vmatpush1.msra.mxu0 0.0
        %3281 = vmatprep.subr.mxu0 0.0
        %3282 = vmatpush1.msra.mxu0 0.0
        %3283 = vmatprep.subr.mxu0 0.0
        %3284 = vmatpush1.msra.mxu0 0.0
        %3285 = vmatprep.subr.mxu0 0.0
        %3286 = vmatpush1.msra.mxu0 0.0
        %3287 = vmatprep.subr.mxu0 0.0
        %3288 = vmatpush1.msra.mxu0 0.0
        %3289 = vmatprep.subr.mxu0 0.0
        %3290 = vmatpush1.msra.mxu0 0.0
        %3291 = vmatprep.subr.mxu0 0.0
        %3292 = vmatpush1.msra.mxu0 0.0
        %3293 = vmatprep.subr.mxu0 0.0
        %3294 = vmatpush1.msra.mxu0 0.0
        %3295 = vmatprep.subr.mxu0 0.0
        %3296 = vmatpush1.msra.mxu0 0.0
        %3297 = vmatprep.subr.mxu0 0.0
        %3298 = vmatpush1.msra.mxu0 0.0
        %3299 = vmatprep.subr.mxu0 0.0
        %3300 = vmatpush1.msra.mxu0 0.0
        %3301 = vmatprep.subr.mxu0 0.0
        %3302 = vmatpush1.msra.mxu0 0.0
        %3303 = vmatprep.subr.mxu0 0.0
        %3304 = vmatpush1.msra.mxu0 0.0
        %3305 = vmatprep.subr.mxu0 0.0
        %3306 = vmatpush1.msra.mxu0 0.0
        %3307 = vmatprep.subr.mxu0 0.0
        %3308 = vmatpush1.msra.mxu0 0.0
        %3309 = vmatprep.subr.mxu0 0.0
        %3310 = vmatpush1.msra.mxu0 0.0
        %3311 = vmatprep.subr.mxu0 0.0
        %3312 = vmatpush1.msra.mxu0 0.0
        %3313 = vmatprep.subr.mxu0 0.0
        %3314 = vmatpush1.msra.mxu0 0.0
        %3315 = vmatprep.subr.mxu0 0.0
        %3316 = vmatpush1.msra.mxu0 0.0
        %3317 = vmatprep.subr.mxu0 0.0
        %3318 = vmatpush1.msra.mxu0 0.0
        %3319 = vmatprep.mubr.f32.mxu0 0.0
        %3320 = vmatmul.mubr.f32.gmra.mrb[0].mxu0 %v3250
        %v3321 = vpop.f32.mrb[0].mxu0
        %v3322 = vadd.f32 0.0, %v3321
        %v3323 = vpop.f32.mrb[0].mxu0
        %3324 = vmatprep.mubr.f32.mxu0 0.0
        %3325 = vmatmul.mubr.f32.gmra.mrb[0].mxu0 %v3253
        %v3326 = vpop.f32.mrb[0].mxu0
        %v3327 = vadd.f32 0.0, %v3326
        %v3328 = vpop.f32.mrb[0].mxu0
        %3329 = vdwg.mxu0
        %v3331 = vsel %vm697, %v3027, 0
        %v3334 = vsel %vm697, %v3028, 0
        %3336 = vmatprep.subr.mxu0 0.0
        %3337 = vmatpush1.msra.mxu0 %v588
        %3338 = vmatprep.subr.mxu0 0.0
        %3339 = vmatpush1.msra.mxu0 %v593
        %3340 = vmatprep.subr.mxu0 0.0
        %3341 = vmatpush1.msra.mxu0 0.0
        %3342 = vmatprep.subr.mxu0 0.0
        %3343 = vmatpush1.msra.mxu0 0.0
        %3344 = vmatprep.subr.mxu0 0.0
        %3345 = vmatpush1.msra.mxu0 0.0
        %3346 = vmatprep.subr.mxu0 0.0
        %3347 = vmatpush1.msra.mxu0 0.0
        %3348 = vmatprep.subr.mxu0 0.0
        %3349 = vmatpush1.msra.mxu0 0.0
        %3350 = vmatprep.subr.mxu0 0.0
        %3351 = vmatpush1.msra.mxu0 0.0
        %3352 = vmatprep.subr.mxu0 0.0
        %3353 = vmatpush1.msra.mxu0 0.0
        %3354 = vmatprep.subr.mxu0 0.0
        %3355 = vmatpush1.msra.mxu0 0.0
        %3356 = vmatprep.subr.mxu0 0.0
        %3357 = vmatpush1.msra.mxu0 0.0
        %3358 = vmatprep.subr.mxu0 0.0
        %3359 = vmatpush1.msra.mxu0 0.0
        %3360 = vmatprep.subr.mxu0 0.0
        %3361 = vmatpush1.msra.mxu0 0.0
        %3362 = vmatprep.subr.mxu0 0.0
        %3363 = vmatpush1.msra.mxu0 0.0
        %3364 = vmatprep.subr.mxu0 0.0
        %3365 = vmatpush1.msra.mxu0 0.0
        %3366 = vmatprep.subr.mxu0 0.0
        %3367 = vmatpush1.msra.mxu0 0.0
        %3368 = vmatprep.subr.mxu0 0.0
        %3369 = vmatpush1.msra.mxu0 0.0
        %3370 = vmatprep.subr.mxu0 0.0
        %3371 = vmatpush1.msra.mxu0 0.0
        %3372 = vmatprep.subr.mxu0 0.0
        %3373 = vmatpush1.msra.mxu0 0.0
        %3374 = vmatprep.subr.mxu0 0.0
        %3375 = vmatpush1.msra.mxu0 0.0
        %3376 = vmatprep.subr.mxu0 0.0
        %3377 = vmatpush1.msra.mxu0 0.0
        %3378 = vmatprep.subr.mxu0 0.0
        %3379 = vmatpush1.msra.mxu0 0.0
        %3380 = vmatprep.subr.mxu0 0.0
        %3381 = vmatpush1.msra.mxu0 0.0
        %3382 = vmatprep.subr.mxu0 0.0
        %3383 = vmatpush1.msra.mxu0 0.0
        %3384 = vmatprep.subr.mxu0 0.0
        %3385 = vmatpush1.msra.mxu0 0.0
        %3386 = vmatprep.subr.mxu0 0.0
        %3387 = vmatpush1.msra.mxu0 0.0
        %3388 = vmatprep.subr.mxu0 0.0
        %3389 = vmatpush1.msra.mxu0 0.0
        %3390 = vmatprep.subr.mxu0 0.0
        %3391 = vmatpush1.msra.mxu0 0.0
        %3392 = vmatprep.subr.mxu0 0.0
        %3393 = vmatpush1.msra.mxu0 0.0
        %3394 = vmatprep.subr.mxu0 0.0
        %3395 = vmatpush1.msra.mxu0 0.0
        %3396 = vmatprep.subr.mxu0 0.0
        %3397 = vmatpush1.msra.mxu0 0.0
        %3398 = vmatprep.subr.mxu0 0.0
        %3399 = vmatpush1.msra.mxu0 0.0
        %3400 = vmatprep.mubr.f32.mxu0 0.0
        %3401 = vmatmul.mubr.f32.gmra.mrb[0].mxu0 %v3331
        %v3402 = vpop.f32.mrb[0].mxu0
        %v3403 = vadd.f32 0.0, %v3402
        %v3404 = vpop.f32.mrb[0].mxu0
        %3405 = vmatprep.mubr.f32.mxu0 0.0
        %3406 = vmatmul.mubr.f32.gmra.mrb[0].mxu0 %v3334
        %v3407 = vpop.f32.mrb[0].mxu0
        %v3408 = vadd.f32 0.0, %v3407
        %v3409 = vpop.f32.mrb[0].mxu0
        %3410 = vdwg.mxu0
        %v3412 = vsel %vm697, %v3029, 0
        %v3415 = vsel %vm697, %v3030, 0
        %3417 = vmatprep.subr.mxu0 0.0
        %3418 = vmatpush1.msra.mxu0 %v675
        %3419 = vmatprep.subr.mxu0 0.0
        %3420 = vmatpush1.msra.mxu0 %v680
        %3421 = vmatprep.subr.mxu0 0.0
        %3422 = vmatpush1.msra.mxu0 0.0
        %3423 = vmatprep.subr.mxu0 0.0
        %3424 = vmatpush1.msra.mxu0 0.0
        %3425 = vmatprep.subr.mxu0 0.0
        %3426 = vmatpush1.msra.mxu0 0.0
        %3427 = vmatprep.subr.mxu0 0.0
        %3428 = vmatpush1.msra.mxu0 0.0
        %3429 = vmatprep.subr.mxu0 0.0
        %3430 = vmatpush1.msra.mxu0 0.0
        %3431 = vmatprep.subr.mxu0 0.0
        %3432 = vmatpush1.msra.mxu0 0.0
        %3433 = vmatprep.subr.mxu0 0.0
        %3434 = vmatpush1.msra.mxu0 0.0
        %3435 = vmatprep.subr.mxu0 0.0
        %3436 = vmatpush1.msra.mxu0 0.0
        %3437 = vmatprep.subr.mxu0 0.0
        %3438 = vmatpush1.msra.mxu0 0.0
        %3439 = vmatprep.subr.mxu0 0.0
        %3440 = vmatpush1.msra.mxu0 0.0
        %3441 = vmatprep.subr.mxu0 0.0
        %3442 = vmatpush1.msra.mxu0 0.0
        %3443 = vmatprep.subr.mxu0 0.0
        %3444 = vmatpush1.msra.mxu0 0.0
        %3445 = vmatprep.subr.mxu0 0.0
        %3446 = vmatpush1.msra.mxu0 0.0
        %3447 = vmatprep.subr.mxu0 0.0
        %3448 = vmatpush1.msra.mxu0 0.0
        %3449 = vmatprep.subr.mxu0 0.0
        %3450 = vmatpush1.msra.mxu0 0.0
        %3451 = vmatprep.subr.mxu0 0.0
        %3452 = vmatpush1.msra.mxu0 0.0
        %3453 = vmatprep.subr.mxu0 0.0
        %3454 = vmatpush1.msra.mxu0 0.0
        %3455 = vmatprep.subr.mxu0 0.0
        %3456 = vmatpush1.msra.mxu0 0.0
        %3457 = vmatprep.subr.mxu0 0.0
        %3458 = vmatpush1.msra.mxu0 0.0
        %3459 = vmatprep.subr.mxu0 0.0
        %3460 = vmatpush1.msra.mxu0 0.0
        %3461 = vmatprep.subr.mxu0 0.0
        %3462 = vmatpush1.msra.mxu0 0.0
        %3463 = vmatprep.subr.mxu0 0.0
        %3464 = vmatpush1.msra.mxu0 0.0
        %3465 = vmatprep.subr.mxu0 0.0
        %3466 = vmatpush1.msra.mxu0 0.0
        %3467 = vmatprep.subr.mxu0 0.0
        %3468 = vmatpush1.msra.mxu0 0.0
        %3469 = vmatprep.subr.mxu0 0.0
        %3470 = vmatpush1.msra.mxu0 0.0
        %3471 = vmatprep.subr.mxu0 0.0
        %3472 = vmatpush1.msra.mxu0 0.0
        %3473 = vmatprep.subr.mxu0 0.0
        %3474 = vmatpush1.msra.mxu0 0.0
        %3475 = vmatprep.subr.mxu0 0.0
        %3476 = vmatpush1.msra.mxu0 0.0
        %3477 = vmatprep.subr.mxu0 0.0
        %3478 = vmatpush1.msra.mxu0 0.0
        %3479 = vmatprep.subr.mxu0 0.0
        %3480 = vmatpush1.msra.mxu0 0.0
        %3481 = vmatprep.mubr.f32.mxu0 0.0
        %3482 = vmatmul.mubr.f32.gmra.mrb[0].mxu0 %v3412
        %v3483 = vpop.f32.mrb[0].mxu0
        %v3484 = vadd.f32 0.0, %v3483
        %v3485 = vpop.f32.mrb[0].mxu0
        %3486 = vmatprep.mubr.f32.mxu0 0.0
        %3487 = vmatmul.mubr.f32.gmra.mrb[0].mxu0 %v3415
        %v3488 = vpop.f32.mrb[0].mxu0
        %v3489 = vadd.f32 0.0, %v3488
        %v3490 = vpop.f32.mrb[0].mxu0
        %3491 = vdwg.mxu0
        %v3492 = vmul.f32 %v3241, 0.17677669
        %v3493 = vmul.f32 %v3246, 0.17677669
        %v3494 = vmul.f32 %v3322, 0.17677669
        %v3495 = vmul.f32 %v3327, 0.17677669
        %v3496 = vmul.f32 %v3403, 0.17677669
        %v3497 = vmul.f32 %v3408, 0.17677669
        %v3498 = vmul.f32 %v3484, 0.17677669
        %v3499 = vmul.f32 %v3489, 0.17677669
        %vm3500 = vcmp.gt.f32.partialorder %v773, %v3145
        %vm3501 = vcmp.gt.f32.partialorder %v773, %v3149
        %vm3502 = vcmp.gt.f32.partialorder %v773, %v3152
        %vm3503 = vcmp.gt.f32.partialorder %v773, %v3155
        %vm3504 = vcmp.gt.f32.partialorder %v773, %v3158
        %vm3505 = vcmp.gt.f32.partialorder %v773, %v3161
        %vm3506 = vcmp.gt.f32.partialorder %v773, %v3164
        %vm3507 = vcmp.gt.f32.partialorder %v773, %v3167
        %v3508 = vsel %vm3500, -1e+30, %v3492
        %v3509 = vsel %vm3501, -1e+30, %v3493
        %v3510 = vsel %vm3502, -1e+30, %v3494
        %v3511 = vsel %vm3503, -1e+30, %v3495
        %v3512 = vsel %vm3504, -1e+30, %v3496
        %v3513 = vsel %vm3505, -1e+30, %v3497
        %v3514 = vsel %vm3506, -1e+30, %v3498
        %v3515 = vsel %vm3507, -1e+30, %v3499
        %v3516 = vsel %vm697, %v3508, -inf
        %3517 = vmax.xlane.f32.xlu0 %v3516
        %v3518 = vpop.xlane.xlu0 %3517
        %v3519 = vsel %vm3146, %v3509, -inf
        %3520 = vmax.xlane.f32.xlu0 %v3519
        %v3521 = vpop.xlane.xlu0 %3520
        %v3522 = vsel %vm697, %v3510, -inf
        %3523 = vmax.xlane.f32.xlu0 %v3522
        %v3524 = vpop.xlane.xlu0 %3523
        %v3525 = vsel %vm3146, %v3511, -inf
        %3526 = vmax.xlane.f32.xlu0 %v3525
        %v3527 = vpop.xlane.xlu0 %3526
        %v3528 = vsel %vm697, %v3512, -inf
        %3529 = vmax.xlane.f32.xlu0 %v3528
        %v3530 = vpop.xlane.xlu0 %3529
        %v3531 = vsel %vm3146, %v3513, -inf
        %3532 = vmax.xlane.f32.xlu0 %v3531
        %v3533 = vpop.xlane.xlu0 %3532
        %v3534 = vsel %vm697, %v3514, -inf
        %3535 = vmax.xlane.f32.xlu0 %v3534
        %v3536 = vpop.xlane.xlu0 %3535
        %v3537 = vsel %vm3146, %v3515, -inf
        %3538 = vmax.xlane.f32.xlu0 %v3537
        %v3539 = vpop.xlane.xlu0 %3538
        %v3540 = vsub.f32 %v3508, %v3518
        %v3541 = vsub.f32 %v3509, %v3521
        %v3542 = vsub.f32 %v3510, %v3524
        %v3543 = vsub.f32 %v3511, %v3527
        %v3544 = vsub.f32 %v3512, %v3530
        %v3545 = vsub.f32 %v3513, %v3533
        %v3546 = vsub.f32 %v3514, %v3536
        %v3547 = vsub.f32 %v3515, %v3539
        %v3548 = vmul.f32 %v3540, 1.442695
        %v3549 = vpow.pop %v3548
        %v3550 = vmul.f32 %v3541, 1.442695
        %v3551 = vpow.pop %v3550
        %v3552 = vmul.f32 %v3542, 1.442695
        %v3553 = vpow.pop %v3552
        %v3554 = vmul.f32 %v3543, 1.442695
        %v3555 = vpow.pop %v3554
        %v3556 = vmul.f32 %v3544, 1.442695
        %v3557 = vpow.pop %v3556
        %v3558 = vmul.f32 %v3545, 1.442695
        %v3559 = vpow.pop %v3558
        %v3560 = vmul.f32 %v3546, 1.442695
        %v3561 = vpow.pop %v3560
        %v3562 = vmul.f32 %v3547, 1.442695
        %v3563 = vpow.pop %v3562
        %v3564 = vsel %vm697, %v3549, 0.0
        %3565 = vadd.xlane.f32.xlu0 %v3564
        %v3566 = vpop.xlane.xlu0 %3565
        %v3567 = vsel %vm3146, %v3551, 0.0
        %3568 = vadd.xlane.f32.xlu0 %v3567
        %v3569 = vpop.xlane.xlu0 %3568
        %v3570 = vsel %vm697, %v3553, 0.0
        %3571 = vadd.xlane.f32.xlu0 %v3570
        %v3572 = vpop.xlane.xlu0 %3571
        %v3573 = vsel %vm3146, %v3555, 0.0
        %3574 = vadd.xlane.f32.xlu0 %v3573
        %v3575 = vpop.xlane.xlu0 %3574
        %v3576 = vsel %vm697, %v3557, 0.0
        %3577 = vadd.xlane.f32.xlu0 %v3576
        %v3578 = vpop.xlane.xlu0 %3577
        %v3579 = vsel %vm3146, %v3559, 0.0
        %3580 = vadd.xlane.f32.xlu0 %v3579
        %v3581 = vpop.xlane.xlu0 %3580
        %v3582 = vsel %vm697, %v3561, 0.0
        %3583 = vadd.xlane.f32.xlu0 %v3582
        %v3584 = vpop.xlane.xlu0 %3583
        %v3585 = vsel %vm3146, %v3563, 0.0
        %3586 = vadd.xlane.f32.xlu0 %v3585
        %v3587 = vpop.xlane.xlu0 %3586
        %v3588 = vrcp.pop %v3566
        %v3589 = vmul.f32 %v3549, %v3588
        %v3590 = vrcp.pop %v3569
        %v3591 = vmul.f32 %v3551, %v3590
        %v3592 = vrcp.pop %v3572
        %v3593 = vmul.f32 %v3553, %v3592
        %v3594 = vrcp.pop %v3575
        %v3595 = vmul.f32 %v3555, %v3594
        %v3596 = vrcp.pop %v3578
        %v3597 = vmul.f32 %v3557, %v3596
        %v3598 = vrcp.pop %v3581
        %v3599 = vmul.f32 %v3559, %v3598
        %v3600 = vrcp.pop %v3584
        %v3601 = vmul.f32 %v3561, %v3600
        %v3602 = vrcp.pop %v3587
        %v3603 = vmul.f32 %v3563, %v3602
        %v3605 = vsel %vm697, %v3589, 0
        %v3608 = vsel %vm697, %v3591, 0
        %3610 = vmatprep.subr.mxu0 0.0
        %3611 = vmatpush1.msra.mxu0 %v324
        %3612 = vmatprep.subr.mxu0 0.0
        %3613 = vmatpush1.msra.mxu0 %v325
        %3614 = vmatprep.subr.mxu0 0.0
        %3615 = vmatpush1.msra.mxu0 0.0
        %3616 = vmatprep.subr.mxu0 0.0
        %3617 = vmatpush1.msra.mxu0 0.0
        %3618 = vmatprep.subr.mxu0 0.0
        %3619 = vmatpush1.msra.mxu0 0.0
        %3620 = vmatprep.subr.mxu0 0.0
        %3621 = vmatpush1.msra.mxu0 0.0
        %3622 = vmatprep.subr.mxu0 0.0
        %3623 = vmatpush1.msra.mxu0 0.0
        %3624 = vmatprep.subr.mxu0 0.0
        %3625 = vmatpush1.msra.mxu0 0.0
        %3626 = vmatprep.subr.mxu0 0.0
        %3627 = vmatpush1.msra.mxu0 0.0
        %3628 = vmatprep.subr.mxu0 0.0
        %3629 = vmatpush1.msra.mxu0 0.0
        %3630 = vmatprep.subr.mxu0 0.0
        %3631 = vmatpush1.msra.mxu0 0.0
        %3632 = vmatprep.subr.mxu0 0.0
        %3633 = vmatpush1.msra.mxu0 0.0
        %3634 = vmatprep.subr.mxu0 0.0
        %3635 = vmatpush1.msra.mxu0 0.0
        %3636 = vmatprep.subr.mxu0 0.0
        %3637 = vmatpush1.msra.mxu0 0.0
        %3638 = vmatprep.subr.mxu0 0.0
        %3639 = vmatpush1.msra.mxu0 0.0
        %3640 = vmatprep.subr.mxu0 0.0
        %3641 = vmatpush1.msra.mxu0 0.0
        %3642 = vmatprep.subr.mxu0 0.0
        %3643 = vmatpush1.msra.mxu0 0.0
        %3644 = vmatprep.subr.mxu0 0.0
        %3645 = vmatpush1.msra.mxu0 0.0
        %3646 = vmatprep.subr.mxu0 0.0
        %3647 = vmatpush1.msra.mxu0 0.0
        %3648 = vmatprep.subr.mxu0 0.0
        %3649 = vmatpush1.msra.mxu0 0.0
        %3650 = vmatprep.subr.mxu0 0.0
        %3651 = vmatpush1.msra.mxu0 0.0
        %3652 = vmatprep.subr.mxu0 0.0
        %3653 = vmatpush1.msra.mxu0 0.0
        %3654 = vmatprep.subr.mxu0 0.0
        %3655 = vmatpush1.msra.mxu0 0.0
        %3656 = vmatprep.subr.mxu0 0.0
        %3657 = vmatpush1.msra.mxu0 0.0
        %3658 = vmatprep.subr.mxu0 0.0
        %3659 = vmatpush1.msra.mxu0 0.0
        %3660 = vmatprep.subr.mxu0 0.0
        %3661 = vmatpush1.msra.mxu0 0.0
        %3662 = vmatprep.subr.mxu0 0.0
        %3663 = vmatpush1.msra.mxu0 0.0
        %3664 = vmatprep.subr.mxu0 0.0
        %3665 = vmatpush1.msra.mxu0 0.0
        %3666 = vmatprep.subr.mxu0 0.0
        %3667 = vmatpush1.msra.mxu0 0.0
        %3668 = vmatprep.subr.mxu0 0.0
        %3669 = vmatpush1.msra.mxu0 0.0
        %3670 = vmatprep.subr.mxu0 0.0
        %3671 = vmatpush1.msra.mxu0 0.0
        %3672 = vmatprep.subr.mxu0 0.0
        %3673 = vmatpush1.msra.mxu0 0.0
        %3674 = vmatprep.mubr.f32.mxu0 0.0
        %3675 = vmatmul.mubr.f32.gmra.mrb[0].mxu0 %v3605
        %v3676 = vpop.f32.mrb[0].mxu0
        %v3677 = vadd.f32 0.0, %v3676
        %v3678 = vpop.f32.mrb[0].mxu0
        %3679 = vmatprep.mubr.f32.mxu0 0.0
        %3680 = vmatmul.mubr.f32.gmra.mrb[0].mxu0 %v3608
        %v3681 = vpop.f32.mrb[0].mxu0
        %v3682 = vadd.f32 0.0, %v3681
        %v3683 = vpop.f32.mrb[0].mxu0
        %3684 = vdwg.mxu0
        %v3686 = vsel %vm697, %v3593, 0
        %v3689 = vsel %vm697, %v3595, 0
        %3691 = vmatprep.subr.mxu0 0.0
        %3692 = vmatpush1.msra.mxu0 %v326
        %3693 = vmatprep.subr.mxu0 0.0
        %3694 = vmatpush1.msra.mxu0 %v327
        %3695 = vmatprep.subr.mxu0 0.0
        %3696 = vmatpush1.msra.mxu0 0.0
        %3697 = vmatprep.subr.mxu0 0.0
        %3698 = vmatpush1.msra.mxu0 0.0
        %3699 = vmatprep.subr.mxu0 0.0
        %3700 = vmatpush1.msra.mxu0 0.0
        %3701 = vmatprep.subr.mxu0 0.0
        %3702 = vmatpush1.msra.mxu0 0.0
        %3703 = vmatprep.subr.mxu0 0.0
        %3704 = vmatpush1.msra.mxu0 0.0
        %3705 = vmatprep.subr.mxu0 0.0
        %3706 = vmatpush1.msra.mxu0 0.0
        %3707 = vmatprep.subr.mxu0 0.0
        %3708 = vmatpush1.msra.mxu0 0.0
        %3709 = vmatprep.subr.mxu0 0.0
        %3710 = vmatpush1.msra.mxu0 0.0
        %3711 = vmatprep.subr.mxu0 0.0
        %3712 = vmatpush1.msra.mxu0 0.0
        %3713 = vmatprep.subr.mxu0 0.0
        %3714 = vmatpush1.msra.mxu0 0.0
        %3715 = vmatprep.subr.mxu0 0.0
        %3716 = vmatpush1.msra.mxu0 0.0
        %3717 = vmatprep.subr.mxu0 0.0
        %3718 = vmatpush1.msra.mxu0 0.0
        %3719 = vmatprep.subr.mxu0 0.0
        %3720 = vmatpush1.msra.mxu0 0.0
        %3721 = vmatprep.subr.mxu0 0.0
        %3722 = vmatpush1.msra.mxu0 0.0
        %3723 = vmatprep.subr.mxu0 0.0
        %3724 = vmatpush1.msra.mxu0 0.0
        %3725 = vmatprep.subr.mxu0 0.0
        %3726 = vmatpush1.msra.mxu0 0.0
        %3727 = vmatprep.subr.mxu0 0.0
        %3728 = vmatpush1.msra.mxu0 0.0
        %3729 = vmatprep.subr.mxu0 0.0
        %3730 = vmatpush1.msra.mxu0 0.0
        %3731 = vmatprep.subr.mxu0 0.0
        %3732 = vmatpush1.msra.mxu0 0.0
        %3733 = vmatprep.subr.mxu0 0.0
        %3734 = vmatpush1.msra.mxu0 0.0
        %3735 = vmatprep.subr.mxu0 0.0
        %3736 = vmatpush1.msra.mxu0 0.0
        %3737 = vmatprep.subr.mxu0 0.0
        %3738 = vmatpush1.msra.mxu0 0.0
        %3739 = vmatprep.subr.mxu0 0.0
        %3740 = vmatpush1.msra.mxu0 0.0
        %3741 = vmatprep.subr.mxu0 0.0
        %3742 = vmatpush1.msra.mxu0 0.0
        %3743 = vmatprep.subr.mxu0 0.0
        %3744 = vmatpush1.msra.mxu0 0.0
        %3745 = vmatprep.subr.mxu0 0.0
        %3746 = vmatpush1.msra.mxu0 0.0
        %3747 = vmatprep.subr.mxu0 0.0
        %3748 = vmatpush1.msra.mxu0 0.0
        %3749 = vmatprep.subr.mxu0 0.0
        %3750 = vmatpush1.msra.mxu0 0.0
        %3751 = vmatprep.subr.mxu0 0.0
        %3752 = vmatpush1.msra.mxu0 0.0
        %3753 = vmatprep.subr.mxu0 0.0
        %3754 = vmatpush1.msra.mxu0 0.0
        %3755 = vmatprep.mubr.f32.mxu0 0.0
        %3756 = vmatmul.mubr.f32.gmra.mrb[0].mxu0 %v3686
        %v3757 = vpop.f32.mrb[0].mxu0
        %v3758 = vadd.f32 0.0, %v3757
        %v3759 = vpop.f32.mrb[0].mxu0
        %3760 = vmatprep.mubr.f32.mxu0 0.0
        %3761 = vmatmul.mubr.f32.gmra.mrb[0].mxu0 %v3689
        %v3762 = vpop.f32.mrb[0].mxu0
        %v3763 = vadd.f32 0.0, %v3762
        %v3764 = vpop.f32.mrb[0].mxu0
        %3765 = vdwg.mxu0
        %v3767 = vsel %vm697, %v3597, 0
        %v3770 = vsel %vm697, %v3599, 0
        %3772 = vmatprep.subr.mxu0 0.0
        %3773 = vmatpush1.msra.mxu0 %v328
        %3774 = vmatprep.subr.mxu0 0.0
        %3775 = vmatpush1.msra.mxu0 %v329
        %3776 = vmatprep.subr.mxu0 0.0
        %3777 = vmatpush1.msra.mxu0 0.0
        %3778 = vmatprep.subr.mxu0 0.0
        %3779 = vmatpush1.msra.mxu0 0.0
        %3780 = vmatprep.subr.mxu0 0.0
        %3781 = vmatpush1.msra.mxu0 0.0
        %3782 = vmatprep.subr.mxu0 0.0
        %3783 = vmatpush1.msra.mxu0 0.0
        %3784 = vmatprep.subr.mxu0 0.0
        %3785 = vmatpush1.msra.mxu0 0.0
        %3786 = vmatprep.subr.mxu0 0.0
        %3787 = vmatpush1.msra.mxu0 0.0
        %3788 = vmatprep.subr.mxu0 0.0
        %3789 = vmatpush1.msra.mxu0 0.0
        %3790 = vmatprep.subr.mxu0 0.0
        %3791 = vmatpush1.msra.mxu0 0.0
        %3792 = vmatprep.subr.mxu0 0.0
        %3793 = vmatpush1.msra.mxu0 0.0
        %3794 = vmatprep.subr.mxu0 0.0
        %3795 = vmatpush1.msra.mxu0 0.0
        %3796 = vmatprep.subr.mxu0 0.0
        %3797 = vmatpush1.msra.mxu0 0.0
        %3798 = vmatprep.subr.mxu0 0.0
        %3799 = vmatpush1.msra.mxu0 0.0
        %3800 = vmatprep.subr.mxu0 0.0
        %3801 = vmatpush1.msra.mxu0 0.0
        %3802 = vmatprep.subr.mxu0 0.0
        %3803 = vmatpush1.msra.mxu0 0.0
        %3804 = vmatprep.subr.mxu0 0.0
        %3805 = vmatpush1.msra.mxu0 0.0
        %3806 = vmatprep.subr.mxu0 0.0
        %3807 = vmatpush1.msra.mxu0 0.0
        %3808 = vmatprep.subr.mxu0 0.0
        %3809 = vmatpush1.msra.mxu0 0.0
        %3810 = vmatprep.subr.mxu0 0.0
        %3811 = vmatpush1.msra.mxu0 0.0
        %3812 = vmatprep.subr.mxu0 0.0
        %3813 = vmatpush1.msra.mxu0 0.0
        %3814 = vmatprep.subr.mxu0 0.0
        %3815 = vmatpush1.msra.mxu0 0.0
        %3816 = vmatprep.subr.mxu0 0.0
        %3817 = vmatpush1.msra.mxu0 0.0
        %3818 = vmatprep.subr.mxu0 0.0
        %3819 = vmatpush1.msra.mxu0 0.0
        %3820 = vmatprep.subr.mxu0 0.0
        %3821 = vmatpush1.msra.mxu0 0.0
        %3822 = vmatprep.subr.mxu0 0.0
        %3823 = vmatpush1.msra.mxu0 0.0
        %3824 = vmatprep.subr.mxu0 0.0
        %3825 = vmatpush1.msra.mxu0 0.0
        %3826 = vmatprep.subr.mxu0 0.0
        %3827 = vmatpush1.msra.mxu0 0.0
        %3828 = vmatprep.subr.mxu0 0.0
        %3829 = vmatpush1.msra.mxu0 0.0
        %3830 = vmatprep.subr.mxu0 0.0
        %3831 = vmatpush1.msra.mxu0 0.0
        %3832 = vmatprep.subr.mxu0 0.0
        %3833 = vmatpush1.msra.mxu0 0.0
        %3834 = vmatprep.subr.mxu0 0.0
        %3835 = vmatpush1.msra.mxu0 0.0
        %3836 = vmatprep.mubr.f32.mxu0 0.0
        %3837 = vmatmul.mubr.f32.gmra.mrb[0].mxu0 %v3767
        %v3838 = vpop.f32.mrb[0].mxu0
        %v3839 = vadd.f32 0.0, %v3838
        %v3840 = vpop.f32.mrb[0].mxu0
        %3841 = vmatprep.mubr.f32.mxu0 0.0
        %3842 = vmatmul.mubr.f32.gmra.mrb[0].mxu0 %v3770
        %v3843 = vpop.f32.mrb[0].mxu0
        %v3844 = vadd.f32 0.0, %v3843
        %v3845 = vpop.f32.mrb[0].mxu0
        %3846 = vdwg.mxu0
        %v3848 = vsel %vm697, %v3601, 0
        %v3851 = vsel %vm697, %v3603, 0
        %3853 = vmatprep.subr.mxu0 0.0
        %3854 = vmatpush1.msra.mxu0 %v330
        %3855 = vmatprep.subr.mxu0 0.0
        %3856 = vmatpush1.msra.mxu0 %v331
        %3857 = vmatprep.subr.mxu0 0.0
        %3858 = vmatpush1.msra.mxu0 0.0
        %3859 = vmatprep.subr.mxu0 0.0
        %3860 = vmatpush1.msra.mxu0 0.0
        %3861 = vmatprep.subr.mxu0 0.0
        %3862 = vmatpush1.msra.mxu0 0.0
        %3863 = vmatprep.subr.mxu0 0.0
        %3864 = vmatpush1.msra.mxu0 0.0
        %3865 = vmatprep.subr.mxu0 0.0
        %3866 = vmatpush1.msra.mxu0 0.0
        %3867 = vmatprep.subr.mxu0 0.0
        %3868 = vmatpush1.msra.mxu0 0.0
        %3869 = vmatprep.subr.mxu0 0.0
        %3870 = vmatpush1.msra.mxu0 0.0
        %3871 = vmatprep.subr.mxu0 0.0
        %3872 = vmatpush1.msra.mxu0 0.0
        %3873 = vmatprep.subr.mxu0 0.0
        %3874 = vmatpush1.msra.mxu0 0.0
        %3875 = vmatprep.subr.mxu0 0.0
        %3876 = vmatpush1.msra.mxu0 0.0
        %3877 = vmatprep.subr.mxu0 0.0
        %3878 = vmatpush1.msra.mxu0 0.0
        %3879 = vmatprep.subr.mxu0 0.0
        %3880 = vmatpush1.msra.mxu0 0.0
        %3881 = vmatprep.subr.mxu0 0.0
        %3882 = vmatpush1.msra.mxu0 0.0
        %3883 = vmatprep.subr.mxu0 0.0
        %3884 = vmatpush1.msra.mxu0 0.0
        %3885 = vmatprep.subr.mxu0 0.0
        %3886 = vmatpush1.msra.mxu0 0.0
        %3887 = vmatprep.subr.mxu0 0.0
        %3888 = vmatpush1.msra.mxu0 0.0
        %3889 = vmatprep.subr.mxu0 0.0
        %3890 = vmatpush1.msra.mxu0 0.0
        %3891 = vmatprep.subr.mxu0 0.0
        %3892 = vmatpush1.msra.mxu0 0.0
        %3893 = vmatprep.subr.mxu0 0.0
        %3894 = vmatpush1.msra.mxu0 0.0
        %3895 = vmatprep.subr.mxu0 0.0
        %3896 = vmatpush1.msra.mxu0 0.0
        %3897 = vmatprep.subr.mxu0 0.0
        %3898 = vmatpush1.msra.mxu0 0.0
        %3899 = vmatprep.subr.mxu0 0.0
        %3900 = vmatpush1.msra.mxu0 0.0
        %3901 = vmatprep.subr.mxu0 0.0
        %3902 = vmatpush1.msra.mxu0 0.0
        %3903 = vmatprep.subr.mxu0 0.0
        %3904 = vmatpush1.msra.mxu0 0.0
        %3905 = vmatprep.subr.mxu0 0.0
        %3906 = vmatpush1.msra.mxu0 0.0
        %3907 = vmatprep.subr.mxu0 0.0
        %3908 = vmatpush1.msra.mxu0 0.0
        %3909 = vmatprep.subr.mxu0 0.0
        %3910 = vmatpush1.msra.mxu0 0.0
        %3911 = vmatprep.subr.mxu0 0.0
        %3912 = vmatpush1.msra.mxu0 0.0
        %3913 = vmatprep.subr.mxu0 0.0
        %3914 = vmatpush1.msra.mxu0 0.0
        %3915 = vmatprep.subr.mxu0 0.0
        %3916 = vmatpush1.msra.mxu0 0.0
        %3917 = vmatprep.mubr.f32.mxu0 0.0
        %3918 = vmatmul.mubr.f32.gmra.mrb[0].mxu0 %v3848
        %v3919 = vpop.f32.mrb[0].mxu0
        %v3920 = vadd.f32 0.0, %v3919
        %v3921 = vpop.f32.mrb[0].mxu0
        %3922 = vmatprep.mubr.f32.mxu0 0.0
        %3923 = vmatmul.mubr.f32.gmra.mrb[0].mxu0 %v3851
        %v3924 = vpop.f32.mrb[0].mxu0
        %v3925 = vadd.f32 0.0, %v3924
        %v3926 = vpop.f32.mrb[0].mxu0
        %3927 = vdwg.mxu0
        %vm3928 = vcmp.le.s32.totalorder %v772, %v775
        %vm3929 = vcmp.le.s32.totalorder %v772, %v776
        %v3930 = vsel %vm3928, 1, 0
        %v3931 = vsel %vm3929, 1, 0
        %v3932 = vcvt.s32.f32 %v3930
        %v3933 = vcvt.s32.f32 %v3931
        %v3935 = vsel %vm697, %v3932, 0
        %v3938 = vsel %vm697, %v3933, 0
        %3940 = vmatprep.subr.mxu0 0.0
        %3941 = vmatpush1.msra.mxu0 %v324
        %3942 = vmatprep.subr.mxu0 0.0
        %3943 = vmatpush1.msra.mxu0 %v325
        %3944 = vmatprep.subr.mxu0 0.0
        %3945 = vmatpush1.msra.mxu0 0.0
        %3946 = vmatprep.subr.mxu0 0.0
        %3947 = vmatpush1.msra.mxu0 0.0
        %3948 = vmatprep.subr.mxu0 0.0
        %3949 = vmatpush1.msra.mxu0 0.0
        %3950 = vmatprep.subr.mxu0 0.0
        %3951 = vmatpush1.msra.mxu0 0.0
        %3952 = vmatprep.subr.mxu0 0.0
        %3953 = vmatpush1.msra.mxu0 0.0
        %3954 = vmatprep.subr.mxu0 0.0
        %3955 = vmatpush1.msra.mxu0 0.0
        %3956 = vmatprep.subr.mxu0 0.0
        %3957 = vmatpush1.msra.mxu0 0.0
        %3958 = vmatprep.subr.mxu0 0.0
        %3959 = vmatpush1.msra.mxu0 0.0
        %3960 = vmatprep.subr.mxu0 0.0
        %3961 = vmatpush1.msra.mxu0 0.0
        %3962 = vmatprep.subr.mxu0 0.0
        %3963 = vmatpush1.msra.mxu0 0.0
        %3964 = vmatprep.subr.mxu0 0.0
        %3965 = vmatpush1.msra.mxu0 0.0
        %3966 = vmatprep.subr.mxu0 0.0
        %3967 = vmatpush1.msra.mxu0 0.0
        %3968 = vmatprep.subr.mxu0 0.0
        %3969 = vmatpush1.msra.mxu0 0.0
        %3970 = vmatprep.subr.mxu0 0.0
        %3971 = vmatpush1.msra.mxu0 0.0
        %3972 = vmatprep.subr.mxu0 0.0
        %3973 = vmatpush1.msra.mxu0 0.0
        %3974 = vmatprep.subr.mxu0 0.0
        %3975 = vmatpush1.msra.mxu0 0.0
        %3976 = vmatprep.subr.mxu0 0.0
        %3977 = vmatpush1.msra.mxu0 0.0
        %3978 = vmatprep.subr.mxu0 0.0
        %3979 = vmatpush1.msra.mxu0 0.0
        %3980 = vmatprep.subr.mxu0 0.0
        %3981 = vmatpush1.msra.mxu0 0.0
        %3982 = vmatprep.subr.mxu0 0.0
        %3983 = vmatpush1.msra.mxu0 0.0
        %3984 = vmatprep.subr.mxu0 0.0
        %3985 = vmatpush1.msra.mxu0 0.0
        %3986 = vmatprep.subr.mxu0 0.0
        %3987 = vmatpush1.msra.mxu0 0.0
        %3988 = vmatprep.subr.mxu0 0.0
        %3989 = vmatpush1.msra.mxu0 0.0
        %3990 = vmatprep.subr.mxu0 0.0
        %3991 = vmatpush1.msra.mxu0 0.0
        %3992 = vmatprep.subr.mxu0 0.0
        %3993 = vmatpush1.msra.mxu0 0.0
        %3994 = vmatprep.subr.mxu0 0.0
        %3995 = vmatpush1.msra.mxu0 0.0
        %3996 = vmatprep.subr.mxu0 0.0
        %3997 = vmatpush1.msra.mxu0 0.0
        %3998 = vmatprep.subr.mxu0 0.0
        %3999 = vmatpush1.msra.mxu0 0.0
        %4000 = vmatprep.subr.mxu0 0.0
        %4001 = vmatpush1.msra.mxu0 0.0
        %4002 = vmatprep.subr.mxu0 0.0
        %4003 = vmatpush1.msra.mxu0 0.0
        %4004 = vmatprep.mubr.f32.mxu0 0.0
        %4005 = vmatmul.mubr.f32.gmra.mrb[0].mxu0 %v3935
        %v4006 = vpop.f32.mrb[0].mxu0
        %v4007 = vadd.f32 0.0, %v4006
        %v4008 = vpop.f32.mrb[0].mxu0
        %4009 = vmatprep.mubr.f32.mxu0 0.0
        %4010 = vmatmul.mubr.f32.gmra.mrb[0].mxu0 %v3938
        %v4011 = vpop.f32.mrb[0].mxu0
        %v4012 = vadd.f32 0.0, %v4011
        %v4013 = vpop.f32.mrb[0].mxu0
        %4014 = vdwg.mxu0
        %4015 = vmatprep.subr.mxu0 0.0
        %4016 = vmatpush1.msra.mxu0 %v326
        %4017 = vmatprep.subr.mxu0 0.0
        %4018 = vmatpush1.msra.mxu0 %v327
        %4019 = vmatprep.subr.mxu0 0.0
        %4020 = vmatpush1.msra.mxu0 0.0
        %4021 = vmatprep.subr.mxu0 0.0
        %4022 = vmatpush1.msra.mxu0 0.0
        %4023 = vmatprep.subr.mxu0 0.0
        %4024 = vmatpush1.msra.mxu0 0.0
        %4025 = vmatprep.subr.mxu0 0.0
        %4026 = vmatpush1.msra.mxu0 0.0
        %4027 = vmatprep.subr.mxu0 0.0
        %4028 = vmatpush1.msra.mxu0 0.0
        %4029 = vmatprep.subr.mxu0 0.0
        %4030 = vmatpush1.msra.mxu0 0.0
        %4031 = vmatprep.subr.mxu0 0.0
        %4032 = vmatpush1.msra.mxu0 0.0
        %4033 = vmatprep.subr.mxu0 0.0
        %4034 = vmatpush1.msra.mxu0 0.0
        %4035 = vmatprep.subr.mxu0 0.0
        %4036 = vmatpush1.msra.mxu0 0.0
        %4037 = vmatprep.subr.mxu0 0.0
        %4038 = vmatpush1.msra.mxu0 0.0
        %4039 = vmatprep.subr.mxu0 0.0
        %4040 = vmatpush1.msra.mxu0 0.0
        %4041 = vmatprep.subr.mxu0 0.0
        %4042 = vmatpush1.msra.mxu0 0.0
        %4043 = vmatprep.subr.mxu0 0.0
        %4044 = vmatpush1.msra.mxu0 0.0
        %4045 = vmatprep.subr.mxu0 0.0
        %4046 = vmatpush1.msra.mxu0 0.0
        %4047 = vmatprep.subr.mxu0 0.0
        %4048 = vmatpush1.msra.mxu0 0.0
        %4049 = vmatprep.subr.mxu0 0.0
        %4050 = vmatpush1.msra.mxu0 0.0
        %4051 = vmatprep.subr.mxu0 0.0
        %4052 = vmatpush1.msra.mxu0 0.0
        %4053 = vmatprep.subr.mxu0 0.0
        %4054 = vmatpush1.msra.mxu0 0.0
        %4055 = vmatprep.subr.mxu0 0.0
        %4056 = vmatpush1.msra.mxu0 0.0
        %4057 = vmatprep.subr.mxu0 0.0
        %4058 = vmatpush1.msra.mxu0 0.0
        %4059 = vmatprep.subr.mxu0 0.0
        %4060 = vmatpush1.msra.mxu0 0.0
        %4061 = vmatprep.subr.mxu0 0.0
        %4062 = vmatpush1.msra.mxu0 0.0
        %4063 = vmatprep.subr.mxu0 0.0
        %4064 = vmatpush1.msra.mxu0 0.0
        %4065 = vmatprep.subr.mxu0 0.0
        %4066 = vmatpush1.msra.mxu0 0.0
        %4067 = vmatprep.subr.mxu0 0.0
        %4068 = vmatpush1.msra.mxu0 0.0
        %4069 = vmatprep.subr.mxu0 0.0
        %4070 = vmatpush1.msra.mxu0 0.0
        %4071 = vmatprep.subr.mxu0 0.0
        %4072 = vmatpush1.msra.mxu0 0.0
        %4073 = vmatprep.subr.mxu0 0.0
        %4074 = vmatpush1.msra.mxu0 0.0
        %4075 = vmatprep.subr.mxu0 0.0
        %4076 = vmatpush1.msra.mxu0 0.0
        %4077 = vmatprep.subr.mxu0 0.0
        %4078 = vmatpush1.msra.mxu0 0.0
        %4079 = vmatprep.mubr.f32.mxu0 0.0
        %4080 = vmatmul.mubr.f32.gmra.mrb[0].mxu0 %v3935
        %v4081 = vpop.f32.mrb[0].mxu0
        %v4082 = vadd.f32 0.0, %v4081
        %v4083 = vpop.f32.mrb[0].mxu0
        %4084 = vmatprep.mubr.f32.mxu0 0.0
        %4085 = vmatmul.mubr.f32.gmra.mrb[0].mxu0 %v3938
        %v4086 = vpop.f32.mrb[0].mxu0
        %v4087 = vadd.f32 0.0, %v4086
        %v4088 = vpop.f32.mrb[0].mxu0
        %4089 = vdwg.mxu0
        %4090 = vmatprep.subr.mxu0 0.0
        %4091 = vmatpush1.msra.mxu0 %v328
        %4092 = vmatprep.subr.mxu0 0.0
        %4093 = vmatpush1.msra.mxu0 %v329
        %4094 = vmatprep.subr.mxu0 0.0
        %4095 = vmatpush1.msra.mxu0 0.0
        %4096 = vmatprep.subr.mxu0 0.0
        %4097 = vmatpush1.msra.mxu0 0.0
        %4098 = vmatprep.subr.mxu0 0.0
        %4099 = vmatpush1.msra.mxu0 0.0
        %4100 = vmatprep.subr.mxu0 0.0
        %4101 = vmatpush1.msra.mxu0 0.0
        %4102 = vmatprep.subr.mxu0 0.0
        %4103 = vmatpush1.msra.mxu0 0.0
        %4104 = vmatprep.subr.mxu0 0.0
        %4105 = vmatpush1.msra.mxu0 0.0
        %4106 = vmatprep.subr.mxu0 0.0
        %4107 = vmatpush1.msra.mxu0 0.0
        %4108 = vmatprep.subr.mxu0 0.0
        %4109 = vmatpush1.msra.mxu0 0.0
        %4110 = vmatprep.subr.mxu0 0.0
        %4111 = vmatpush1.msra.mxu0 0.0
        %4112 = vmatprep.subr.mxu0 0.0
        %4113 = vmatpush1.msra.mxu0 0.0
        %4114 = vmatprep.subr.mxu0 0.0
        %4115 = vmatpush1.msra.mxu0 0.0
        %4116 = vmatprep.subr.mxu0 0.0
        %4117 = vmatpush1.msra.mxu0 0.0
        %4118 = vmatprep.subr.mxu0 0.0
        %4119 = vmatpush1.msra.mxu0 0.0
        %4120 = vmatprep.subr.mxu0 0.0
        %4121 = vmatpush1.msra.mxu0 0.0
        %4122 = vmatprep.subr.mxu0 0.0
        %4123 = vmatpush1.msra.mxu0 0.0
        %4124 = vmatprep.subr.mxu0 0.0
        %4125 = vmatpush1.msra.mxu0 0.0
        %4126 = vmatprep.subr.mxu0 0.0
        %4127 = vmatpush1.msra.mxu0 0.0
        %4128 = vmatprep.subr.mxu0 0.0
        %4129 = vmatpush1.msra.mxu0 0.0
        %4130 = vmatprep.subr.mxu0 0.0
        %4131 = vmatpush1.msra.mxu0 0.0
        %4132 = vmatprep.subr.mxu0 0.0
        %4133 = vmatpush1.msra.mxu0 0.0
        %4134 = vmatprep.subr.mxu0 0.0
        %4135 = vmatpush1.msra.mxu0 0.0
        %4136 = vmatprep.subr.mxu0 0.0
        %4137 = vmatpush1.msra.mxu0 0.0
        %4138 = vmatprep.subr.mxu0 0.0
        %4139 = vmatpush1.msra.mxu0 0.0
        %4140 = vmatprep.subr.mxu0 0.0
        %4141 = vmatpush1.msra.mxu0 0.0
        %4142 = vmatprep.subr.mxu0 0.0
        %4143 = vmatpush1.msra.mxu0 0.0
        %4144 = vmatprep.subr.mxu0 0.0
        %4145 = vmatpush1.msra.mxu0 0.0
        %4146 = vmatprep.subr.mxu0 0.0
        %4147 = vmatpush1.msra.mxu0 0.0
        %4148 = vmatprep.subr.mxu0 0.0
        %4149 = vmatpush1.msra.mxu0 0.0
        %4150 = vmatprep.subr.mxu0 0.0
        %4151 = vmatpush1.msra.mxu0 0.0
        %4152 = vmatprep.subr.mxu0 0.0
        %4153 = vmatpush1.msra.mxu0 0.0
        %4154 = vmatprep.mubr.f32.mxu0 0.0
        %4155 = vmatmul.mubr.f32.gmra.mrb[0].mxu0 %v3935
        %v4156 = vpop.f32.mrb[0].mxu0
        %v4157 = vadd.f32 0.0, %v4156
        %v4158 = vpop.f32.mrb[0].mxu0
        %4159 = vmatprep.mubr.f32.mxu0 0.0
        %4160 = vmatmul.mubr.f32.gmra.mrb[0].mxu0 %v3938
        %v4161 = vpop.f32.mrb[0].mxu0
        %v4162 = vadd.f32 0.0, %v4161
        %v4163 = vpop.f32.mrb[0].mxu0
        %4164 = vdwg.mxu0
        %4165 = vmatprep.subr.mxu0 0.0
        %4166 = vmatpush1.msra.mxu0 %v330
        %4167 = vmatprep.subr.mxu0 0.0
        %4168 = vmatpush1.msra.mxu0 %v331
        %4169 = vmatprep.subr.mxu0 0.0
        %4170 = vmatpush1.msra.mxu0 0.0
        %4171 = vmatprep.subr.mxu0 0.0
        %4172 = vmatpush1.msra.mxu0 0.0
        %4173 = vmatprep.subr.mxu0 0.0
        %4174 = vmatpush1.msra.mxu0 0.0
        %4175 = vmatprep.subr.mxu0 0.0
        %4176 = vmatpush1.msra.mxu0 0.0
        %4177 = vmatprep.subr.mxu0 0.0
        %4178 = vmatpush1.msra.mxu0 0.0
        %4179 = vmatprep.subr.mxu0 0.0
        %4180 = vmatpush1.msra.mxu0 0.0
        %4181 = vmatprep.subr.mxu0 0.0
        %4182 = vmatpush1.msra.mxu0 0.0
        %4183 = vmatprep.subr.mxu0 0.0
        %4184 = vmatpush1.msra.mxu0 0.0
        %4185 = vmatprep.subr.mxu0 0.0
        %4186 = vmatpush1.msra.mxu0 0.0
        %4187 = vmatprep.subr.mxu0 0.0
        %4188 = vmatpush1.msra.mxu0 0.0
        %4189 = vmatprep.subr.mxu0 0.0
        %4190 = vmatpush1.msra.mxu0 0.0
        %4191 = vmatprep.subr.mxu0 0.0
        %4192 = vmatpush1.msra.mxu0 0.0
        %4193 = vmatprep.subr.mxu0 0.0
        %4194 = vmatpush1.msra.mxu0 0.0
        %4195 = vmatprep.subr.mxu0 0.0
        %4196 = vmatpush1.msra.mxu0 0.0
        %4197 = vmatprep.subr.mxu0 0.0
        %4198 = vmatpush1.msra.mxu0 0.0
        %4199 = vmatprep.subr.mxu0 0.0
        %4200 = vmatpush1.msra.mxu0 0.0
        %4201 = vmatprep.subr.mxu0 0.0
        %4202 = vmatpush1.msra.mxu0 0.0
        %4203 = vmatprep.subr.mxu0 0.0
        %4204 = vmatpush1.msra.mxu0 0.0
        %4205 = vmatprep.subr.mxu0 0.0
        %4206 = vmatpush1.msra.mxu0 0.0
        %4207 = vmatprep.subr.mxu0 0.0
        %4208 = vmatpush1.msra.mxu0 0.0
        %4209 = vmatprep.subr.mxu0 0.0
        %4210 = vmatpush1.msra.mxu0 0.0
        %4211 = vmatprep.subr.mxu0 0.0
        %4212 = vmatpush1.msra.mxu0 0.0
        %4213 = vmatprep.subr.mxu0 0.0
        %4214 = vmatpush1.msra.mxu0 0.0
        %4215 = vmatprep.subr.mxu0 0.0
        %4216 = vmatpush1.msra.mxu0 0.0
        %4217 = vmatprep.subr.mxu0 0.0
        %4218 = vmatpush1.msra.mxu0 0.0
        %4219 = vmatprep.subr.mxu0 0.0
        %4220 = vmatpush1.msra.mxu0 0.0
        %4221 = vmatprep.subr.mxu0 0.0
        %4222 = vmatpush1.msra.mxu0 0.0
        %4223 = vmatprep.subr.mxu0 0.0
        %4224 = vmatpush1.msra.mxu0 0.0
        %4225 = vmatprep.subr.mxu0 0.0
        %4226 = vmatpush1.msra.mxu0 0.0
        %4227 = vmatprep.subr.mxu0 0.0
        %4228 = vmatpush1.msra.mxu0 0.0
        %4229 = vmatprep.mubr.f32.mxu0 0.0
        %4230 = vmatmul.mubr.f32.gmra.mrb[0].mxu0 %v3935
        %v4231 = vpop.f32.mrb[0].mxu0
        %v4232 = vadd.f32 0.0, %v4231
        %v4233 = vpop.f32.mrb[0].mxu0
        %4234 = vmatprep.mubr.f32.mxu0 0.0
        %4235 = vmatmul.mubr.f32.gmra.mrb[0].mxu0 %v3938
        %v4236 = vpop.f32.mrb[0].mxu0
        %v4237 = vadd.f32 0.0, %v4236
        %v4238 = vpop.f32.mrb[0].mxu0
        %4239 = vdwg.mxu0
        %v4240 = vsel %vm697, %v3023, 0.0
        %v4241 = vsel %vm3146, %v3024, 0.0
        %v4242 = vadd.f32 %v4240, %v4241
        %v4243 = vrot.slane %v4242, 4
        %v4244 = vadd.f32 %v4242, %v4243
        %v4245 = vrot.slane %v4244, 2
        %v4246 = vadd.f32 %v4244, %v4245
        %v4247 = vrot.slane %v4246, 1
        %v4248 = vadd.f32 %v4246, %v4247
        %v4249 = vsel %vm697, %v3025, 0.0
        %v4250 = vsel %vm3146, %v3026, 0.0
        %v4251 = vadd.f32 %v4249, %v4250
        %v4252 = vrot.slane %v4251, 4
        %v4253 = vadd.f32 %v4251, %v4252
        %v4254 = vrot.slane %v4253, 2
        %v4255 = vadd.f32 %v4253, %v4254
        %v4256 = vrot.slane %v4255, 1
        %v4257 = vadd.f32 %v4255, %v4256
        %v4258 = vsel %vm697, %v3027, 0.0
        %v4259 = vsel %vm3146, %v3028, 0.0
        %v4260 = vadd.f32 %v4258, %v4259
        %v4261 = vrot.slane %v4260, 4
        %v4262 = vadd.f32 %v4260, %v4261
        %v4263 = vrot.slane %v4262, 2
        %v4264 = vadd.f32 %v4262, %v4263
        %v4265 = vrot.slane %v4264, 1
        %v4266 = vadd.f32 %v4264, %v4265
        %v4267 = vsel %vm697, %v3029, 0.0
        %v4268 = vsel %vm3146, %v3030, 0.0
        %v4269 = vadd.f32 %v4267, %v4268
        %v4270 = vrot.slane %v4269, 4
        %v4271 = vadd.f32 %v4269, %v4270
        %v4272 = vrot.slane %v4271, 2
        %v4273 = vadd.f32 %v4271, %v4272
        %v4274 = vrot.slane %v4273, 1
        %v4275 = vadd.f32 %v4273, %v4274
        %vm4276 = vcmask 121856
        %v4278 = vsel %vm4276, %v3083, 0
        %v4281 = vsel %vm4276, %v3084, 0
        %vm4283 = vcmask 1046528
        %v4285 = vsel %vm4283, %v3682, 0
        %4287 = vmatprep.subr.mxu0 0.0
        %4288 = vmatpush1.msra.mxu0 %v3677
        %4289 = vmatprep.subr.mxu0 0.0
        %4290 = vmatpush1.msra.mxu0 %v4285
        %4291 = vmatprep.subr.mxu0 0.0
        %4292 = vmatpush1.msra.mxu0 0.0
        %4293 = vmatprep.subr.mxu0 0.0
        %4294 = vmatpush1.msra.mxu0 0.0
        %4295 = vmatprep.subr.mxu0 0.0
        %4296 = vmatpush1.msra.mxu0 0.0
        %4297 = vmatprep.subr.mxu0 0.0
        %4298 = vmatpush1.msra.mxu0 0.0
        %4299 = vmatprep.subr.mxu0 0.0
        %4300 = vmatpush1.msra.mxu0 0.0
        %4301 = vmatprep.subr.mxu0 0.0
        %4302 = vmatpush1.msra.mxu0 0.0
        %4303 = vmatprep.subr.mxu0 0.0
        %4304 = vmatpush1.msra.mxu0 0.0
        %4305 = vmatprep.subr.mxu0 0.0
        %4306 = vmatpush1.msra.mxu0 0.0
        %4307 = vmatprep.subr.mxu0 0.0
        %4308 = vmatpush1.msra.mxu0 0.0
        %4309 = vmatprep.subr.mxu0 0.0
        %4310 = vmatpush1.msra.mxu0 0.0
        %4311 = vmatprep.subr.mxu0 0.0
        %4312 = vmatpush1.msra.mxu0 0.0
        %4313 = vmatprep.subr.mxu0 0.0
        %4314 = vmatpush1.msra.mxu0 0.0
        %4315 = vmatprep.subr.mxu0 0.0
        %4316 = vmatpush1.msra.mxu0 0.0
        %4317 = vmatprep.subr.mxu0 0.0
        %4318 = vmatpush1.msra.mxu0 0.0
        %4319 = vmatprep.subr.mxu0 0.0
        %4320 = vmatpush1.msra.mxu0 0.0
        %4321 = vmatprep.subr.mxu0 0.0
        %4322 = vmatpush1.msra.mxu0 0.0
        %4323 = vmatprep.subr.mxu0 0.0
        %4324 = vmatpush1.msra.mxu0 0.0
        %4325 = vmatprep.subr.mxu0 0.0
        %4326 = vmatpush1.msra.mxu0 0.0
        %4327 = vmatprep.subr.mxu0 0.0
        %4328 = vmatpush1.msra.mxu0 0.0
        %4329 = vmatprep.subr.mxu0 0.0
        %4330 = vmatpush1.msra.mxu0 0.0
        %4331 = vmatprep.subr.mxu0 0.0
        %4332 = vmatpush1.msra.mxu0 0.0
        %4333 = vmatprep.subr.mxu0 0.0
        %4334 = vmatpush1.msra.mxu0 0.0
        %4335 = vmatprep.subr.mxu0 0.0
        %4336 = vmatpush1.msra.mxu0 0.0
        %4337 = vmatprep.subr.mxu0 0.0
        %4338 = vmatpush1.msra.mxu0 0.0
        %4339 = vmatprep.subr.mxu0 0.0
        %4340 = vmatpush1.msra.mxu0 0.0
        %4341 = vmatprep.subr.mxu0 0.0
        %4342 = vmatpush1.msra.mxu0 0.0
        %4343 = vmatprep.subr.mxu0 0.0
        %4344 = vmatpush1.msra.mxu0 0.0
        %4345 = vmatprep.subr.mxu0 0.0
        %4346 = vmatpush1.msra.mxu0 0.0
        %4347 = vmatprep.subr.mxu0 0.0
        %4348 = vmatpush1.msra.mxu0 0.0
        %4349 = vmatprep.subr.mxu0 0.0
        %4350 = vmatpush1.msra.mxu0 0.0
        %4351 = vmatprep.mubr.f32.mxu0 0.0
        %4352 = vmatmul.mubr.f32.gmra.mrb[0].mxu0 %v4278
        %v4353 = vpop.f32.mrb[0].mxu0
        %v4354 = vadd.f32 0.0, %v4353
        %v4355 = vpop.f32.mrb[0].mxu0
        %4356 = vmatprep.mubr.f32.mxu0 0.0
        %4357 = vmatmul.mubr.f32.gmra.mrb[0].mxu0 %v4281
        %v4358 = vpop.f32.mrb[0].mxu0
        %v4359 = vadd.f32 0.0, %v4358
        %v4360 = vpop.f32.mrb[0].mxu0
        %4361 = vdwg.mxu0
        %v4363 = vsel %vm4276, %v3085, 0
        %v4366 = vsel %vm4276, %v3086, 0
        %v4369 = vsel %vm4283, %v3763, 0
        %4371 = vmatprep.subr.mxu0 0.0
        %4372 = vmatpush1.msra.mxu0 %v3758
        %4373 = vmatprep.subr.mxu0 0.0
        %4374 = vmatpush1.msra.mxu0 %v4369
        %4375 = vmatprep.subr.mxu0 0.0
        %4376 = vmatpush1.msra.mxu0 0.0
        %4377 = vmatprep.subr.mxu0 0.0
        %4378 = vmatpush1.msra.mxu0 0.0
        %4379 = vmatprep.subr.mxu0 0.0
        %4380 = vmatpush1.msra.mxu0 0.0
        %4381 = vmatprep.subr.mxu0 0.0
        %4382 = vmatpush1.msra.mxu0 0.0
        %4383 = vmatprep.subr.mxu0 0.0
        %4384 = vmatpush1.msra.mxu0 0.0
        %4385 = vmatprep.subr.mxu0 0.0
        %4386 = vmatpush1.msra.mxu0 0.0
        %4387 = vmatprep.subr.mxu0 0.0
        %4388 = vmatpush1.msra.mxu0 0.0
        %4389 = vmatprep.subr.mxu0 0.0
        %4390 = vmatpush1.msra.mxu0 0.0
        %4391 = vmatprep.subr.mxu0 0.0
        %4392 = vmatpush1.msra.mxu0 0.0
        %4393 = vmatprep.subr.mxu0 0.0
        %4394 = vmatpush1.msra.mxu0 0.0
        %4395 = vmatprep.subr.mxu0 0.0
        %4396 = vmatpush1.msra.mxu0 0.0
        %4397 = vmatprep.subr.mxu0 0.0
        %4398 = vmatpush1.msra.mxu0 0.0
        %4399 = vmatprep.subr.mxu0 0.0
        %4400 = vmatpush1.msra.mxu0 0.0
        %4401 = vmatprep.subr.mxu0 0.0
        %4402 = vmatpush1.msra.mxu0 0.0
        %4403 = vmatprep.subr.mxu0 0.0
        %4404 = vmatpush1.msra.mxu0 0.0
        %4405 = vmatprep.subr.mxu0 0.0
        %4406 = vmatpush1.msra.mxu0 0.0
        %4407 = vmatprep.subr.mxu0 0.0
        %4408 = vmatpush1.msra.mxu0 0.0
        %4409 = vmatprep.subr.mxu0 0.0
        %4410 = vmatpush1.msra.mxu0 0.0
        %4411 = vmatprep.subr.mxu0 0.0
        %4412 = vmatpush1.msra.mxu0 0.0
        %4413 = vmatprep.subr.mxu0 0.0
        %4414 = vmatpush1.msra.mxu0 0.0
        %4415 = vmatprep.subr.mxu0 0.0
        %4416 = vmatpush1.msra.mxu0 0.0
        %4417 = vmatprep.subr.mxu0 0.0
        %4418 = vmatpush1.msra.mxu0 0.0
        %4419 = vmatprep.subr.mxu0 0.0
        %4420 = vmatpush1.msra.mxu0 0.0
        %4421 = vmatprep.subr.mxu0 0.0
        %4422 = vmatpush1.msra.mxu0 0.0
        %4423 = vmatprep.subr.mxu0 0.0
        %4424 = vmatpush1.msra.mxu0 0.0
        %4425 = vmatprep.subr.mxu0 0.0
        %4426 = vmatpush1.msra.mxu0 0.0
        %4427 = vmatprep.subr.mxu0 0.0
        %4428 = vmatpush1.msra.mxu0 0.0
        %4429 = vmatprep.subr.mxu0 0.0
        %4430 = vmatpush1.msra.mxu0 0.0
        %4431 = vmatprep.subr.mxu0 0.0
        %4432 = vmatpush1.msra.mxu0 0.0
        %4433 = vmatprep.subr.mxu0 0.0
        %4434 = vmatpush1.msra.mxu0 0.0
        %4435 = vmatprep.mubr.f32.mxu0 0.0
        %4436 = vmatmul.mubr.f32.gmra.mrb[0].mxu0 %v4363
        %v4437 = vpop.f32.mrb[0].mxu0
        %v4438 = vadd.f32 0.0, %v4437
        %v4439 = vpop.f32.mrb[0].mxu0
        %4440 = vmatprep.mubr.f32.mxu0 0.0
        %4441 = vmatmul.mubr.f32.gmra.mrb[0].mxu0 %v4366
        %v4442 = vpop.f32.mrb[0].mxu0
        %v4443 = vadd.f32 0.0, %v4442
        %v4444 = vpop.f32.mrb[0].mxu0
        %4445 = vdwg.mxu0
        %v4447 = vsel %vm4276, %v3087, 0
        %v4450 = vsel %vm4276, %v3088, 0
        %v4453 = vsel %vm4283, %v3844, 0
        %4455 = vmatprep.subr.mxu0 0.0
        %4456 = vmatpush1.msra.mxu0 %v3839
        %4457 = vmatprep.subr.mxu0 0.0
        %4458 = vmatpush1.msra.mxu0 %v4453
        %4459 = vmatprep.subr.mxu0 0.0
        %4460 = vmatpush1.msra.mxu0 0.0
        %4461 = vmatprep.subr.mxu0 0.0
        %4462 = vmatpush1.msra.mxu0 0.0
        %4463 = vmatprep.subr.mxu0 0.0
        %4464 = vmatpush1.msra.mxu0 0.0
        %4465 = vmatprep.subr.mxu0 0.0
        %4466 = vmatpush1.msra.mxu0 0.0
        %4467 = vmatprep.subr.mxu0 0.0
        %4468 = vmatpush1.msra.mxu0 0.0
        %4469 = vmatprep.subr.mxu0 0.0
        %4470 = vmatpush1.msra.mxu0 0.0
        %4471 = vmatprep.subr.mxu0 0.0
        %4472 = vmatpush1.msra.mxu0 0.0
        %4473 = vmatprep.subr.mxu0 0.0
        %4474 = vmatpush1.msra.mxu0 0.0
        %4475 = vmatprep.subr.mxu0 0.0
        %4476 = vmatpush1.msra.mxu0 0.0
        %4477 = vmatprep.subr.mxu0 0.0
        %4478 = vmatpush1.msra.mxu0 0.0
        %4479 = vmatprep.subr.mxu0 0.0
        %4480 = vmatpush1.msra.mxu0 0.0
        %4481 = vmatprep.subr.mxu0 0.0
        %4482 = vmatpush1.msra.mxu0 0.0
        %4483 = vmatprep.subr.mxu0 0.0
        %4484 = vmatpush1.msra.mxu0 0.0
        %4485 = vmatprep.subr.mxu0 0.0
        %4486 = vmatpush1.msra.mxu0 0.0
        %4487 = vmatprep.subr.mxu0 0.0
        %4488 = vmatpush1.msra.mxu0 0.0
        %4489 = vmatprep.subr.mxu0 0.0
        %4490 = vmatpush1.msra.mxu0 0.0
        %4491 = vmatprep.subr.mxu0 0.0
        %4492 = vmatpush1.msra.mxu0 0.0
        %4493 = vmatprep.subr.mxu0 0.0
        %4494 = vmatpush1.msra.mxu0 0.0
        %4495 = vmatprep.subr.mxu0 0.0
        %4496 = vmatpush1.msra.mxu0 0.0
        %4497 = vmatprep.subr.mxu0 0.0
        %4498 = vmatpush1.msra.mxu0 0.0
        %4499 = vmatprep.subr.mxu0 0.0
        %4500 = vmatpush1.msra.mxu0 0.0
        %4501 = vmatprep.subr.mxu0 0.0
        %4502 = vmatpush1.msra.mxu0 0.0
        %4503 = vmatprep.subr.mxu0 0.0
        %4504 = vmatpush1.msra.mxu0 0.0
        %4505 = vmatprep.subr.mxu0 0.0
        %4506 = vmatpush1.msra.mxu0 0.0
        %4507 = vmatprep.subr.mxu0 0.0
        %4508 = vmatpush1.msra.mxu0 0.0
        %4509 = vmatprep.subr.mxu0 0.0
        %4510 = vmatpush1.msra.mxu0 0.0
        %4511 = vmatprep.subr.mxu0 0.0
        %4512 = vmatpush1.msra.mxu0 0.0
        %4513 = vmatprep.subr.mxu0 0.0
        %4514 = vmatpush1.msra.mxu0 0.0
        %4515 = vmatprep.subr.mxu0 0.0
        %4516 = vmatpush1.msra.mxu0 0.0
        %4517 = vmatprep.subr.mxu0 0.0
        %4518 = vmatpush1.msra.mxu0 0.0
        %4519 = vmatprep.mubr.f32.mxu0 0.0
        %4520 = vmatmul.mubr.f32.gmra.mrb[0].mxu0 %v4447
        %v4521 = vpop.f32.mrb[0].mxu0
        %v4522 = vadd.f32 0.0, %v4521
        %v4523 = vpop.f32.mrb[0].mxu0
        %4524 = vmatprep.mubr.f32.mxu0 0.0
        %4525 = vmatmul.mubr.f32.gmra.mrb[0].mxu0 %v4450
        %v4526 = vpop.f32.mrb[0].mxu0
        %v4527 = vadd.f32 0.0, %v4526
        %v4528 = vpop.f32.mrb[0].mxu0
        %4529 = vdwg.mxu0
        %v4531 = vsel %vm4276, %v3089, 0
        %v4534 = vsel %vm4276, %v3090, 0
        %v4537 = vsel %vm4283, %v3925, 0
        %4539 = vmatprep.subr.mxu0 0.0
        %4540 = vmatpush1.msra.mxu0 %v3920
        %4541 = vmatprep.subr.mxu0 0.0
        %4542 = vmatpush1.msra.mxu0 %v4537
        %4543 = vmatprep.subr.mxu0 0.0
        %4544 = vmatpush1.msra.mxu0 0.0
        %4545 = vmatprep.subr.mxu0 0.0
        %4546 = vmatpush1.msra.mxu0 0.0
        %4547 = vmatprep.subr.mxu0 0.0
        %4548 = vmatpush1.msra.mxu0 0.0
        %4549 = vmatprep.subr.mxu0 0.0
        %4550 = vmatpush1.msra.mxu0 0.0
        %4551 = vmatprep.subr.mxu0 0.0
        %4552 = vmatpush1.msra.mxu0 0.0
        %4553 = vmatprep.subr.mxu0 0.0
        %4554 = vmatpush1.msra.mxu0 0.0
        %4555 = vmatprep.subr.mxu0 0.0
        %4556 = vmatpush1.msra.mxu0 0.0
        %4557 = vmatprep.subr.mxu0 0.0
        %4558 = vmatpush1.msra.mxu0 0.0
        %4559 = vmatprep.subr.mxu0 0.0
        %4560 = vmatpush1.msra.mxu0 0.0
        %4561 = vmatprep.subr.mxu0 0.0
        %4562 = vmatpush1.msra.mxu0 0.0
        %4563 = vmatprep.subr.mxu0 0.0
        %4564 = vmatpush1.msra.mxu0 0.0
        %4565 = vmatprep.subr.mxu0 0.0
        %4566 = vmatpush1.msra.mxu0 0.0
        %4567 = vmatprep.subr.mxu0 0.0
        %4568 = vmatpush1.msra.mxu0 0.0
        %4569 = vmatprep.subr.mxu0 0.0
        %4570 = vmatpush1.msra.mxu0 0.0
        %4571 = vmatprep.subr.mxu0 0.0
        %4572 = vmatpush1.msra.mxu0 0.0
        %4573 = vmatprep.subr.mxu0 0.0
        %4574 = vmatpush1.msra.mxu0 0.0
        %4575 = vmatprep.subr.mxu0 0.0
        %4576 = vmatpush1.msra.mxu0 0.0
        %4577 = vmatprep.subr.mxu0 0.0
        %4578 = vmatpush1.msra.mxu0 0.0
        %4579 = vmatprep.subr.mxu0 0.0
        %4580 = vmatpush1.msra.mxu0 0.0
        %4581 = vmatprep.subr.mxu0 0.0
        %4582 = vmatpush1.msra.mxu0 0.0
        %4583 = vmatprep.subr.mxu0 0.0
        %4584 = vmatpush1.msra.mxu0 0.0
        %4585 = vmatprep.subr.mxu0 0.0
        %4586 = vmatpush1.msra.mxu0 0.0
        %4587 = vmatprep.subr.mxu0 0.0
        %4588 = vmatpush1.msra.mxu0 0.0
        %4589 = vmatprep.subr.mxu0 0.0
        %4590 = vmatpush1.msra.mxu0 0.0
        %4591 = vmatprep.subr.mxu0 0.0
        %4592 = vmatpush1.msra.mxu0 0.0
        %4593 = vmatprep.subr.mxu0 0.0
        %4594 = vmatpush1.msra.mxu0 0.0
        %4595 = vmatprep.subr.mxu0 0.0
        %4596 = vmatpush1.msra.mxu0 0.0
        %4597 = vmatprep.subr.mxu0 0.0
        %4598 = vmatpush1.msra.mxu0 0.0
        %4599 = vmatprep.subr.mxu0 0.0
        %4600 = vmatpush1.msra.mxu0 0.0
        %4601 = vmatprep.subr.mxu0 0.0
        %4602 = vmatpush1.msra.mxu0 0.0
        %4603 = vmatprep.mubr.f32.mxu0 0.0
        %4604 = vmatmul.mubr.f32.gmra.mrb[0].mxu0 %v4531
        %v4605 = vpop.f32.mrb[0].mxu0
        %v4606 = vadd.f32 0.0, %v4605
        %v4607 = vpop.f32.mrb[0].mxu0
        %4608 = vmatprep.mubr.f32.mxu0 0.0
        %4609 = vmatmul.mubr.f32.gmra.mrb[0].mxu0 %v4534
        %v4610 = vpop.f32.mrb[0].mxu0
        %v4611 = vadd.f32 0.0, %v4610
        %v4612 = vpop.f32.mrb[0].mxu0
        %4613 = vdwg.mxu0
        %v4614 = vsub.f32 1.0, %v4248
        %v4615 = vsub.f32 1.0, %v4257
        %v4616 = vsub.f32 1.0, %v4266
        %v4617 = vsub.f32 1.0, %v4275
        %4619 = vbcast.lane.b32.xlu0 %v4614, 256
        %v4620 = vpop.permute.xlu0 %4619
        %s4622 = sor.u32 256, 8
        %4623 = vbcast.lane.b32.xlu0 %v4614, %s4622
        %v4624 = vpop.permute.xlu0 %4623
        %4626 = vbcast.lane.b32.xlu0 %v4615, 256
        %v4627 = vpop.permute.xlu0 %4626
        %s4629 = sor.u32 256, 8
        %4630 = vbcast.lane.b32.xlu0 %v4615, %s4629
        %v4631 = vpop.permute.xlu0 %4630
        %4633 = vbcast.lane.b32.xlu0 %v4616, 256
        %v4634 = vpop.permute.xlu0 %4633
        %s4636 = sor.u32 256, 8
        %4637 = vbcast.lane.b32.xlu0 %v4616, %s4636
        %v4638 = vpop.permute.xlu0 %4637
        %4640 = vbcast.lane.b32.xlu0 %v4617, 256
        %v4641 = vpop.permute.xlu0 %4640
        %s4643 = sor.u32 256, 8
        %4644 = vbcast.lane.b32.xlu0 %v4617, %s4643
        %v4645 = vpop.permute.xlu0 %4644
        %v4646 = vmul.f32 %v4007, %v4620
        %v4647 = vmul.f32 %v4012, %v4624
        %v4648 = vmul.f32 %v4082, %v4627
        %v4649 = vmul.f32 %v4087, %v4631
        %v4650 = vmul.f32 %v4157, %v4634
        %v4651 = vmul.f32 %v4162, %v4638
        %v4652 = vmul.f32 %v4232, %v4641
        %v4653 = vmul.f32 %v4237, %v4645
        %v4654 = vadd.f32 %v4646, %v4354
        %v4655 = vadd.f32 %v4647, %v4359
        %v4656 = vadd.f32 %v4648, %v4438
        %v4657 = vadd.f32 %v4649, %v4443
        %v4658 = vadd.f32 %v4650, %v4522
        %v4659 = vadd.f32 %v4651, %v4527
        %v4660 = vadd.f32 %v4652, %v4606
        %v4661 = vadd.f32 %v4653, %v4611
        %4662 = vst.msk [vmem:[%s307] sm:$0xff] %vm334, %v4654
        %4663 = vst.msk [vmem:[%s307 + $0x8] sm:$0xff] %vm334, %v4655
        %4664 = vst.msk [vmem:[%s307 + $0x10] sm:$0xff] %vm334, %v4656
        %4665 = vst.msk [vmem:[%s307 + $0x18] sm:$0xff] %vm334, %v4657
        %4666 = vst.msk [vmem:[%s307 + $0x20] sm:$0xff] %vm334, %v4658
        %4667 = vst.msk [vmem:[%s307 + $0x28] sm:$0xff] %vm334, %v4659
        %4668 = vst.msk [vmem:[%s307 + $0x30] sm:$0xff] %vm334, %v4660
        %4669 = vst.msk [vmem:[%s307 + $0x38] sm:$0xff] %vm334, %v4661
        %s4670 = sand.u32 %s132, 1
        %s4671 = scalar_lea.sflag [#allocation4], %s4670
        %s4672 = sand.u32 %s132, 1
        %s4673 = smul.addr %s4672, 64
        %s4674 = scalar_lea.vmem [#allocation10], %s4673
        // Predicated region
        $region53: #{tpu_custom_call.1} parent=35 // pred_check
          %p4675 = pneg %p142
        $region54: #{tpu_custom_call.1} parent=35 // pred_check_branch
          %4677 = sbr.rel (%p4675) target = $region56
        $region55: #{tpu_custom_call.1} parent=35 // pred_region
          %s4679 = ssub.s32 1024, 1024
          %4680 = vsyncadd %s4671, %s4679
          %s4681 = smul.addr %s25, 8
          %s4682 = smul.addr %s4681, 128
          %s4683 = scalar_lea.hbm %s4, %s4682
          %s4684 = sshll.u32 %s4674, 4
          %s4685 = int_to_ptr.vmem [resolvable:$true] %s4684
          %4690 = dma.vmem_to_hbm [thread:$0]  %s4685, 1024, %s4683, %s4671, 128, 128, 8
        $region56: #{tpu_custom_call.1} parent=35 // pred_fallthru
          _
      $region36: #{tpu_custom_call.1} parent=5 // pred_fallthru
        _
      %p4691 = scmp.le.s32.totalorder 2, %s20
      // Predicated region
      $region57: #{tpu_custom_call.1} parent=5 // pred_check
        %p4692 = pneg %p4691
      $region58: #{tpu_custom_call.1} parent=5 // pred_check_branch
        %4694 = sbr.rel (%p4692) target = $region60
      $region59: #{tpu_custom_call.1} parent=5 // pred_region
        %s4695 = ssub.s32 %s20, 2
        // Predicated region
        $region61: #{tpu_custom_call.1} parent=59 // pred_check
          %p4696 = pneg %p148
        $region62: #{tpu_custom_call.1} parent=59 // pred_check_branch
          %4698 = sbr.rel (%p4696) target = $region64
        $region63: #{tpu_custom_call.1} parent=59 // pred_region
          %s4699 = sand.u32 %s133, 1
          %s4700 = scalar_lea.sflag [#allocation4], %s4699
          %s4701 = sand.u32 %s133, 1
          %s4702 = smul.addr %s4701, 64
          %s4703 = scalar_lea.vmem [#allocation10], %s4702
          %4704 = dma.done %s4700, 1024
        $region64: #{tpu_custom_call.1} parent=59 // pred_fallthru
          _
      $region60: #{tpu_custom_call.1} parent=5 // pred_fallthru
        _
    $region6: #{tpu_custom_call.1} parent=1 // loop_footer
      %s24 = sadd.s32 1, %s20
    $region7: #{tpu_custom_call.1} parent=1 // loop_footer_branch
      %19 = sbr.rel target = $region3
    $region8: #{tpu_custom_call.1} parent=1 // loop_exit
      _
    %4705 = vsyncpa [#allocation3], 1
    %s4706 = scalar_lea.sflag [#allocation3], 1
    %4707 = vsyncpa %s4706, 1
    %4708 = vsyncpa [#allocation6], 1
    %s4709 = scalar_lea.sflag [#allocation6], 1
    %4710 = vsyncpa %s4709, 1
    %4711 = vsyncpa [#allocation9], 1
    %4712 = vsyncpa [#allocation4], 1
    %s4713 = scalar_lea.sflag [#allocation4], 1
    %4714 = vsyncpa %s4713, 1

</llo_original>
